<compile_context>
chip_gen: v7x
topology: tpu7x:2x2x1
jax: 0.10.0
libtpu: 0.0.40
codegen_flags: <defaults>
</compile_context>

<pallas_src>
import jax
import jax.numpy as jnp
import numpy as np
from jax.experimental import pallas as pl
from jax.experimental.pallas import tpu as pltpu


# --------------------------------------------------------------------------
# Kernel
# --------------------------------------------------------------------------
def _fourier_kernel(x_ref, w_ref, phase_ref, o_ref):
    # x_ref:     (tm_rows, r*D)       packed input points (r points per row)
    # w_ref:     (r*D, r*2F)          block-diagonal, interleaved, 2*pi-scaled
    # phase_ref: (1, r*2F)            [0, pi/2, 0, pi/2, ...] tiled r times
    # o_ref:     (tm_rows, r*2F)      lane-dense interleaved [sin f0, cos f0, ...]
    x = x_ref[...].astype(jnp.float32)
    proj = jnp.dot(x, w_ref[...], preferred_element_type=jnp.float32)
    o_ref[...] = jnp.sin(proj + phase_ref[...]).astype(o_ref.dtype)


# --------------------------------------------------------------------------
# Wrapper
# --------------------------------------------------------------------------
def _round_up(a, m):
    return (a + m - 1) // m * m


def _vmem_capacity_bytes():
    """Physical VMEM per TensorCore; conservative fallback if query fails."""
    try:
        info = pltpu.get_tpu_info()
        cap = getattr(info, "vmem_capacity_bytes", None)
        if cap:
            return int(cap)
    except Exception:
        pass
    return 64 << 20  # v7x-sized fallback (safe everywhere)


def fourier_features(x, frequencies, *, tm=None, out_dtype=None):
    """Pallas equivalent of FourierFeatures.forward.

    x:           (..., domain_dim)
    frequencies: (domain_dim, num_frequencies)
    tm:          optional tile size in *points* (auto-picked per chip if None)
    out_dtype:   optional override (e.g. jnp.bfloat16); math stays f32.
    returns:     (..., 2 * num_frequencies), interleaved [sin f0, cos f0, ...]
    """
    domain_dim, num_freq = frequencies.shape
    out_ch = 2 * num_freq
    out_dtype = x.dtype if out_dtype is None else jnp.dtype(out_dtype)
    lead_shape = x.shape[:-1]
    n = int(np.prod(lead_shape)) if lead_shape else 1

    # ---- row packing factor r: r points per row so the output row is >=128
    # lanes wide (unmasked stores).  r must divide n (keeps reshapes free).
    r = 1
    if out_ch < 128 and 128 % out_ch == 0:
        r = 128 // out_ch                       # power of two
    while r > 1 and (n % r) != 0:
        r //= 2

    packed_d = r * domain_dim
    out_cols = r * out_ch
    n_rows = n // r

    # ---- constant operands (built once, outside the hot path) --------------
    # 2*pi folded into the frequency matrix; columns interleaved [f0,f0,f1,f1,..]
    freq32 = frequencies.astype(jnp.float32) * (2.0 * np.pi)
    w_int = jnp.repeat(freq32, 2, axis=1)                        # (D, 2F)
    w_bd = jnp.kron(jnp.eye(r, dtype=jnp.float32), w_int)        # (r*D, r*2F)
    phase = jnp.asarray(
        np.tile(np.tile(np.array([0.0, np.pi / 2.0], np.float32), num_freq), r)
    ).reshape(1, out_cols)                                       # (1, r*2F)

    # ---- free, contiguous repack of the input ------------------------------
    x2 = x.reshape(n_rows, packed_d)

    # ---- generation-aware tile / VMEM sizing (lane-padded accounting) ------
    lane = 128
    x_item = jnp.dtype(x.dtype).itemsize
    o_item = jnp.dtype(out_dtype).itemsize
    in_cols_pad = _round_up(packed_d, lane)
    out_cols_pad = _round_up(out_cols, lane)
    per_row_bytes = (2 * in_cols_pad * x_item            # double-buffered input
                     + 2 * out_cols_pad * o_item         # double-buffered output
                     + 3 * out_cols_pad * 4)             # proj/sin f32 temporaries
    const_bytes = (2 * _round_up(packed_d, 8) * out_cols_pad * 4   # W (buffered)
                   + 2 * 8 * out_cols_pad * 4)                     # phase

    vmem_cap = _vmem_capacity_bytes()
    if vmem_cap <= (64 << 20):          # v7x-class: 64 MiB physical per TC
        limit_cap = 48 << 20
        tm_target_rows = 4096
    else:                               # v5e / v6e: 128 MiB VMEM
        limit_cap = 64 << 20
        tm_target_rows = 8192
    if tm is not None:
        tm_target_rows = max(8, (int(tm) // r) // 8 * 8)

    budget = int(limit_cap * 0.85)
    rows_cap = max(8, ((budget - const_bytes) // per_row_bytes) // 8 * 8)
    tm_rows = min(tm_target_rows, rows_cap, _round_up(n_rows, 8))
    tm_rows = max(8, (tm_rows // 8) * 8)

    grid = (pl.cdiv(n_rows, tm_rows),)  # ragged last block handled by Pallas
    vmem_limit = int(min(limit_cap,
                         max(8 << 20,
                             per_row_bytes * tm_rows + const_bytes + (2 << 20))))

    out = pl.pallas_call(
        _fourier_kernel,
        out_shape=jax.ShapeDtypeStruct((n_rows, out_cols), out_dtype),
        grid_spec=pltpu.PrefetchScalarGridSpec(
            num_scalar_prefetch=0,
            grid=grid,
            in_specs=[
                pl.BlockSpec((tm_rows, packed_d), lambda i: (i, 0)),
                pl.BlockSpec((packed_d, out_cols), lambda i: (0, 0)),
                pl.BlockSpec((1, out_cols), lambda i: (0, 0)),
            ],
            out_specs=pl.BlockSpec((tm_rows, out_cols), lambda i: (i, 0)),
        ),
        compiler_params=pltpu.CompilerParams(
            dimension_semantics=("parallel",),
            vmem_limit_bytes=vmem_limit),
    )(x2, w_bd, phase)

    return out.reshape(*lead_shape, out_ch)


def init_frequencies(key, domain_dim, num_frequencies, std):
    # Concrete subclass behaviour: randn(domain_dim, num_frequencies) * std.
    return jax.random.normal(key, (domain_dim, num_frequencies),
                             dtype=jnp.float32) * std


def _reference(x, frequencies):
    lead_shape = x.shape[:-1]
    x2 = x.reshape(-1, frequencies.shape[0]).astype(jnp.float32) * (2.0 * np.pi)
    proj = jnp.dot(x2, frequencies.astype(jnp.float32),
                   precision=jax.lax.Precision.HIGHEST)
    out = jnp.stack([jnp.sin(proj), jnp.cos(proj)], axis=2)
    return out.reshape(*lead_shape, 2 * frequencies.shape[1])


if __name__ == "__main__":
    key = jax.random.PRNGKey(0)
    k_x, k_f = jax.random.split(key)

    domain_dim = 4
    num_frequencies = 32
    std = 1.0

    # Small example: batch=2, spatial 16x16, domain_dim coords per point.
    x = jax.random.normal(k_x, (2, 16, 16, domain_dim), dtype=jnp.float32)
    frequencies = init_frequencies(k_f, domain_dim, num_frequencies, std)

    out = fourier_features(x, frequencies)
    out = jax.block_until_ready(out)

    ref = _reference(x, frequencies)
    assert out.shape == (2, 16, 16, 2 * num_frequencies), out.shape
    np.testing.assert_allclose(np.asarray(out), np.asarray(ref),
                               rtol=1e-4, atol=1e-4)

    print("KERNEL_OK")
</pallas_src>

<mosaic_0001>
module attributes {stable_mosaic.version = 11 : i64} {
  func.func @_fourier_kernel(%arg0: i32, %arg1: memref<256x8xf32, #tpu.memory_space<vmem>>, %arg2: memref<8x128xf32, #tpu.memory_space<vmem>>, %arg3: memref<1x128xf32, #tpu.memory_space<vmem>>, %arg4: memref<256x128xf32, #tpu.memory_space<vmem>>) attributes {dimension_semantics = [#tpu.dimension_semantics<parallel>], iteration_bounds = array<i64: 1>, scalar_prefetch = 0 : i64, scratch_operands = 0 : i64, tpu.core_type = #tpu.core_type<tc>, window_params = [{transform_indices = @transform_0, window_bounds = array<i64: 256, 8>}, {pipeline_mode = #tpu.pipeline_mode<synchronous>, transform_indices = @transform_1, window_bounds = array<i64: 8, 128>}, {pipeline_mode = #tpu.pipeline_mode<synchronous>, transform_indices = @transform_2, window_bounds = array<i64: 1, 128>}, {transform_indices = @transform_3, window_bounds = array<i64: 256, 128>}]} {
    %c0 = arith.constant 0 : index
    %c0_0 = arith.constant 0 : index
    %0 = vector.load %arg1[%c0, %c0_0] : memref<256x8xf32, #tpu.memory_space<vmem>>, vector<256x8xf32>
    %c0_1 = arith.constant 0 : index
    %c0_2 = arith.constant 0 : index
    %1 = vector.load %arg2[%c0_1, %c0_2] : memref<8x128xf32, #tpu.memory_space<vmem>>, vector<8x128xf32>
    %cst = arith.constant dense<0.000000e+00> : vector<256x128xf32>
    %2 = tpu.matmul %0, %1, %cst {dimension_numbers = #tpu.dot_dimension_numbers<[1], [0], [0], [1], [0, 0, 1, 1], [], []>} : vector<256x8xf32>, vector<8x128xf32>, vector<256x128xf32> -> vector<256x128xf32>
    %c0_3 = arith.constant 0 : index
    %c0_4 = arith.constant 0 : index
    %3 = vector.load %arg3[%c0_3, %c0_4] : memref<1x128xf32, #tpu.memory_space<vmem>>, vector<1x128xf32>
    %4 = vector.broadcast %3 : vector<1x128xf32> to vector<256x128xf32>
    %5 = arith.addf %2, %4 : vector<256x128xf32>
    %6 = math.sin %5 : vector<256x128xf32>
    %c0_5 = arith.constant 0 : index
    %c0_6 = arith.constant 0 : index
    %7 = vector.load %arg4[%c0_5, %c0_6] : memref<256x128xf32, #tpu.memory_space<vmem>>, vector<256x128xf32>
    tpu.vector_store %arg4[%c0_5, %c0_6], %6 {strides = array<i32>} : memref<256x128xf32, #tpu.memory_space<vmem>>, vector<256x128xf32>,
    return
  }
  func.func @transform_0(%arg0: i32) -> (i32, i32) {
    %c0_i32 = arith.constant 0 : i32
    %c0_i32_0 = arith.constant 0 : i32
    return %arg0, %c0_i32 : i32, i32
  }
  func.func @transform_1(%arg0: i32) -> (i32, i32) {
    %c0_i32 = arith.constant 0 : i32
    %c0_i32_0 = arith.constant 0 : i32
    %c0_i32_1 = arith.constant 0 : i32
    return %c0_i32, %c0_i32_0 : i32, i32
  }
  func.func @transform_2(%arg0: i32) -> (i32, i32) {
    %c0_i32 = arith.constant 0 : i32
    %c0_i32_0 = arith.constant 0 : i32
    %c0_i32_1 = arith.constant 0 : i32
    return %c0_i32, %c0_i32_0 : i32, i32
  }
  func.func @transform_3(%arg0: i32) -> (i32, i32) {
    %c0_i32 = arith.constant 0 : i32
    %c0_i32_0 = arith.constant 0 : i32
    return %arg0, %c0_i32 : i32, i32
  }
}

</mosaic_0001>

<llo_original>
// kernel: tpu_custom_call.1
$region0: #{tpu_custom_call.1}
  #allocation0 [shape = 'u32[]', space=smem, size = 0x4, offset = 0x4, fixed_abs, tag = 'smem constant byte address 0x4 - core index']
  #allocation1 [shape = 'u32[144,128]{1,0:T(1,128)}', space=vmem, size = 0x12000, scoped, tag = 'internal scratch']
  %s0 = inlined_call_operand.vmem [shape: f32[256,8], index: 0, kind: input, shape index: {}]
  %s1 = inlined_call_operand.vmem [shape: f32[8,128], index: 1, kind: input, shape index: {}]
  %s2 = inlined_call_operand.vmem [shape: f32[1,128], index: 2, kind: input, shape index: {}]
  %s3 = inlined_call_operand.hbm [shape: f32[256,128], index: 3, kind: output, shape index: {}]
  %s4 = sld [smem:[#allocation0]]
  $region22: #{tpu_custom_call.1} parent=0
    _
  %s6 = ssub.s32 1, %s4
  %s7 = scalar_select 0, %s6, %s4
  $region1: #{tpu_custom_call.1} parent=0
    #allocation2 [shape = 'u8[131072]{0}', space=vmem, size = 0x20000, scoped, tag = 'output window, operand 0, single buffered']
    #allocation3 [shape = 's32[1]{0}', space=sflag, size = 0x4, scoped, tag = 'scoped memory for tpu_custom_call.1']
    %8 = vsyncpa [#allocation3], 0
    // Predicated region
    $region2: #{tpu_custom_call.1} parent=1 // pred_check
      _
    $region3: #{tpu_custom_call.1} parent=1 // pred_check_branch
      %10 = sbr.rel (0) target = $region5
    $region4: #{tpu_custom_call.1} parent=1 // pred_region
      _
    $region5: #{tpu_custom_call.1} parent=1 // pred_fallthru
      _
    // Predicated region
    $region6: #{tpu_custom_call.1} parent=1 // pred_check
      _
    $region7: #{tpu_custom_call.1} parent=1 // pred_check_branch
      %12 = sbr.rel (0) target = $region9
    $region8: #{tpu_custom_call.1} parent=1 // pred_region
      _
    $region9: #{tpu_custom_call.1} parent=1 // pred_fallthru
      _
    // Predicated region
    $region10: #{tpu_custom_call.1} parent=1 // pred_check
      _
    $region11: #{tpu_custom_call.1} parent=1 // pred_check_branch
      %14 = sbr.rel (0) target = $region13
    $region12: #{tpu_custom_call.1} parent=1 // pred_region
      _
    $region13: #{tpu_custom_call.1} parent=1 // pred_fallthru
      _
    %v15 = vld [vmem:[%s0] sm:$0xff]
    %v16 = vld [vmem:[%s0 + $0x8] sm:$0xff]
    %v17 = vld [vmem:[%s0 + $0x10] sm:$0xff]
    %v18 = vld [vmem:[%s0 + $0x18] sm:$0xff]
    %v19 = vld [vmem:[%s0 + $0x20] sm:$0xff]
    %v20 = vld [vmem:[%s0 + $0x28] sm:$0xff]
    %v21 = vld [vmem:[%s0 + $0x30] sm:$0xff]
    %v22 = vld [vmem:[%s0 + $0x38] sm:$0xff]
    %v23 = vld [vmem:[%s0 + $0x40] sm:$0xff]
    %v24 = vld [vmem:[%s0 + $0x48] sm:$0xff]
    %v25 = vld [vmem:[%s0 + $0x50] sm:$0xff]
    %v26 = vld [vmem:[%s0 + $0x58] sm:$0xff]
    %v27 = vld [vmem:[%s0 + $0x60] sm:$0xff]
    %v28 = vld [vmem:[%s0 + $0x68] sm:$0xff]
    %v29 = vld [vmem:[%s0 + $0x70] sm:$0xff]
    %v30 = vld [vmem:[%s0 + $0x78] sm:$0xff]
    %v31 = vld [vmem:[%s0 + $0x80] sm:$0xff]
    %v32 = vld [vmem:[%s0 + $0x88] sm:$0xff]
    %v33 = vld [vmem:[%s0 + $0x90] sm:$0xff]
    %v34 = vld [vmem:[%s0 + $0x98] sm:$0xff]
    %v35 = vld [vmem:[%s0 + $0xa0] sm:$0xff]
    %v36 = vld [vmem:[%s0 + $0xa8] sm:$0xff]
    %v37 = vld [vmem:[%s0 + $0xb0] sm:$0xff]
    %v38 = vld [vmem:[%s0 + $0xb8] sm:$0xff]
    %v39 = vld [vmem:[%s0 + $0xc0] sm:$0xff]
    %v40 = vld [vmem:[%s0 + $0xc8] sm:$0xff]
    %v41 = vld [vmem:[%s0 + $0xd0] sm:$0xff]
    %v42 = vld [vmem:[%s0 + $0xd8] sm:$0xff]
    %v43 = vld [vmem:[%s0 + $0xe0] sm:$0xff]
    %v44 = vld [vmem:[%s0 + $0xe8] sm:$0xff]
    %v45 = vld [vmem:[%s0 + $0xf0] sm:$0xff]
    %v46 = vld [vmem:[%s0 + $0xf8] sm:$0xff]
    %v47 = vld [vmem:[%s1] sm:$0xff]
    %v48 = vld [vmem:[%s2] sm:$0x1]
    %v50 = vlaneseq
    %v51 = vshrl.u32 %v50, 7
    %v52 = vsub.s32 0, %v51
    %v53 = vrot.slane %v48, %v52
    %vm55 = vcmask 64512
    %v57 = vsel %vm55, %v15, 0
    %v60 = vsel %vm55, %v16, 0
    %v63 = vsel %vm55, %v17, 0
    %v66 = vsel %vm55, %v18, 0
    %v69 = vsel %vm55, %v19, 0
    %v72 = vsel %vm55, %v20, 0
    %v75 = vsel %vm55, %v21, 0
    %v78 = vsel %vm55, %v22, 0
    %v81 = vsel %vm55, %v23, 0
    %v84 = vsel %vm55, %v24, 0
    %v87 = vsel %vm55, %v25, 0
    %v90 = vsel %vm55, %v26, 0
    %v93 = vsel %vm55, %v27, 0
    %v96 = vsel %vm55, %v28, 0
    %v99 = vsel %vm55, %v29, 0
    %v102 = vsel %vm55, %v30, 0
    %v105 = vsel %vm55, %v31, 0
    %v108 = vsel %vm55, %v32, 0
    %v111 = vsel %vm55, %v33, 0
    %v114 = vsel %vm55, %v34, 0
    %v117 = vsel %vm55, %v35, 0
    %v120 = vsel %vm55, %v36, 0
    %v123 = vsel %vm55, %v37, 0
    %v126 = vsel %vm55, %v38, 0
    %v129 = vsel %vm55, %v39, 0
    %v132 = vsel %vm55, %v40, 0
    %v135 = vsel %vm55, %v41, 0
    %v138 = vsel %vm55, %v42, 0
    %v141 = vsel %vm55, %v43, 0
    %v144 = vsel %vm55, %v44, 0
    %v147 = vsel %vm55, %v45, 0
    %v150 = vsel %vm55, %v46, 0
    %152 = vmatprep.subr.mxu0 0.0
    %153 = vmatpush1.msra.mxu0 %v47
    %154 = vmatprep.subr.mxu0 0.0
    %155 = vmatpush1.msra.mxu0 0.0
    %156 = vmatprep.subr.mxu0 0.0
    %157 = vmatpush1.msra.mxu0 0.0
    %158 = vmatprep.subr.mxu0 0.0
    %159 = vmatpush1.msra.mxu0 0.0
    %160 = vmatprep.subr.mxu0 0.0
    %161 = vmatpush1.msra.mxu0 0.0
    %162 = vmatprep.subr.mxu0 0.0
    %163 = vmatpush1.msra.mxu0 0.0
    %164 = vmatprep.subr.mxu0 0.0
    %165 = vmatpush1.msra.mxu0 0.0
    %166 = vmatprep.subr.mxu0 0.0
    %167 = vmatpush1.msra.mxu0 0.0
    %168 = vmatprep.subr.mxu0 0.0
    %169 = vmatpush1.msra.mxu0 0.0
    %170 = vmatprep.subr.mxu0 0.0
    %171 = vmatpush1.msra.mxu0 0.0
    %172 = vmatprep.subr.mxu0 0.0
    %173 = vmatpush1.msra.mxu0 0.0
    %174 = vmatprep.subr.mxu0 0.0
    %175 = vmatpush1.msra.mxu0 0.0
    %176 = vmatprep.subr.mxu0 0.0
    %177 = vmatpush1.msra.mxu0 0.0
    %178 = vmatprep.subr.mxu0 0.0
    %179 = vmatpush1.msra.mxu0 0.0
    %180 = vmatprep.subr.mxu0 0.0
    %181 = vmatpush1.msra.mxu0 0.0
    %182 = vmatprep.subr.mxu0 0.0
    %183 = vmatpush1.msra.mxu0 0.0
    %184 = vmatprep.subr.mxu0 0.0
    %185 = vmatpush1.msra.mxu0 0.0
    %186 = vmatprep.subr.mxu0 0.0
    %187 = vmatpush1.msra.mxu0 0.0
    %188 = vmatprep.subr.mxu0 0.0
    %189 = vmatpush1.msra.mxu0 0.0
    %190 = vmatprep.subr.mxu0 0.0
    %191 = vmatpush1.msra.mxu0 0.0
    %192 = vmatprep.subr.mxu0 0.0
    %193 = vmatpush1.msra.mxu0 0.0
    %194 = vmatprep.subr.mxu0 0.0
    %195 = vmatpush1.msra.mxu0 0.0
    %196 = vmatprep.subr.mxu0 0.0
    %197 = vmatpush1.msra.mxu0 0.0
    %198 = vmatprep.subr.mxu0 0.0
    %199 = vmatpush1.msra.mxu0 0.0
    %200 = vmatprep.subr.mxu0 0.0
    %201 = vmatpush1.msra.mxu0 0.0
    %202 = vmatprep.subr.mxu0 0.0
    %203 = vmatpush1.msra.mxu0 0.0
    %204 = vmatprep.subr.mxu0 0.0
    %205 = vmatpush1.msra.mxu0 0.0
    %206 = vmatprep.subr.mxu0 0.0
    %207 = vmatpush1.msra.mxu0 0.0
    %208 = vmatprep.subr.mxu0 0.0
    %209 = vmatpush1.msra.mxu0 0.0
    %210 = vmatprep.subr.mxu0 0.0
    %211 = vmatpush1.msra.mxu0 0.0
    %212 = vmatprep.subr.mxu0 0.0
    %213 = vmatpush1.msra.mxu0 0.0
    %214 = vmatprep.subr.mxu0 0.0
    %215 = vmatpush1.msra.mxu0 0.0
    %216 = vmatprep.mubr.f32.mxu0 0.0
    %217 = vmatmul.mubr.f32.gmra.mrb[0].mxu0 %v57
    %v218 = vpop.f32.mrb[0].mxu0
    %v219 = vadd.f32 %v53, %v218
    %v220 = vpop.f32.mrb[0].mxu0
    %221 = vmatprep.mubr.f32.mxu0 0.0
    %222 = vmatmul.mubr.f32.gmra.mrb[0].mxu0 %v60
    %v223 = vpop.f32.mrb[0].mxu0
    %v224 = vadd.f32 %v53, %v223
    %v225 = vpop.f32.mrb[0].mxu0
    %226 = vmatprep.mubr.f32.mxu0 0.0
    %227 = vmatmul.mubr.f32.gmra.mrb[0].mxu0 %v63
    %v228 = vpop.f32.mrb[0].mxu0
    %v229 = vadd.f32 %v53, %v228
    %v230 = vpop.f32.mrb[0].mxu0
    %231 = vmatprep.mubr.f32.mxu0 0.0
    %232 = vmatmul.mubr.f32.gmra.mrb[0].mxu0 %v66
    %v233 = vpop.f32.mrb[0].mxu0
    %v234 = vadd.f32 %v53, %v233
    %v235 = vpop.f32.mrb[0].mxu0
    %236 = vmatprep.mubr.f32.mxu0 0.0
    %237 = vmatmul.mubr.f32.gmra.mrb[0].mxu0 %v69
    %v238 = vpop.f32.mrb[0].mxu0
    %v239 = vadd.f32 %v53, %v238
    %v240 = vpop.f32.mrb[0].mxu0
    %241 = vmatprep.mubr.f32.mxu0 0.0
    %242 = vmatmul.mubr.f32.gmra.mrb[0].mxu0 %v72
    %v243 = vpop.f32.mrb[0].mxu0
    %v244 = vadd.f32 %v53, %v243
    %v245 = vpop.f32.mrb[0].mxu0
    %246 = vmatprep.mubr.f32.mxu0 0.0
    %247 = vmatmul.mubr.f32.gmra.mrb[0].mxu0 %v75
    %v248 = vpop.f32.mrb[0].mxu0
    %v249 = vadd.f32 %v53, %v248
    %v250 = vpop.f32.mrb[0].mxu0
    %251 = vmatprep.mubr.f32.mxu0 0.0
    %252 = vmatmul.mubr.f32.gmra.mrb[0].mxu0 %v78
    %v253 = vpop.f32.mrb[0].mxu0
    %v254 = vadd.f32 %v53, %v253
    %v255 = vpop.f32.mrb[0].mxu0
    %256 = vmatprep.mubr.f32.mxu0 0.0
    %257 = vmatmul.mubr.f32.gmra.mrb[0].mxu0 %v81
    %v258 = vpop.f32.mrb[0].mxu0
    %v259 = vadd.f32 %v53, %v258
    %v260 = vpop.f32.mrb[0].mxu0
    %261 = vmatprep.mubr.f32.mxu0 0.0
    %262 = vmatmul.mubr.f32.gmra.mrb[0].mxu0 %v84
    %v263 = vpop.f32.mrb[0].mxu0
    %v264 = vadd.f32 %v53, %v263
    %v265 = vpop.f32.mrb[0].mxu0
    %266 = vmatprep.mubr.f32.mxu0 0.0
    %267 = vmatmul.mubr.f32.gmra.mrb[0].mxu0 %v87
    %v268 = vpop.f32.mrb[0].mxu0
    %v269 = vadd.f32 %v53, %v268
    %v270 = vpop.f32.mrb[0].mxu0
    %271 = vmatprep.mubr.f32.mxu0 0.0
    %272 = vmatmul.mubr.f32.gmra.mrb[0].mxu0 %v90
    %v273 = vpop.f32.mrb[0].mxu0
    %v274 = vadd.f32 %v53, %v273
    %v275 = vpop.f32.mrb[0].mxu0
    %276 = vmatprep.mubr.f32.mxu0 0.0
    %277 = vmatmul.mubr.f32.gmra.mrb[0].mxu0 %v93
    %v278 = vpop.f32.mrb[0].mxu0
    %v279 = vadd.f32 %v53, %v278
    %v280 = vpop.f32.mrb[0].mxu0
    %281 = vmatprep.mubr.f32.mxu0 0.0
    %282 = vmatmul.mubr.f32.gmra.mrb[0].mxu0 %v96
    %v283 = vpop.f32.mrb[0].mxu0
    %v284 = vadd.f32 %v53, %v283
    %v285 = vpop.f32.mrb[0].mxu0
    %286 = vmatprep.mubr.f32.mxu0 0.0
    %287 = vmatmul.mubr.f32.gmra.mrb[0].mxu0 %v99
    %v288 = vpop.f32.mrb[0].mxu0
    %v289 = vadd.f32 %v53, %v288
    %v290 = vpop.f32.mrb[0].mxu0
    %291 = vmatprep.mubr.f32.mxu0 0.0
    %292 = vmatmul.mubr.f32.gmra.mrb[0].mxu0 %v102
    %v293 = vpop.f32.mrb[0].mxu0
    %v294 = vadd.f32 %v53, %v293
    %v295 = vpop.f32.mrb[0].mxu0
    %296 = vmatprep.mubr.f32.mxu0 0.0
    %297 = vmatmul.mubr.f32.gmra.mrb[0].mxu0 %v105
    %v298 = vpop.f32.mrb[0].mxu0
    %v299 = vadd.f32 %v53, %v298
    %v300 = vpop.f32.mrb[0].mxu0
    %301 = vmatprep.mubr.f32.mxu0 0.0
    %302 = vmatmul.mubr.f32.gmra.mrb[0].mxu0 %v108
    %v303 = vpop.f32.mrb[0].mxu0
    %v304 = vadd.f32 %v53, %v303
    %v305 = vpop.f32.mrb[0].mxu0
    %306 = vmatprep.mubr.f32.mxu0 0.0
    %307 = vmatmul.mubr.f32.gmra.mrb[0].mxu0 %v111
    %v308 = vpop.f32.mrb[0].mxu0
    %v309 = vadd.f32 %v53, %v308
    %v310 = vpop.f32.mrb[0].mxu0
    %311 = vmatprep.mubr.f32.mxu0 0.0
    %312 = vmatmul.mubr.f32.gmra.mrb[0].mxu0 %v114
    %v313 = vpop.f32.mrb[0].mxu0
    %v314 = vadd.f32 %v53, %v313
    %v315 = vpop.f32.mrb[0].mxu0
    %316 = vmatprep.mubr.f32.mxu0 0.0
    %317 = vmatmul.mubr.f32.gmra.mrb[0].mxu0 %v117
    %v318 = vpop.f32.mrb[0].mxu0
    %v319 = vadd.f32 %v53, %v318
    %v320 = vpop.f32.mrb[0].mxu0
    %321 = vmatprep.mubr.f32.mxu0 0.0
    %322 = vmatmul.mubr.f32.gmra.mrb[0].mxu0 %v120
    %v323 = vpop.f32.mrb[0].mxu0
    %v324 = vadd.f32 %v53, %v323
    %v325 = vpop.f32.mrb[0].mxu0
    %326 = vmatprep.mubr.f32.mxu0 0.0
    %327 = vmatmul.mubr.f32.gmra.mrb[0].mxu0 %v123
    %v328 = vpop.f32.mrb[0].mxu0
    %v329 = vadd.f32 %v53, %v328
    %v330 = vpop.f32.mrb[0].mxu0
    %331 = vmatprep.mubr.f32.mxu0 0.0
    %332 = vmatmul.mubr.f32.gmra.mrb[0].mxu0 %v126
    %v333 = vpop.f32.mrb[0].mxu0
    %v334 = vadd.f32 %v53, %v333
    %v335 = vpop.f32.mrb[0].mxu0
    %336 = vmatprep.mubr.f32.mxu0 0.0
    %337 = vmatmul.mubr.f32.gmra.mrb[0].mxu0 %v129
    %v338 = vpop.f32.mrb[0].mxu0
    %v339 = vadd.f32 %v53, %v338
    %v340 = vpop.f32.mrb[0].mxu0
    %341 = vmatprep.mubr.f32.mxu0 0.0
    %342 = vmatmul.mubr.f32.gmra.mrb[0].mxu0 %v132
    %v343 = vpop.f32.mrb[0].mxu0
    %v344 = vadd.f32 %v53, %v343
    %v345 = vpop.f32.mrb[0].mxu0
    %346 = vmatprep.mubr.f32.mxu0 0.0
    %347 = vmatmul.mubr.f32.gmra.mrb[0].mxu0 %v135
    %v348 = vpop.f32.mrb[0].mxu0
    %v349 = vadd.f32 %v53, %v348
    %v350 = vpop.f32.mrb[0].mxu0
    %351 = vmatprep.mubr.f32.mxu0 0.0
    %352 = vmatmul.mubr.f32.gmra.mrb[0].mxu0 %v138
    %v353 = vpop.f32.mrb[0].mxu0
    %v354 = vadd.f32 %v53, %v353
    %v355 = vpop.f32.mrb[0].mxu0
    %356 = vmatprep.mubr.f32.mxu0 0.0
    %357 = vmatmul.mubr.f32.gmra.mrb[0].mxu0 %v141
    %v358 = vpop.f32.mrb[0].mxu0
    %v359 = vadd.f32 %v53, %v358
    %v360 = vpop.f32.mrb[0].mxu0
    %361 = vmatprep.mubr.f32.mxu0 0.0
    %362 = vmatmul.mubr.f32.gmra.mrb[0].mxu0 %v144
    %v363 = vpop.f32.mrb[0].mxu0
    %v364 = vadd.f32 %v53, %v363
    %v365 = vpop.f32.mrb[0].mxu0
    %366 = vmatprep.mubr.f32.mxu0 0.0
    %367 = vmatmul.mubr.f32.gmra.mrb[0].mxu0 %v147
    %v368 = vpop.f32.mrb[0].mxu0
    %v369 = vadd.f32 %v53, %v368
    %v370 = vpop.f32.mrb[0].mxu0
    %371 = vmatprep.mubr.f32.mxu0 0.0
    %372 = vmatmul.mubr.f32.gmra.mrb[0].mxu0 %v150
    %v373 = vpop.f32.mrb[0].mxu0
    %v374 = vadd.f32 %v53, %v373
    %v375 = vpop.f32.mrb[0].mxu0
    %376 = vdwg.mxu0
    %v377 = vand.u32 2147483647, %v219
    %vm378 = vcmp.le.f32.partialorder %v377, 0.7853982
    %vm379 = vcmp.lt.s32.totalorder %v219, 0
    %v380 = vand.u32 %v219, 2139095040
    %v381 = vshrl.u32 %v380, 23
    %v382 = vsub.s32 %v381, 127
    %v383 = vand.u32 2147483647, %v219
    %v384 = vand.u32 %v383, 8388607
    %v385 = vor.u32 %v384, 8388608
    %v386 = vsub.s32 0, %v385
    %v387 = vadd.s32 %v382, 1
    %vm388 = vcmp.gt.s32.totalorder %v387, 0
    %v389 = vsel %vm388, %v387, 0
    %v390 = vshrl.u32 %v389, 5
    %v391 = vand.u32 %v389, 31
    %v392 = vsub.s32 32, %v391
    %v393 = vshrl.u32 683565275, %v392
    %v394 = vshll.u32 683565275, %v391
    %v395 = vshrl.u32 2475754826, %v392
    %v396 = vor.u32 %v394, %v395
    %v397 = vshll.u32 2475754826, %v391
    %v398 = vshrl.u32 2131351028, %v392
    %v399 = vor.u32 %v397, %v398
    %v400 = vshll.u32 2131351028, %v391
    %v401 = vshrl.u32 2102212464, %v392
    %v402 = vor.u32 %v400, %v401
    %v403 = vshll.u32 2102212464, %v391
    %v404 = vshrl.u32 920167782, %v392
    %v405 = vor.u32 %v403, %v404
    %v406 = vshll.u32 920167782, %v391
    %v407 = vshrl.u32 1326507024, %v392
    %v408 = vor.u32 %v406, %v407
    %vm409 = vcmp.lt.s32.totalorder %v390, 1
    %vm410 = vcmp.lt.s32.totalorder %v390, 2
    %vm411 = vcmp.lt.s32.totalorder %v390, 3
    %vm412 = vcmp.lt.s32.totalorder %v390, 4
    %v413 = vsel %vm409, %v393, %v396
    %v414 = vsel %vm412, %v402, 2102212464
    %v415 = vsel %vm411, %v399, %v414
    %v416 = vsel %vm410, %v413, %v415
    %v417 = vsel %vm409, %v396, %v399
    %v418 = vsel %vm412, %v405, 920167782
    %v419 = vsel %vm411, %v402, %v418
    %v420 = vsel %vm410, %v417, %v419
    %v421 = vsel %vm409, %v399, %v402
    %v422 = vsel %vm412, %v408, 1326507024
    %v423 = vsel %vm411, %v405, %v422
    %v424 = vsel %vm410, %v421, %v423
    %v425 = vshll.u32 %v385, 8
    %v426 = vmul.u32.u64.compose %v425, %v424
    %v427 = vextract.low.u32 %v426
    %v428 = vextract.high.u32 %v426
    %v429 = vmul.u32.u64.compose %v425, %v420
    %v430 = vextract.low.u32 %v429
    %v431 = vextract.high.u32 %v429
    %v432 = vmul.u32 %v425, %v416
    %v433 = vadd.s32 %v428, %v430
    %vm434 = vc.u32 %v428, %v430
    %v435 = vadd.s32 %v431, 1
    %v436 = vsel %vm434, %v435, %v431
    %v437 = vadd.s32 %v432, %v436
    %v438 = vadd.s32 %v437, 536870912
    %v439 = vshrl.u32 %v438, 30
    %v440 = vshll.u32 %v439, 30
    %v441 = vsub.s32 %v437, %v440
    %vm442 = vcmp.lt.s32.totalorder %v441, 0
    %v443 = vsub.s32 0, %v441
    %v444 = vsel %vm442, %v443, %v441
    %v445 = vclz %v444
    %v446 = vsub.s32 %v445, 2
    %vm447 = vcmp.gt.s32.totalorder 0, %v446
    %v448 = vsel %vm447, 0, %v446
    %v449 = vsub.s32 32, %v448
    %v450 = vshll.u32 %v441, %v448
    %v451 = vshrl.u32 %v433, %v449
    %v452 = vor.u32 %v450, %v451
    %v453 = vsub.s32 4294967266, %v448
    %v454 = vadd.s32 %v453, 127
    %v455 = vshll.u32 %v454, 23
    %v456 = vor.u32 4788187, %v455
    %v457 = vand.u32 2147483647, %v456
    %v459 = vcvt.s32.f32 %v452
    %v460 = vmul.f32 %v459, %v457
    %v461 = vxor.u32 %v460, 2147483648
    %v462 = vsel %vm379, %v461, %v460
    %v463 = vsub.s32 4, %v439
    %v464 = vsel %vm379, %v463, %v439
    %v465 = vsel %vm378, %v219, %v462
    %v466 = vsel %vm378, 0, %v464
    %v467 = vcosq.f32.pop %v465
    %v468 = vsinq.f32.pop %v465
    %vm469 = vweird.f32 %v219
    %v470 = vadd.s32 %v466, 3
    %v471 = vand.u32 %v470, 3
    %vm472 = vcmp.lt.s32.totalorder %v471, 2
    %vm473 = vcmp.eq.s32.totalorder %v471, 0
    %v474 = vxor.u32 %v468, 2147483648
    %v475 = vsel %vm473, %v467, %v474
    %vm476 = vcmp.eq.s32.totalorder %v471, 2
    %v477 = vxor.u32 %v467, 2147483648
    %v478 = vsel %vm476, %v477, %v468
    %v479 = vsel %vm472, %v475, %v478
    %v480 = vsel %vm469, nan, %v479
    %v481 = vand.u32 2147483647, %v224
    %vm482 = vcmp.le.f32.partialorder %v481, 0.7853982
    %vm483 = vcmp.lt.s32.totalorder %v224, 0
    %v484 = vand.u32 %v224, 2139095040
    %v485 = vshrl.u32 %v484, 23
    %v486 = vsub.s32 %v485, 127
    %v487 = vand.u32 2147483647, %v224
    %v488 = vand.u32 %v487, 8388607
    %v489 = vor.u32 %v488, 8388608
    %v490 = vsub.s32 0, %v489
    %v491 = vadd.s32 %v486, 1
    %vm492 = vcmp.gt.s32.totalorder %v491, 0
    %v493 = vsel %vm492, %v491, 0
    %v494 = vshrl.u32 %v493, 5
    %v495 = vand.u32 %v493, 31
    %v496 = vsub.s32 32, %v495
    %v497 = vshrl.u32 683565275, %v496
    %v498 = vshll.u32 683565275, %v495
    %v499 = vshrl.u32 2475754826, %v496
    %v500 = vor.u32 %v498, %v499
    %v501 = vshll.u32 2475754826, %v495
    %v502 = vshrl.u32 2131351028, %v496
    %v503 = vor.u32 %v501, %v502
    %v504 = vshll.u32 2131351028, %v495
    %v505 = vshrl.u32 2102212464, %v496
    %v506 = vor.u32 %v504, %v505
    %v507 = vshll.u32 2102212464, %v495
    %v508 = vshrl.u32 920167782, %v496
    %v509 = vor.u32 %v507, %v508
    %v510 = vshll.u32 920167782, %v495
    %v511 = vshrl.u32 1326507024, %v496
    %v512 = vor.u32 %v510, %v511
    %vm513 = vcmp.lt.s32.totalorder %v494, 1
    %vm514 = vcmp.lt.s32.totalorder %v494, 2
    %vm515 = vcmp.lt.s32.totalorder %v494, 3
    %vm516 = vcmp.lt.s32.totalorder %v494, 4
    %v517 = vsel %vm513, %v497, %v500
    %v518 = vsel %vm516, %v506, 2102212464
    %v519 = vsel %vm515, %v503, %v518
    %v520 = vsel %vm514, %v517, %v519
    %v521 = vsel %vm513, %v500, %v503
    %v522 = vsel %vm516, %v509, 920167782
    %v523 = vsel %vm515, %v506, %v522
    %v524 = vsel %vm514, %v521, %v523
    %v525 = vsel %vm513, %v503, %v506
    %v526 = vsel %vm516, %v512, 1326507024
    %v527 = vsel %vm515, %v509, %v526
    %v528 = vsel %vm514, %v525, %v527
    %v529 = vshll.u32 %v489, 8
    %v530 = vmul.u32.u64.compose %v529, %v528
    %v531 = vextract.low.u32 %v530
    %v532 = vextract.high.u32 %v530
    %v533 = vmul.u32.u64.compose %v529, %v524
    %v534 = vextract.low.u32 %v533
    %v535 = vextract.high.u32 %v533
    %v536 = vmul.u32 %v529, %v520
    %v537 = vadd.s32 %v532, %v534
    %vm538 = vc.u32 %v532, %v534
    %v539 = vadd.s32 %v535, 1
    %v540 = vsel %vm538, %v539, %v535
    %v541 = vadd.s32 %v536, %v540
    %v542 = vadd.s32 %v541, 536870912
    %v543 = vshrl.u32 %v542, 30
    %v544 = vshll.u32 %v543, 30
    %v545 = vsub.s32 %v541, %v544
    %vm546 = vcmp.lt.s32.totalorder %v545, 0
    %v547 = vsub.s32 0, %v545
    %v548 = vsel %vm546, %v547, %v545
    %v549 = vclz %v548
    %v550 = vsub.s32 %v549, 2
    %vm551 = vcmp.gt.s32.totalorder 0, %v550
    %v552 = vsel %vm551, 0, %v550
    %v553 = vsub.s32 32, %v552
    %v554 = vshll.u32 %v545, %v552
    %v555 = vshrl.u32 %v537, %v553
    %v556 = vor.u32 %v554, %v555
    %v557 = vsub.s32 4294967266, %v552
    %v558 = vadd.s32 %v557, 127
    %v559 = vshll.u32 %v558, 23
    %v560 = vor.u32 4788187, %v559
    %v561 = vand.u32 2147483647, %v560
    %v563 = vcvt.s32.f32 %v556
    %v564 = vmul.f32 %v563, %v561
    %v565 = vxor.u32 %v564, 2147483648
    %v566 = vsel %vm483, %v565, %v564
    %v567 = vsub.s32 4, %v543
    %v568 = vsel %vm483, %v567, %v543
    %v569 = vsel %vm482, %v224, %v566
    %v570 = vsel %vm482, 0, %v568
    %v571 = vcosq.f32.pop %v569
    %v572 = vsinq.f32.pop %v569
    %vm573 = vweird.f32 %v224
    %v574 = vadd.s32 %v570, 3
    %v575 = vand.u32 %v574, 3
    %vm576 = vcmp.lt.s32.totalorder %v575, 2
    %vm577 = vcmp.eq.s32.totalorder %v575, 0
    %v578 = vxor.u32 %v572, 2147483648
    %v579 = vsel %vm577, %v571, %v578
    %vm580 = vcmp.eq.s32.totalorder %v575, 2
    %v581 = vxor.u32 %v571, 2147483648
    %v582 = vsel %vm580, %v581, %v572
    %v583 = vsel %vm576, %v579, %v582
    %v584 = vsel %vm573, nan, %v583
    %v585 = vand.u32 2147483647, %v229
    %vm586 = vcmp.le.f32.partialorder %v585, 0.7853982
    %vm587 = vcmp.lt.s32.totalorder %v229, 0
    %v588 = vand.u32 %v229, 2139095040
    %v589 = vshrl.u32 %v588, 23
    %v590 = vsub.s32 %v589, 127
    %v591 = vand.u32 2147483647, %v229
    %v592 = vand.u32 %v591, 8388607
    %v593 = vor.u32 %v592, 8388608
    %v594 = vsub.s32 0, %v593
    %v595 = vadd.s32 %v590, 1
    %vm596 = vcmp.gt.s32.totalorder %v595, 0
    %v597 = vsel %vm596, %v595, 0
    %v598 = vshrl.u32 %v597, 5
    %v599 = vand.u32 %v597, 31
    %v600 = vsub.s32 32, %v599
    %v601 = vshrl.u32 683565275, %v600
    %v602 = vshll.u32 683565275, %v599
    %v603 = vshrl.u32 2475754826, %v600
    %v604 = vor.u32 %v602, %v603
    %v605 = vshll.u32 2475754826, %v599
    %v606 = vshrl.u32 2131351028, %v600
    %v607 = vor.u32 %v605, %v606
    %v608 = vshll.u32 2131351028, %v599
    %v609 = vshrl.u32 2102212464, %v600
    %v610 = vor.u32 %v608, %v609
    %v611 = vshll.u32 2102212464, %v599
    %v612 = vshrl.u32 920167782, %v600
    %v613 = vor.u32 %v611, %v612
    %v614 = vshll.u32 920167782, %v599
    %v615 = vshrl.u32 1326507024, %v600
    %v616 = vor.u32 %v614, %v615
    %vm617 = vcmp.lt.s32.totalorder %v598, 1
    %vm618 = vcmp.lt.s32.totalorder %v598, 2
    %vm619 = vcmp.lt.s32.totalorder %v598, 3
    %vm620 = vcmp.lt.s32.totalorder %v598, 4
    %v621 = vsel %vm617, %v601, %v604
    %v622 = vsel %vm620, %v610, 2102212464
    %v623 = vsel %vm619, %v607, %v622
    %v624 = vsel %vm618, %v621, %v623
    %v625 = vsel %vm617, %v604, %v607
    %v626 = vsel %vm620, %v613, 920167782
    %v627 = vsel %vm619, %v610, %v626
    %v628 = vsel %vm618, %v625, %v627
    %v629 = vsel %vm617, %v607, %v610
    %v630 = vsel %vm620, %v616, 1326507024
    %v631 = vsel %vm619, %v613, %v630
    %v632 = vsel %vm618, %v629, %v631
    %v633 = vshll.u32 %v593, 8
    %v634 = vmul.u32.u64.compose %v633, %v632
    %v635 = vextract.low.u32 %v634
    %v636 = vextract.high.u32 %v634
    %v637 = vmul.u32.u64.compose %v633, %v628
    %v638 = vextract.low.u32 %v637
    %v639 = vextract.high.u32 %v637
    %v640 = vmul.u32 %v633, %v624
    %v641 = vadd.s32 %v636, %v638
    %vm642 = vc.u32 %v636, %v638
    %v643 = vadd.s32 %v639, 1
    %v644 = vsel %vm642, %v643, %v639
    %v645 = vadd.s32 %v640, %v644
    %v646 = vadd.s32 %v645, 536870912
    %v647 = vshrl.u32 %v646, 30
    %v648 = vshll.u32 %v647, 30
    %v649 = vsub.s32 %v645, %v648
    %vm650 = vcmp.lt.s32.totalorder %v649, 0
    %v651 = vsub.s32 0, %v649
    %v652 = vsel %vm650, %v651, %v649
    %v653 = vclz %v652
    %v654 = vsub.s32 %v653, 2
    %vm655 = vcmp.gt.s32.totalorder 0, %v654
    %v656 = vsel %vm655, 0, %v654
    %v657 = vsub.s32 32, %v656
    %v658 = vshll.u32 %v649, %v656
    %v659 = vshrl.u32 %v641, %v657
    %v660 = vor.u32 %v658, %v659
    %v661 = vsub.s32 4294967266, %v656
    %v662 = vadd.s32 %v661, 127
    %v663 = vshll.u32 %v662, 23
    %v664 = vor.u32 4788187, %v663
    %v665 = vand.u32 2147483647, %v664
    %v667 = vcvt.s32.f32 %v660
    %v668 = vmul.f32 %v667, %v665
    %v669 = vxor.u32 %v668, 2147483648
    %v670 = vsel %vm587, %v669, %v668
    %v671 = vsub.s32 4, %v647
    %v672 = vsel %vm587, %v671, %v647
    %v673 = vsel %vm586, %v229, %v670
    %v674 = vsel %vm586, 0, %v672
    %v675 = vcosq.f32.pop %v673
    %v676 = vsinq.f32.pop %v673
    %vm677 = vweird.f32 %v229
    %v678 = vadd.s32 %v674, 3
    %v679 = vand.u32 %v678, 3
    %vm680 = vcmp.lt.s32.totalorder %v679, 2
    %vm681 = vcmp.eq.s32.totalorder %v679, 0
    %v682 = vxor.u32 %v676, 2147483648
    %v683 = vsel %vm681, %v675, %v682
    %vm684 = vcmp.eq.s32.totalorder %v679, 2
    %v685 = vxor.u32 %v675, 2147483648
    %v686 = vsel %vm684, %v685, %v676
    %v687 = vsel %vm680, %v683, %v686
    %v688 = vsel %vm677, nan, %v687
    %v689 = vand.u32 2147483647, %v234
    %vm690 = vcmp.le.f32.partialorder %v689, 0.7853982
    %vm691 = vcmp.lt.s32.totalorder %v234, 0
    %v692 = vand.u32 %v234, 2139095040
    %v693 = vshrl.u32 %v692, 23
    %v694 = vsub.s32 %v693, 127
    %v695 = vand.u32 2147483647, %v234
    %v696 = vand.u32 %v695, 8388607
    %v697 = vor.u32 %v696, 8388608
    %v698 = vsub.s32 0, %v697
    %v699 = vadd.s32 %v694, 1
    %vm700 = vcmp.gt.s32.totalorder %v699, 0
    %v701 = vsel %vm700, %v699, 0
    %v702 = vshrl.u32 %v701, 5
    %v703 = vand.u32 %v701, 31
    %v704 = vsub.s32 32, %v703
    %v705 = vshrl.u32 683565275, %v704
    %v706 = vshll.u32 683565275, %v703
    %v707 = vshrl.u32 2475754826, %v704
    %v708 = vor.u32 %v706, %v707
    %v709 = vshll.u32 2475754826, %v703
    %v710 = vshrl.u32 2131351028, %v704
    %v711 = vor.u32 %v709, %v710
    %v712 = vshll.u32 2131351028, %v703
    %v713 = vshrl.u32 2102212464, %v704
    %v714 = vor.u32 %v712, %v713
    %v715 = vshll.u32 2102212464, %v703
    %v716 = vshrl.u32 920167782, %v704
    %v717 = vor.u32 %v715, %v716
    %v718 = vshll.u32 920167782, %v703
    %v719 = vshrl.u32 1326507024, %v704
    %v720 = vor.u32 %v718, %v719
    %vm721 = vcmp.lt.s32.totalorder %v702, 1
    %vm722 = vcmp.lt.s32.totalorder %v702, 2
    %vm723 = vcmp.lt.s32.totalorder %v702, 3
    %vm724 = vcmp.lt.s32.totalorder %v702, 4
    %v725 = vsel %vm721, %v705, %v708
    %v726 = vsel %vm724, %v714, 2102212464
    %v727 = vsel %vm723, %v711, %v726
    %v728 = vsel %vm722, %v725, %v727
    %v729 = vsel %vm721, %v708, %v711
    %v730 = vsel %vm724, %v717, 920167782
    %v731 = vsel %vm723, %v714, %v730
    %v732 = vsel %vm722, %v729, %v731
    %v733 = vsel %vm721, %v711, %v714
    %v734 = vsel %vm724, %v720, 1326507024
    %v735 = vsel %vm723, %v717, %v734
    %v736 = vsel %vm722, %v733, %v735
    %v737 = vshll.u32 %v697, 8
    %v738 = vmul.u32.u64.compose %v737, %v736
    %v739 = vextract.low.u32 %v738
    %v740 = vextract.high.u32 %v738
    %v741 = vmul.u32.u64.compose %v737, %v732
    %v742 = vextract.low.u32 %v741
    %v743 = vextract.high.u32 %v741
    %v744 = vmul.u32 %v737, %v728
    %v745 = vadd.s32 %v740, %v742
    %vm746 = vc.u32 %v740, %v742
    %v747 = vadd.s32 %v743, 1
    %v748 = vsel %vm746, %v747, %v743
    %v749 = vadd.s32 %v744, %v748
    %v750 = vadd.s32 %v749, 536870912
    %v751 = vshrl.u32 %v750, 30
    %v752 = vshll.u32 %v751, 30
    %v753 = vsub.s32 %v749, %v752
    %vm754 = vcmp.lt.s32.totalorder %v753, 0
    %v755 = vsub.s32 0, %v753
    %v756 = vsel %vm754, %v755, %v753
    %v757 = vclz %v756
    %v758 = vsub.s32 %v757, 2
    %vm759 = vcmp.gt.s32.totalorder 0, %v758
    %v760 = vsel %vm759, 0, %v758
    %v761 = vsub.s32 32, %v760
    %v762 = vshll.u32 %v753, %v760
    %v763 = vshrl.u32 %v745, %v761
    %v764 = vor.u32 %v762, %v763
    %v765 = vsub.s32 4294967266, %v760
    %v766 = vadd.s32 %v765, 127
    %v767 = vshll.u32 %v766, 23
    %v768 = vor.u32 4788187, %v767
    %v769 = vand.u32 2147483647, %v768
    %v771 = vcvt.s32.f32 %v764
    %v772 = vmul.f32 %v771, %v769
    %v773 = vxor.u32 %v772, 2147483648
    %v774 = vsel %vm691, %v773, %v772
    %v775 = vsub.s32 4, %v751
    %v776 = vsel %vm691, %v775, %v751
    %v777 = vsel %vm690, %v234, %v774
    %v778 = vsel %vm690, 0, %v776
    %v779 = vcosq.f32.pop %v777
    %v780 = vsinq.f32.pop %v777
    %vm781 = vweird.f32 %v234
    %v782 = vadd.s32 %v778, 3
    %v783 = vand.u32 %v782, 3
    %vm784 = vcmp.lt.s32.totalorder %v783, 2
    %vm785 = vcmp.eq.s32.totalorder %v783, 0
    %v786 = vxor.u32 %v780, 2147483648
    %v787 = vsel %vm785, %v779, %v786
    %vm788 = vcmp.eq.s32.totalorder %v783, 2
    %v789 = vxor.u32 %v779, 2147483648
    %v790 = vsel %vm788, %v789, %v780
    %v791 = vsel %vm784, %v787, %v790
    %v792 = vsel %vm781, nan, %v791
    %v793 = vand.u32 2147483647, %v239
    %vm794 = vcmp.le.f32.partialorder %v793, 0.7853982
    %vm795 = vcmp.lt.s32.totalorder %v239, 0
    %v796 = vand.u32 %v239, 2139095040
    %v797 = vshrl.u32 %v796, 23
    %v798 = vsub.s32 %v797, 127
    %v799 = vand.u32 2147483647, %v239
    %v800 = vand.u32 %v799, 8388607
    %v801 = vor.u32 %v800, 8388608
    %v802 = vsub.s32 0, %v801
    %v803 = vadd.s32 %v798, 1
    %vm804 = vcmp.gt.s32.totalorder %v803, 0
    %v805 = vsel %vm804, %v803, 0
    %v806 = vshrl.u32 %v805, 5
    %v807 = vand.u32 %v805, 31
    %v808 = vsub.s32 32, %v807
    %v809 = vshrl.u32 683565275, %v808
    %v810 = vshll.u32 683565275, %v807
    %v811 = vshrl.u32 2475754826, %v808
    %v812 = vor.u32 %v810, %v811
    %v813 = vshll.u32 2475754826, %v807
    %v814 = vshrl.u32 2131351028, %v808
    %v815 = vor.u32 %v813, %v814
    %v816 = vshll.u32 2131351028, %v807
    %v817 = vshrl.u32 2102212464, %v808
    %v818 = vor.u32 %v816, %v817
    %v819 = vshll.u32 2102212464, %v807
    %v820 = vshrl.u32 920167782, %v808
    %v821 = vor.u32 %v819, %v820
    %v822 = vshll.u32 920167782, %v807
    %v823 = vshrl.u32 1326507024, %v808
    %v824 = vor.u32 %v822, %v823
    %vm825 = vcmp.lt.s32.totalorder %v806, 1
    %vm826 = vcmp.lt.s32.totalorder %v806, 2
    %vm827 = vcmp.lt.s32.totalorder %v806, 3
    %vm828 = vcmp.lt.s32.totalorder %v806, 4
    %v829 = vsel %vm825, %v809, %v812
    %v830 = vsel %vm828, %v818, 2102212464
    %v831 = vsel %vm827, %v815, %v830
    %v832 = vsel %vm826, %v829, %v831
    %v833 = vsel %vm825, %v812, %v815
    %v834 = vsel %vm828, %v821, 920167782
    %v835 = vsel %vm827, %v818, %v834
    %v836 = vsel %vm826, %v833, %v835
    %v837 = vsel %vm825, %v815, %v818
    %v838 = vsel %vm828, %v824, 1326507024
    %v839 = vsel %vm827, %v821, %v838
    %v840 = vsel %vm826, %v837, %v839
    %v841 = vshll.u32 %v801, 8
    %v842 = vmul.u32.u64.compose %v841, %v840
    %v843 = vextract.low.u32 %v842
    %v844 = vextract.high.u32 %v842
    %v845 = vmul.u32.u64.compose %v841, %v836
    %v846 = vextract.low.u32 %v845
    %v847 = vextract.high.u32 %v845
    %v848 = vmul.u32 %v841, %v832
    %v849 = vadd.s32 %v844, %v846
    %vm850 = vc.u32 %v844, %v846
    %v851 = vadd.s32 %v847, 1
    %v852 = vsel %vm850, %v851, %v847
    %v853 = vadd.s32 %v848, %v852
    %v854 = vadd.s32 %v853, 536870912
    %v855 = vshrl.u32 %v854, 30
    %v856 = vshll.u32 %v855, 30
    %v857 = vsub.s32 %v853, %v856
    %vm858 = vcmp.lt.s32.totalorder %v857, 0
    %v859 = vsub.s32 0, %v857
    %v860 = vsel %vm858, %v859, %v857
    %v861 = vclz %v860
    %v862 = vsub.s32 %v861, 2
    %vm863 = vcmp.gt.s32.totalorder 0, %v862
    %v864 = vsel %vm863, 0, %v862
    %v865 = vsub.s32 32, %v864
    %v866 = vshll.u32 %v857, %v864
    %v867 = vshrl.u32 %v849, %v865
    %v868 = vor.u32 %v866, %v867
    %v869 = vsub.s32 4294967266, %v864
    %v870 = vadd.s32 %v869, 127
    %v871 = vshll.u32 %v870, 23
    %v872 = vor.u32 4788187, %v871
    %v873 = vand.u32 2147483647, %v872
    %v875 = vcvt.s32.f32 %v868
    %v876 = vmul.f32 %v875, %v873
    %v877 = vxor.u32 %v876, 2147483648
    %v878 = vsel %vm795, %v877, %v876
    %v879 = vsub.s32 4, %v855
    %v880 = vsel %vm795, %v879, %v855
    %v881 = vsel %vm794, %v239, %v878
    %v882 = vsel %vm794, 0, %v880
    %v883 = vcosq.f32.pop %v881
    %v884 = vsinq.f32.pop %v881
    %vm885 = vweird.f32 %v239
    %v886 = vadd.s32 %v882, 3
    %v887 = vand.u32 %v886, 3
    %vm888 = vcmp.lt.s32.totalorder %v887, 2
    %vm889 = vcmp.eq.s32.totalorder %v887, 0
    %v890 = vxor.u32 %v884, 2147483648
    %v891 = vsel %vm889, %v883, %v890
    %vm892 = vcmp.eq.s32.totalorder %v887, 2
    %v893 = vxor.u32 %v883, 2147483648
    %v894 = vsel %vm892, %v893, %v884
    %v895 = vsel %vm888, %v891, %v894
    %v896 = vsel %vm885, nan, %v895
    %v897 = vand.u32 2147483647, %v244
    %vm898 = vcmp.le.f32.partialorder %v897, 0.7853982
    %vm899 = vcmp.lt.s32.totalorder %v244, 0
    %v900 = vand.u32 %v244, 2139095040
    %v901 = vshrl.u32 %v900, 23
    %v902 = vsub.s32 %v901, 127
    %v903 = vand.u32 2147483647, %v244
    %v904 = vand.u32 %v903, 8388607
    %v905 = vor.u32 %v904, 8388608
    %v906 = vsub.s32 0, %v905
    %v907 = vadd.s32 %v902, 1
    %vm908 = vcmp.gt.s32.totalorder %v907, 0
    %v909 = vsel %vm908, %v907, 0
    %v910 = vshrl.u32 %v909, 5
    %v911 = vand.u32 %v909, 31
    %v912 = vsub.s32 32, %v911
    %v913 = vshrl.u32 683565275, %v912
    %v914 = vshll.u32 683565275, %v911
    %v915 = vshrl.u32 2475754826, %v912
    %v916 = vor.u32 %v914, %v915
    %v917 = vshll.u32 2475754826, %v911
    %v918 = vshrl.u32 2131351028, %v912
    %v919 = vor.u32 %v917, %v918
    %v920 = vshll.u32 2131351028, %v911
    %v921 = vshrl.u32 2102212464, %v912
    %v922 = vor.u32 %v920, %v921
    %v923 = vshll.u32 2102212464, %v911
    %v924 = vshrl.u32 920167782, %v912
    %v925 = vor.u32 %v923, %v924
    %v926 = vshll.u32 920167782, %v911
    %v927 = vshrl.u32 1326507024, %v912
    %v928 = vor.u32 %v926, %v927
    %vm929 = vcmp.lt.s32.totalorder %v910, 1
    %vm930 = vcmp.lt.s32.totalorder %v910, 2
    %vm931 = vcmp.lt.s32.totalorder %v910, 3
    %vm932 = vcmp.lt.s32.totalorder %v910, 4
    %v933 = vsel %vm929, %v913, %v916
    %v934 = vsel %vm932, %v922, 2102212464
    %v935 = vsel %vm931, %v919, %v934
    %v936 = vsel %vm930, %v933, %v935
    %v937 = vsel %vm929, %v916, %v919
    %v938 = vsel %vm932, %v925, 920167782
    %v939 = vsel %vm931, %v922, %v938
    %v940 = vsel %vm930, %v937, %v939
    %v941 = vsel %vm929, %v919, %v922
    %v942 = vsel %vm932, %v928, 1326507024
    %v943 = vsel %vm931, %v925, %v942
    %v944 = vsel %vm930, %v941, %v943
    %v945 = vshll.u32 %v905, 8
    %v946 = vmul.u32.u64.compose %v945, %v944
    %v947 = vextract.low.u32 %v946
    %v948 = vextract.high.u32 %v946
    %v949 = vmul.u32.u64.compose %v945, %v940
    %v950 = vextract.low.u32 %v949
    %v951 = vextract.high.u32 %v949
    %v952 = vmul.u32 %v945, %v936
    %v953 = vadd.s32 %v948, %v950
    %vm954 = vc.u32 %v948, %v950
    %v955 = vadd.s32 %v951, 1
    %v956 = vsel %vm954, %v955, %v951
    %v957 = vadd.s32 %v952, %v956
    %v958 = vadd.s32 %v957, 536870912
    %v959 = vshrl.u32 %v958, 30
    %v960 = vshll.u32 %v959, 30
    %v961 = vsub.s32 %v957, %v960
    %vm962 = vcmp.lt.s32.totalorder %v961, 0
    %v963 = vsub.s32 0, %v961
    %v964 = vsel %vm962, %v963, %v961
    %v965 = vclz %v964
    %v966 = vsub.s32 %v965, 2
    %vm967 = vcmp.gt.s32.totalorder 0, %v966
    %v968 = vsel %vm967, 0, %v966
    %v969 = vsub.s32 32, %v968
    %v970 = vshll.u32 %v961, %v968
    %v971 = vshrl.u32 %v953, %v969
    %v972 = vor.u32 %v970, %v971
    %v973 = vsub.s32 4294967266, %v968
    %v974 = vadd.s32 %v973, 127
    %v975 = vshll.u32 %v974, 23
    %v976 = vor.u32 4788187, %v975
    %v977 = vand.u32 2147483647, %v976
    %v979 = vcvt.s32.f32 %v972
    %v980 = vmul.f32 %v979, %v977
    %v981 = vxor.u32 %v980, 2147483648
    %v982 = vsel %vm899, %v981, %v980
    %v983 = vsub.s32 4, %v959
    %v984 = vsel %vm899, %v983, %v959
    %v985 = vsel %vm898, %v244, %v982
    %v986 = vsel %vm898, 0, %v984
    %v987 = vcosq.f32.pop %v985
    %v988 = vsinq.f32.pop %v985
    %vm989 = vweird.f32 %v244
    %v990 = vadd.s32 %v986, 3
    %v991 = vand.u32 %v990, 3
    %vm992 = vcmp.lt.s32.totalorder %v991, 2
    %vm993 = vcmp.eq.s32.totalorder %v991, 0
    %v994 = vxor.u32 %v988, 2147483648
    %v995 = vsel %vm993, %v987, %v994
    %vm996 = vcmp.eq.s32.totalorder %v991, 2
    %v997 = vxor.u32 %v987, 2147483648
    %v998 = vsel %vm996, %v997, %v988
    %v999 = vsel %vm992, %v995, %v998
    %v1000 = vsel %vm989, nan, %v999
    %v1001 = vand.u32 2147483647, %v249
    %vm1002 = vcmp.le.f32.partialorder %v1001, 0.7853982
    %vm1003 = vcmp.lt.s32.totalorder %v249, 0
    %v1004 = vand.u32 %v249, 2139095040
    %v1005 = vshrl.u32 %v1004, 23
    %v1006 = vsub.s32 %v1005, 127
    %v1007 = vand.u32 2147483647, %v249
    %v1008 = vand.u32 %v1007, 8388607
    %v1009 = vor.u32 %v1008, 8388608
    %v1010 = vsub.s32 0, %v1009
    %v1011 = vadd.s32 %v1006, 1
    %vm1012 = vcmp.gt.s32.totalorder %v1011, 0
    %v1013 = vsel %vm1012, %v1011, 0
    %v1014 = vshrl.u32 %v1013, 5
    %v1015 = vand.u32 %v1013, 31
    %v1016 = vsub.s32 32, %v1015
    %v1017 = vshrl.u32 683565275, %v1016
    %v1018 = vshll.u32 683565275, %v1015
    %v1019 = vshrl.u32 2475754826, %v1016
    %v1020 = vor.u32 %v1018, %v1019
    %v1021 = vshll.u32 2475754826, %v1015
    %v1022 = vshrl.u32 2131351028, %v1016
    %v1023 = vor.u32 %v1021, %v1022
    %v1024 = vshll.u32 2131351028, %v1015
    %v1025 = vshrl.u32 2102212464, %v1016
    %v1026 = vor.u32 %v1024, %v1025
    %v1027 = vshll.u32 2102212464, %v1015
    %v1028 = vshrl.u32 920167782, %v1016
    %v1029 = vor.u32 %v1027, %v1028
    %v1030 = vshll.u32 920167782, %v1015
    %v1031 = vshrl.u32 1326507024, %v1016
    %v1032 = vor.u32 %v1030, %v1031
    %vm1033 = vcmp.lt.s32.totalorder %v1014, 1
    %vm1034 = vcmp.lt.s32.totalorder %v1014, 2
    %vm1035 = vcmp.lt.s32.totalorder %v1014, 3
    %vm1036 = vcmp.lt.s32.totalorder %v1014, 4
    %v1037 = vsel %vm1033, %v1017, %v1020
    %v1038 = vsel %vm1036, %v1026, 2102212464
    %v1039 = vsel %vm1035, %v1023, %v1038
    %v1040 = vsel %vm1034, %v1037, %v1039
    %v1041 = vsel %vm1033, %v1020, %v1023
    %v1042 = vsel %vm1036, %v1029, 920167782
    %v1043 = vsel %vm1035, %v1026, %v1042
    %v1044 = vsel %vm1034, %v1041, %v1043
    %v1045 = vsel %vm1033, %v1023, %v1026
    %v1046 = vsel %vm1036, %v1032, 1326507024
    %v1047 = vsel %vm1035, %v1029, %v1046
    %v1048 = vsel %vm1034, %v1045, %v1047
    %v1049 = vshll.u32 %v1009, 8
    %v1050 = vmul.u32.u64.compose %v1049, %v1048
    %v1051 = vextract.low.u32 %v1050
    %v1052 = vextract.high.u32 %v1050
    %v1053 = vmul.u32.u64.compose %v1049, %v1044
    %v1054 = vextract.low.u32 %v1053
    %v1055 = vextract.high.u32 %v1053
    %v1056 = vmul.u32 %v1049, %v1040
    %v1057 = vadd.s32 %v1052, %v1054
    %vm1058 = vc.u32 %v1052, %v1054
    %v1059 = vadd.s32 %v1055, 1
    %v1060 = vsel %vm1058, %v1059, %v1055
    %v1061 = vadd.s32 %v1056, %v1060
    %v1062 = vadd.s32 %v1061, 536870912
    %v1063 = vshrl.u32 %v1062, 30
    %v1064 = vshll.u32 %v1063, 30
    %v1065 = vsub.s32 %v1061, %v1064
    %vm1066 = vcmp.lt.s32.totalorder %v1065, 0
    %v1067 = vsub.s32 0, %v1065
    %v1068 = vsel %vm1066, %v1067, %v1065
    %v1069 = vclz %v1068
    %v1070 = vsub.s32 %v1069, 2
    %vm1071 = vcmp.gt.s32.totalorder 0, %v1070
    %v1072 = vsel %vm1071, 0, %v1070
    %v1073 = vsub.s32 32, %v1072
    %v1074 = vshll.u32 %v1065, %v1072
    %v1075 = vshrl.u32 %v1057, %v1073
    %v1076 = vor.u32 %v1074, %v1075
    %v1077 = vsub.s32 4294967266, %v1072
    %v1078 = vadd.s32 %v1077, 127
    %v1079 = vshll.u32 %v1078, 23
    %v1080 = vor.u32 4788187, %v1079
    %v1081 = vand.u32 2147483647, %v1080
    %v1083 = vcvt.s32.f32 %v1076
    %v1084 = vmul.f32 %v1083, %v1081
    %v1085 = vxor.u32 %v1084, 2147483648
    %v1086 = vsel %vm1003, %v1085, %v1084
    %v1087 = vsub.s32 4, %v1063
    %v1088 = vsel %vm1003, %v1087, %v1063
    %v1089 = vsel %vm1002, %v249, %v1086
    %v1090 = vsel %vm1002, 0, %v1088
    %v1091 = vcosq.f32.pop %v1089
    %v1092 = vsinq.f32.pop %v1089
    %vm1093 = vweird.f32 %v249
    %v1094 = vadd.s32 %v1090, 3
    %v1095 = vand.u32 %v1094, 3
    %vm1096 = vcmp.lt.s32.totalorder %v1095, 2
    %vm1097 = vcmp.eq.s32.totalorder %v1095, 0
    %v1098 = vxor.u32 %v1092, 2147483648
    %v1099 = vsel %vm1097, %v1091, %v1098
    %vm1100 = vcmp.eq.s32.totalorder %v1095, 2
    %v1101 = vxor.u32 %v1091, 2147483648
    %v1102 = vsel %vm1100, %v1101, %v1092
    %v1103 = vsel %vm1096, %v1099, %v1102
    %v1104 = vsel %vm1093, nan, %v1103
    %v1105 = vand.u32 2147483647, %v254
    %vm1106 = vcmp.le.f32.partialorder %v1105, 0.7853982
    %vm1107 = vcmp.lt.s32.totalorder %v254, 0
    %v1108 = vand.u32 %v254, 2139095040
    %v1109 = vshrl.u32 %v1108, 23
    %v1110 = vsub.s32 %v1109, 127
    %v1111 = vand.u32 2147483647, %v254
    %v1112 = vand.u32 %v1111, 8388607
    %v1113 = vor.u32 %v1112, 8388608
    %v1114 = vsub.s32 0, %v1113
    %v1115 = vadd.s32 %v1110, 1
    %vm1116 = vcmp.gt.s32.totalorder %v1115, 0
    %v1117 = vsel %vm1116, %v1115, 0
    %v1118 = vshrl.u32 %v1117, 5
    %v1119 = vand.u32 %v1117, 31
    %v1120 = vsub.s32 32, %v1119
    %v1121 = vshrl.u32 683565275, %v1120
    %v1122 = vshll.u32 683565275, %v1119
    %v1123 = vshrl.u32 2475754826, %v1120
    %v1124 = vor.u32 %v1122, %v1123
    %v1125 = vshll.u32 2475754826, %v1119
    %v1126 = vshrl.u32 2131351028, %v1120
    %v1127 = vor.u32 %v1125, %v1126
    %v1128 = vshll.u32 2131351028, %v1119
    %v1129 = vshrl.u32 2102212464, %v1120
    %v1130 = vor.u32 %v1128, %v1129
    %v1131 = vshll.u32 2102212464, %v1119
    %v1132 = vshrl.u32 920167782, %v1120
    %v1133 = vor.u32 %v1131, %v1132
    %v1134 = vshll.u32 920167782, %v1119
    %v1135 = vshrl.u32 1326507024, %v1120
    %v1136 = vor.u32 %v1134, %v1135
    %vm1137 = vcmp.lt.s32.totalorder %v1118, 1
    %vm1138 = vcmp.lt.s32.totalorder %v1118, 2
    %vm1139 = vcmp.lt.s32.totalorder %v1118, 3
    %vm1140 = vcmp.lt.s32.totalorder %v1118, 4
    %v1141 = vsel %vm1137, %v1121, %v1124
    %v1142 = vsel %vm1140, %v1130, 2102212464
    %v1143 = vsel %vm1139, %v1127, %v1142
    %v1144 = vsel %vm1138, %v1141, %v1143
    %v1145 = vsel %vm1137, %v1124, %v1127
    %v1146 = vsel %vm1140, %v1133, 920167782
    %v1147 = vsel %vm1139, %v1130, %v1146
    %v1148 = vsel %vm1138, %v1145, %v1147
    %v1149 = vsel %vm1137, %v1127, %v1130
    %v1150 = vsel %vm1140, %v1136, 1326507024
    %v1151 = vsel %vm1139, %v1133, %v1150
    %v1152 = vsel %vm1138, %v1149, %v1151
    %v1153 = vshll.u32 %v1113, 8
    %v1154 = vmul.u32.u64.compose %v1153, %v1152
    %v1155 = vextract.low.u32 %v1154
    %v1156 = vextract.high.u32 %v1154
    %v1157 = vmul.u32.u64.compose %v1153, %v1148
    %v1158 = vextract.low.u32 %v1157
    %v1159 = vextract.high.u32 %v1157
    %v1160 = vmul.u32 %v1153, %v1144
    %v1161 = vadd.s32 %v1156, %v1158
    %vm1162 = vc.u32 %v1156, %v1158
    %v1163 = vadd.s32 %v1159, 1
    %v1164 = vsel %vm1162, %v1163, %v1159
    %v1165 = vadd.s32 %v1160, %v1164
    %v1166 = vadd.s32 %v1165, 536870912
    %v1167 = vshrl.u32 %v1166, 30
    %v1168 = vshll.u32 %v1167, 30
    %v1169 = vsub.s32 %v1165, %v1168
    %vm1170 = vcmp.lt.s32.totalorder %v1169, 0
    %v1171 = vsub.s32 0, %v1169
    %v1172 = vsel %vm1170, %v1171, %v1169
    %v1173 = vclz %v1172
    %v1174 = vsub.s32 %v1173, 2
    %vm1175 = vcmp.gt.s32.totalorder 0, %v1174
    %v1176 = vsel %vm1175, 0, %v1174
    %v1177 = vsub.s32 32, %v1176
    %v1178 = vshll.u32 %v1169, %v1176
    %v1179 = vshrl.u32 %v1161, %v1177
    %v1180 = vor.u32 %v1178, %v1179
    %v1181 = vsub.s32 4294967266, %v1176
    %v1182 = vadd.s32 %v1181, 127
    %v1183 = vshll.u32 %v1182, 23
    %v1184 = vor.u32 4788187, %v1183
    %v1185 = vand.u32 2147483647, %v1184
    %v1187 = vcvt.s32.f32 %v1180
    %v1188 = vmul.f32 %v1187, %v1185
    %v1189 = vxor.u32 %v1188, 2147483648
    %v1190 = vsel %vm1107, %v1189, %v1188
    %v1191 = vsub.s32 4, %v1167
    %v1192 = vsel %vm1107, %v1191, %v1167
    %v1193 = vsel %vm1106, %v254, %v1190
    %v1194 = vsel %vm1106, 0, %v1192
    %v1195 = vcosq.f32.pop %v1193
    %v1196 = vsinq.f32.pop %v1193
    %vm1197 = vweird.f32 %v254
    %v1198 = vadd.s32 %v1194, 3
    %v1199 = vand.u32 %v1198, 3
    %vm1200 = vcmp.lt.s32.totalorder %v1199, 2
    %vm1201 = vcmp.eq.s32.totalorder %v1199, 0
    %v1202 = vxor.u32 %v1196, 2147483648
    %v1203 = vsel %vm1201, %v1195, %v1202
    %vm1204 = vcmp.eq.s32.totalorder %v1199, 2
    %v1205 = vxor.u32 %v1195, 2147483648
    %v1206 = vsel %vm1204, %v1205, %v1196
    %v1207 = vsel %vm1200, %v1203, %v1206
    %v1208 = vsel %vm1197, nan, %v1207
    %v1209 = vand.u32 2147483647, %v259
    %vm1210 = vcmp.le.f32.partialorder %v1209, 0.7853982
    %vm1211 = vcmp.lt.s32.totalorder %v259, 0
    %v1212 = vand.u32 %v259, 2139095040
    %v1213 = vshrl.u32 %v1212, 23
    %v1214 = vsub.s32 %v1213, 127
    %v1215 = vand.u32 2147483647, %v259
    %v1216 = vand.u32 %v1215, 8388607
    %v1217 = vor.u32 %v1216, 8388608
    %v1218 = vsub.s32 0, %v1217
    %v1219 = vadd.s32 %v1214, 1
    %vm1220 = vcmp.gt.s32.totalorder %v1219, 0
    %v1221 = vsel %vm1220, %v1219, 0
    %v1222 = vshrl.u32 %v1221, 5
    %v1223 = vand.u32 %v1221, 31
    %v1224 = vsub.s32 32, %v1223
    %v1225 = vshrl.u32 683565275, %v1224
    %v1226 = vshll.u32 683565275, %v1223
    %v1227 = vshrl.u32 2475754826, %v1224
    %v1228 = vor.u32 %v1226, %v1227
    %v1229 = vshll.u32 2475754826, %v1223
    %v1230 = vshrl.u32 2131351028, %v1224
    %v1231 = vor.u32 %v1229, %v1230
    %v1232 = vshll.u32 2131351028, %v1223
    %v1233 = vshrl.u32 2102212464, %v1224
    %v1234 = vor.u32 %v1232, %v1233
    %v1235 = vshll.u32 2102212464, %v1223
    %v1236 = vshrl.u32 920167782, %v1224
    %v1237 = vor.u32 %v1235, %v1236
    %v1238 = vshll.u32 920167782, %v1223
    %v1239 = vshrl.u32 1326507024, %v1224
    %v1240 = vor.u32 %v1238, %v1239
    %vm1241 = vcmp.lt.s32.totalorder %v1222, 1
    %vm1242 = vcmp.lt.s32.totalorder %v1222, 2
    %vm1243 = vcmp.lt.s32.totalorder %v1222, 3
    %vm1244 = vcmp.lt.s32.totalorder %v1222, 4
    %v1245 = vsel %vm1241, %v1225, %v1228
    %v1246 = vsel %vm1244, %v1234, 2102212464
    %v1247 = vsel %vm1243, %v1231, %v1246
    %v1248 = vsel %vm1242, %v1245, %v1247
    %v1249 = vsel %vm1241, %v1228, %v1231
    %v1250 = vsel %vm1244, %v1237, 920167782
    %v1251 = vsel %vm1243, %v1234, %v1250
    %v1252 = vsel %vm1242, %v1249, %v1251
    %v1253 = vsel %vm1241, %v1231, %v1234
    %v1254 = vsel %vm1244, %v1240, 1326507024
    %v1255 = vsel %vm1243, %v1237, %v1254
    %v1256 = vsel %vm1242, %v1253, %v1255
    %v1257 = vshll.u32 %v1217, 8
    %v1258 = vmul.u32.u64.compose %v1257, %v1256
    %v1259 = vextract.low.u32 %v1258
    %v1260 = vextract.high.u32 %v1258
    %v1261 = vmul.u32.u64.compose %v1257, %v1252
    %v1262 = vextract.low.u32 %v1261
    %v1263 = vextract.high.u32 %v1261
    %v1264 = vmul.u32 %v1257, %v1248
    %v1265 = vadd.s32 %v1260, %v1262
    %vm1266 = vc.u32 %v1260, %v1262
    %v1267 = vadd.s32 %v1263, 1
    %v1268 = vsel %vm1266, %v1267, %v1263
    %v1269 = vadd.s32 %v1264, %v1268
    %v1270 = vadd.s32 %v1269, 536870912
    %v1271 = vshrl.u32 %v1270, 30
    %v1272 = vshll.u32 %v1271, 30
    %v1273 = vsub.s32 %v1269, %v1272
    %vm1274 = vcmp.lt.s32.totalorder %v1273, 0
    %v1275 = vsub.s32 0, %v1273
    %v1276 = vsel %vm1274, %v1275, %v1273
    %v1277 = vclz %v1276
    %v1278 = vsub.s32 %v1277, 2
    %vm1279 = vcmp.gt.s32.totalorder 0, %v1278
    %v1280 = vsel %vm1279, 0, %v1278
    %v1281 = vsub.s32 32, %v1280
    %v1282 = vshll.u32 %v1273, %v1280
    %v1283 = vshrl.u32 %v1265, %v1281
    %v1284 = vor.u32 %v1282, %v1283
    %v1285 = vsub.s32 4294967266, %v1280
    %v1286 = vadd.s32 %v1285, 127
    %v1287 = vshll.u32 %v1286, 23
    %v1288 = vor.u32 4788187, %v1287
    %v1289 = vand.u32 2147483647, %v1288
    %v1291 = vcvt.s32.f32 %v1284
    %v1292 = vmul.f32 %v1291, %v1289
    %v1293 = vxor.u32 %v1292, 2147483648
    %v1294 = vsel %vm1211, %v1293, %v1292
    %v1295 = vsub.s32 4, %v1271
    %v1296 = vsel %vm1211, %v1295, %v1271
    %v1297 = vsel %vm1210, %v259, %v1294
    %v1298 = vsel %vm1210, 0, %v1296
    %v1299 = vcosq.f32.pop %v1297
    %v1300 = vsinq.f32.pop %v1297
    %vm1301 = vweird.f32 %v259
    %v1302 = vadd.s32 %v1298, 3
    %v1303 = vand.u32 %v1302, 3
    %vm1304 = vcmp.lt.s32.totalorder %v1303, 2
    %vm1305 = vcmp.eq.s32.totalorder %v1303, 0
    %v1306 = vxor.u32 %v1300, 2147483648
    %v1307 = vsel %vm1305, %v1299, %v1306
    %vm1308 = vcmp.eq.s32.totalorder %v1303, 2
    %v1309 = vxor.u32 %v1299, 2147483648
    %v1310 = vsel %vm1308, %v1309, %v1300
    %v1311 = vsel %vm1304, %v1307, %v1310
    %v1312 = vsel %vm1301, nan, %v1311
    %v1313 = vand.u32 2147483647, %v264
    %vm1314 = vcmp.le.f32.partialorder %v1313, 0.7853982
    %vm1315 = vcmp.lt.s32.totalorder %v264, 0
    %v1316 = vand.u32 %v264, 2139095040
    %v1317 = vshrl.u32 %v1316, 23
    %v1318 = vsub.s32 %v1317, 127
    %v1319 = vand.u32 2147483647, %v264
    %v1320 = vand.u32 %v1319, 8388607
    %v1321 = vor.u32 %v1320, 8388608
    %v1322 = vsub.s32 0, %v1321
    %v1323 = vadd.s32 %v1318, 1
    %vm1324 = vcmp.gt.s32.totalorder %v1323, 0
    %v1325 = vsel %vm1324, %v1323, 0
    %v1326 = vshrl.u32 %v1325, 5
    %v1327 = vand.u32 %v1325, 31
    %v1328 = vsub.s32 32, %v1327
    %v1329 = vshrl.u32 683565275, %v1328
    %v1330 = vshll.u32 683565275, %v1327
    %v1331 = vshrl.u32 2475754826, %v1328
    %v1332 = vor.u32 %v1330, %v1331
    %v1333 = vshll.u32 2475754826, %v1327
    %v1334 = vshrl.u32 2131351028, %v1328
    %v1335 = vor.u32 %v1333, %v1334
    %v1336 = vshll.u32 2131351028, %v1327
    %v1337 = vshrl.u32 2102212464, %v1328
    %v1338 = vor.u32 %v1336, %v1337
    %v1339 = vshll.u32 2102212464, %v1327
    %v1340 = vshrl.u32 920167782, %v1328
    %v1341 = vor.u32 %v1339, %v1340
    %v1342 = vshll.u32 920167782, %v1327
    %v1343 = vshrl.u32 1326507024, %v1328
    %v1344 = vor.u32 %v1342, %v1343
    %vm1345 = vcmp.lt.s32.totalorder %v1326, 1
    %vm1346 = vcmp.lt.s32.totalorder %v1326, 2
    %vm1347 = vcmp.lt.s32.totalorder %v1326, 3
    %vm1348 = vcmp.lt.s32.totalorder %v1326, 4
    %v1349 = vsel %vm1345, %v1329, %v1332
    %v1350 = vsel %vm1348, %v1338, 2102212464
    %v1351 = vsel %vm1347, %v1335, %v1350
    %v1352 = vsel %vm1346, %v1349, %v1351
    %v1353 = vsel %vm1345, %v1332, %v1335
    %v1354 = vsel %vm1348, %v1341, 920167782
    %v1355 = vsel %vm1347, %v1338, %v1354
    %v1356 = vsel %vm1346, %v1353, %v1355
    %v1357 = vsel %vm1345, %v1335, %v1338
    %v1358 = vsel %vm1348, %v1344, 1326507024
    %v1359 = vsel %vm1347, %v1341, %v1358
    %v1360 = vsel %vm1346, %v1357, %v1359
    %v1361 = vshll.u32 %v1321, 8
    %v1362 = vmul.u32.u64.compose %v1361, %v1360
    %v1363 = vextract.low.u32 %v1362
    %v1364 = vextract.high.u32 %v1362
    %v1365 = vmul.u32.u64.compose %v1361, %v1356
    %v1366 = vextract.low.u32 %v1365
    %v1367 = vextract.high.u32 %v1365
    %v1368 = vmul.u32 %v1361, %v1352
    %v1369 = vadd.s32 %v1364, %v1366
    %vm1370 = vc.u32 %v1364, %v1366
    %v1371 = vadd.s32 %v1367, 1
    %v1372 = vsel %vm1370, %v1371, %v1367
    %v1373 = vadd.s32 %v1368, %v1372
    %v1374 = vadd.s32 %v1373, 536870912
    %v1375 = vshrl.u32 %v1374, 30
    %v1376 = vshll.u32 %v1375, 30
    %v1377 = vsub.s32 %v1373, %v1376
    %vm1378 = vcmp.lt.s32.totalorder %v1377, 0
    %v1379 = vsub.s32 0, %v1377
    %v1380 = vsel %vm1378, %v1379, %v1377
    %v1381 = vclz %v1380
    %v1382 = vsub.s32 %v1381, 2
    %vm1383 = vcmp.gt.s32.totalorder 0, %v1382
    %v1384 = vsel %vm1383, 0, %v1382
    %v1385 = vsub.s32 32, %v1384
    %v1386 = vshll.u32 %v1377, %v1384
    %v1387 = vshrl.u32 %v1369, %v1385
    %v1388 = vor.u32 %v1386, %v1387
    %v1389 = vsub.s32 4294967266, %v1384
    %v1390 = vadd.s32 %v1389, 127
    %v1391 = vshll.u32 %v1390, 23
    %v1392 = vor.u32 4788187, %v1391
    %v1393 = vand.u32 2147483647, %v1392
    %v1395 = vcvt.s32.f32 %v1388
    %v1396 = vmul.f32 %v1395, %v1393
    %v1397 = vxor.u32 %v1396, 2147483648
    %v1398 = vsel %vm1315, %v1397, %v1396
    %v1399 = vsub.s32 4, %v1375
    %v1400 = vsel %vm1315, %v1399, %v1375
    %v1401 = vsel %vm1314, %v264, %v1398
    %v1402 = vsel %vm1314, 0, %v1400
    %v1403 = vcosq.f32.pop %v1401
    %v1404 = vsinq.f32.pop %v1401
    %vm1405 = vweird.f32 %v264
    %v1406 = vadd.s32 %v1402, 3
    %v1407 = vand.u32 %v1406, 3
    %vm1408 = vcmp.lt.s32.totalorder %v1407, 2
    %vm1409 = vcmp.eq.s32.totalorder %v1407, 0
    %v1410 = vxor.u32 %v1404, 2147483648
    %v1411 = vsel %vm1409, %v1403, %v1410
    %vm1412 = vcmp.eq.s32.totalorder %v1407, 2
    %v1413 = vxor.u32 %v1403, 2147483648
    %v1414 = vsel %vm1412, %v1413, %v1404
    %v1415 = vsel %vm1408, %v1411, %v1414
    %v1416 = vsel %vm1405, nan, %v1415
    %v1417 = vand.u32 2147483647, %v269
    %vm1418 = vcmp.le.f32.partialorder %v1417, 0.7853982
    %vm1419 = vcmp.lt.s32.totalorder %v269, 0
    %v1420 = vand.u32 %v269, 2139095040
    %v1421 = vshrl.u32 %v1420, 23
    %v1422 = vsub.s32 %v1421, 127
    %v1423 = vand.u32 2147483647, %v269
    %v1424 = vand.u32 %v1423, 8388607
    %v1425 = vor.u32 %v1424, 8388608
    %v1426 = vsub.s32 0, %v1425
    %v1427 = vadd.s32 %v1422, 1
    %vm1428 = vcmp.gt.s32.totalorder %v1427, 0
    %v1429 = vsel %vm1428, %v1427, 0
    %v1430 = vshrl.u32 %v1429, 5
    %v1431 = vand.u32 %v1429, 31
    %v1432 = vsub.s32 32, %v1431
    %v1433 = vshrl.u32 683565275, %v1432
    %v1434 = vshll.u32 683565275, %v1431
    %v1435 = vshrl.u32 2475754826, %v1432
    %v1436 = vor.u32 %v1434, %v1435
    %v1437 = vshll.u32 2475754826, %v1431
    %v1438 = vshrl.u32 2131351028, %v1432
    %v1439 = vor.u32 %v1437, %v1438
    %v1440 = vshll.u32 2131351028, %v1431
    %v1441 = vshrl.u32 2102212464, %v1432
    %v1442 = vor.u32 %v1440, %v1441
    %v1443 = vshll.u32 2102212464, %v1431
    %v1444 = vshrl.u32 920167782, %v1432
    %v1445 = vor.u32 %v1443, %v1444
    %v1446 = vshll.u32 920167782, %v1431
    %v1447 = vshrl.u32 1326507024, %v1432
    %v1448 = vor.u32 %v1446, %v1447
    %vm1449 = vcmp.lt.s32.totalorder %v1430, 1
    %vm1450 = vcmp.lt.s32.totalorder %v1430, 2
    %vm1451 = vcmp.lt.s32.totalorder %v1430, 3
    %vm1452 = vcmp.lt.s32.totalorder %v1430, 4
    %v1453 = vsel %vm1449, %v1433, %v1436
    %v1454 = vsel %vm1452, %v1442, 2102212464
    %v1455 = vsel %vm1451, %v1439, %v1454
    %v1456 = vsel %vm1450, %v1453, %v1455
    %v1457 = vsel %vm1449, %v1436, %v1439
    %v1458 = vsel %vm1452, %v1445, 920167782
    %v1459 = vsel %vm1451, %v1442, %v1458
    %v1460 = vsel %vm1450, %v1457, %v1459
    %v1461 = vsel %vm1449, %v1439, %v1442
    %v1462 = vsel %vm1452, %v1448, 1326507024
    %v1463 = vsel %vm1451, %v1445, %v1462
    %v1464 = vsel %vm1450, %v1461, %v1463
    %v1465 = vshll.u32 %v1425, 8
    %v1466 = vmul.u32.u64.compose %v1465, %v1464
    %v1467 = vextract.low.u32 %v1466
    %v1468 = vextract.high.u32 %v1466
    %v1469 = vmul.u32.u64.compose %v1465, %v1460
    %v1470 = vextract.low.u32 %v1469
    %v1471 = vextract.high.u32 %v1469
    %v1472 = vmul.u32 %v1465, %v1456
    %v1473 = vadd.s32 %v1468, %v1470
    %vm1474 = vc.u32 %v1468, %v1470
    %v1475 = vadd.s32 %v1471, 1
    %v1476 = vsel %vm1474, %v1475, %v1471
    %v1477 = vadd.s32 %v1472, %v1476
    %v1478 = vadd.s32 %v1477, 536870912
    %v1479 = vshrl.u32 %v1478, 30
    %v1480 = vshll.u32 %v1479, 30
    %v1481 = vsub.s32 %v1477, %v1480
    %vm1482 = vcmp.lt.s32.totalorder %v1481, 0
    %v1483 = vsub.s32 0, %v1481
    %v1484 = vsel %vm1482, %v1483, %v1481
    %v1485 = vclz %v1484
    %v1486 = vsub.s32 %v1485, 2
    %vm1487 = vcmp.gt.s32.totalorder 0, %v1486
    %v1488 = vsel %vm1487, 0, %v1486
    %v1489 = vsub.s32 32, %v1488
    %v1490 = vshll.u32 %v1481, %v1488
    %v1491 = vshrl.u32 %v1473, %v1489
    %v1492 = vor.u32 %v1490, %v1491
    %v1493 = vsub.s32 4294967266, %v1488
    %v1494 = vadd.s32 %v1493, 127
    %v1495 = vshll.u32 %v1494, 23
    %v1496 = vor.u32 4788187, %v1495
    %v1497 = vand.u32 2147483647, %v1496
    %v1499 = vcvt.s32.f32 %v1492
    %v1500 = vmul.f32 %v1499, %v1497
    %v1501 = vxor.u32 %v1500, 2147483648
    %v1502 = vsel %vm1419, %v1501, %v1500
    %v1503 = vsub.s32 4, %v1479
    %v1504 = vsel %vm1419, %v1503, %v1479
    %v1505 = vsel %vm1418, %v269, %v1502
    %v1506 = vsel %vm1418, 0, %v1504
    %v1507 = vcosq.f32.pop %v1505
    %v1508 = vsinq.f32.pop %v1505
    %vm1509 = vweird.f32 %v269
    %v1510 = vadd.s32 %v1506, 3
    %v1511 = vand.u32 %v1510, 3
    %vm1512 = vcmp.lt.s32.totalorder %v1511, 2
    %vm1513 = vcmp.eq.s32.totalorder %v1511, 0
    %v1514 = vxor.u32 %v1508, 2147483648
    %v1515 = vsel %vm1513, %v1507, %v1514
    %vm1516 = vcmp.eq.s32.totalorder %v1511, 2
    %v1517 = vxor.u32 %v1507, 2147483648
    %v1518 = vsel %vm1516, %v1517, %v1508
    %v1519 = vsel %vm1512, %v1515, %v1518
    %v1520 = vsel %vm1509, nan, %v1519
    %v1521 = vand.u32 2147483647, %v274
    %vm1522 = vcmp.le.f32.partialorder %v1521, 0.7853982
    %vm1523 = vcmp.lt.s32.totalorder %v274, 0
    %v1524 = vand.u32 %v274, 2139095040
    %v1525 = vshrl.u32 %v1524, 23
    %v1526 = vsub.s32 %v1525, 127
    %v1527 = vand.u32 2147483647, %v274
    %v1528 = vand.u32 %v1527, 8388607
    %v1529 = vor.u32 %v1528, 8388608
    %v1530 = vsub.s32 0, %v1529
    %v1531 = vadd.s32 %v1526, 1
    %vm1532 = vcmp.gt.s32.totalorder %v1531, 0
    %v1533 = vsel %vm1532, %v1531, 0
    %v1534 = vshrl.u32 %v1533, 5
    %v1535 = vand.u32 %v1533, 31
    %v1536 = vsub.s32 32, %v1535
    %v1537 = vshrl.u32 683565275, %v1536
    %v1538 = vshll.u32 683565275, %v1535
    %v1539 = vshrl.u32 2475754826, %v1536
    %v1540 = vor.u32 %v1538, %v1539
    %v1541 = vshll.u32 2475754826, %v1535
    %v1542 = vshrl.u32 2131351028, %v1536
    %v1543 = vor.u32 %v1541, %v1542
    %v1544 = vshll.u32 2131351028, %v1535
    %v1545 = vshrl.u32 2102212464, %v1536
    %v1546 = vor.u32 %v1544, %v1545
    %v1547 = vshll.u32 2102212464, %v1535
    %v1548 = vshrl.u32 920167782, %v1536
    %v1549 = vor.u32 %v1547, %v1548
    %v1550 = vshll.u32 920167782, %v1535
    %v1551 = vshrl.u32 1326507024, %v1536
    %v1552 = vor.u32 %v1550, %v1551
    %vm1553 = vcmp.lt.s32.totalorder %v1534, 1
    %vm1554 = vcmp.lt.s32.totalorder %v1534, 2
    %vm1555 = vcmp.lt.s32.totalorder %v1534, 3
    %vm1556 = vcmp.lt.s32.totalorder %v1534, 4
    %v1557 = vsel %vm1553, %v1537, %v1540
    %v1558 = vsel %vm1556, %v1546, 2102212464
    %v1559 = vsel %vm1555, %v1543, %v1558
    %v1560 = vsel %vm1554, %v1557, %v1559
    %v1561 = vsel %vm1553, %v1540, %v1543
    %v1562 = vsel %vm1556, %v1549, 920167782
    %v1563 = vsel %vm1555, %v1546, %v1562
    %v1564 = vsel %vm1554, %v1561, %v1563
    %v1565 = vsel %vm1553, %v1543, %v1546
    %v1566 = vsel %vm1556, %v1552, 1326507024
    %v1567 = vsel %vm1555, %v1549, %v1566
    %v1568 = vsel %vm1554, %v1565, %v1567
    %v1569 = vshll.u32 %v1529, 8
    %v1570 = vmul.u32.u64.compose %v1569, %v1568
    %v1571 = vextract.low.u32 %v1570
    %v1572 = vextract.high.u32 %v1570
    %v1573 = vmul.u32.u64.compose %v1569, %v1564
    %v1574 = vextract.low.u32 %v1573
    %v1575 = vextract.high.u32 %v1573
    %v1576 = vmul.u32 %v1569, %v1560
    %v1577 = vadd.s32 %v1572, %v1574
    %vm1578 = vc.u32 %v1572, %v1574
    %v1579 = vadd.s32 %v1575, 1
    %v1580 = vsel %vm1578, %v1579, %v1575
    %v1581 = vadd.s32 %v1576, %v1580
    %v1582 = vadd.s32 %v1581, 536870912
    %v1583 = vshrl.u32 %v1582, 30
    %v1584 = vshll.u32 %v1583, 30
    %v1585 = vsub.s32 %v1581, %v1584
    %vm1586 = vcmp.lt.s32.totalorder %v1585, 0
    %v1587 = vsub.s32 0, %v1585
    %v1588 = vsel %vm1586, %v1587, %v1585
    %v1589 = vclz %v1588
    %v1590 = vsub.s32 %v1589, 2
    %vm1591 = vcmp.gt.s32.totalorder 0, %v1590
    %v1592 = vsel %vm1591, 0, %v1590
    %v1593 = vsub.s32 32, %v1592
    %v1594 = vshll.u32 %v1585, %v1592
    %v1595 = vshrl.u32 %v1577, %v1593
    %v1596 = vor.u32 %v1594, %v1595
    %v1597 = vsub.s32 4294967266, %v1592
    %v1598 = vadd.s32 %v1597, 127
    %v1599 = vshll.u32 %v1598, 23
    %v1600 = vor.u32 4788187, %v1599
    %v1601 = vand.u32 2147483647, %v1600
    %v1603 = vcvt.s32.f32 %v1596
    %v1604 = vmul.f32 %v1603, %v1601
    %v1605 = vxor.u32 %v1604, 2147483648
    %v1606 = vsel %vm1523, %v1605, %v1604
    %v1607 = vsub.s32 4, %v1583
    %v1608 = vsel %vm1523, %v1607, %v1583
    %v1609 = vsel %vm1522, %v274, %v1606
    %v1610 = vsel %vm1522, 0, %v1608
    %v1611 = vcosq.f32.pop %v1609
    %v1612 = vsinq.f32.pop %v1609
    %vm1613 = vweird.f32 %v274
    %v1614 = vadd.s32 %v1610, 3
    %v1615 = vand.u32 %v1614, 3
    %vm1616 = vcmp.lt.s32.totalorder %v1615, 2
    %vm1617 = vcmp.eq.s32.totalorder %v1615, 0
    %v1618 = vxor.u32 %v1612, 2147483648
    %v1619 = vsel %vm1617, %v1611, %v1618
    %vm1620 = vcmp.eq.s32.totalorder %v1615, 2
    %v1621 = vxor.u32 %v1611, 2147483648
    %v1622 = vsel %vm1620, %v1621, %v1612
    %v1623 = vsel %vm1616, %v1619, %v1622
    %v1624 = vsel %vm1613, nan, %v1623
    %v1625 = vand.u32 2147483647, %v279
    %vm1626 = vcmp.le.f32.partialorder %v1625, 0.7853982
    %vm1627 = vcmp.lt.s32.totalorder %v279, 0
    %v1628 = vand.u32 %v279, 2139095040
    %v1629 = vshrl.u32 %v1628, 23
    %v1630 = vsub.s32 %v1629, 127
    %v1631 = vand.u32 2147483647, %v279
    %v1632 = vand.u32 %v1631, 8388607
    %v1633 = vor.u32 %v1632, 8388608
    %v1634 = vsub.s32 0, %v1633
    %v1635 = vadd.s32 %v1630, 1
    %vm1636 = vcmp.gt.s32.totalorder %v1635, 0
    %v1637 = vsel %vm1636, %v1635, 0
    %v1638 = vshrl.u32 %v1637, 5
    %v1639 = vand.u32 %v1637, 31
    %v1640 = vsub.s32 32, %v1639
    %v1641 = vshrl.u32 683565275, %v1640
    %v1642 = vshll.u32 683565275, %v1639
    %v1643 = vshrl.u32 2475754826, %v1640
    %v1644 = vor.u32 %v1642, %v1643
    %v1645 = vshll.u32 2475754826, %v1639
    %v1646 = vshrl.u32 2131351028, %v1640
    %v1647 = vor.u32 %v1645, %v1646
    %v1648 = vshll.u32 2131351028, %v1639
    %v1649 = vshrl.u32 2102212464, %v1640
    %v1650 = vor.u32 %v1648, %v1649
    %v1651 = vshll.u32 2102212464, %v1639
    %v1652 = vshrl.u32 920167782, %v1640
    %v1653 = vor.u32 %v1651, %v1652
    %v1654 = vshll.u32 920167782, %v1639
    %v1655 = vshrl.u32 1326507024, %v1640
    %v1656 = vor.u32 %v1654, %v1655
    %vm1657 = vcmp.lt.s32.totalorder %v1638, 1
    %vm1658 = vcmp.lt.s32.totalorder %v1638, 2
    %vm1659 = vcmp.lt.s32.totalorder %v1638, 3
    %vm1660 = vcmp.lt.s32.totalorder %v1638, 4
    %v1661 = vsel %vm1657, %v1641, %v1644
    %v1662 = vsel %vm1660, %v1650, 2102212464
    %v1663 = vsel %vm1659, %v1647, %v1662
    %v1664 = vsel %vm1658, %v1661, %v1663
    %v1665 = vsel %vm1657, %v1644, %v1647
    %v1666 = vsel %vm1660, %v1653, 920167782
    %v1667 = vsel %vm1659, %v1650, %v1666
    %v1668 = vsel %vm1658, %v1665, %v1667
    %v1669 = vsel %vm1657, %v1647, %v1650
    %v1670 = vsel %vm1660, %v1656, 1326507024
    %v1671 = vsel %vm1659, %v1653, %v1670
    %v1672 = vsel %vm1658, %v1669, %v1671
    %v1673 = vshll.u32 %v1633, 8
    %v1674 = vmul.u32.u64.compose %v1673, %v1672
    %v1675 = vextract.low.u32 %v1674
    %v1676 = vextract.high.u32 %v1674
    %v1677 = vmul.u32.u64.compose %v1673, %v1668
    %v1678 = vextract.low.u32 %v1677
    %v1679 = vextract.high.u32 %v1677
    %v1680 = vmul.u32 %v1673, %v1664
    %v1681 = vadd.s32 %v1676, %v1678
    %vm1682 = vc.u32 %v1676, %v1678
    %v1683 = vadd.s32 %v1679, 1
    %v1684 = vsel %vm1682, %v1683, %v1679
    %v1685 = vadd.s32 %v1680, %v1684
    %v1686 = vadd.s32 %v1685, 536870912
    %v1687 = vshrl.u32 %v1686, 30
    %v1688 = vshll.u32 %v1687, 30
    %v1689 = vsub.s32 %v1685, %v1688
    %vm1690 = vcmp.lt.s32.totalorder %v1689, 0
    %v1691 = vsub.s32 0, %v1689
    %v1692 = vsel %vm1690, %v1691, %v1689
    %v1693 = vclz %v1692
    %v1694 = vsub.s32 %v1693, 2
    %vm1695 = vcmp.gt.s32.totalorder 0, %v1694
    %v1696 = vsel %vm1695, 0, %v1694
    %v1697 = vsub.s32 32, %v1696
    %v1698 = vshll.u32 %v1689, %v1696
    %v1699 = vshrl.u32 %v1681, %v1697
    %v1700 = vor.u32 %v1698, %v1699
    %v1701 = vsub.s32 4294967266, %v1696
    %v1702 = vadd.s32 %v1701, 127
    %v1703 = vshll.u32 %v1702, 23
    %v1704 = vor.u32 4788187, %v1703
    %v1705 = vand.u32 2147483647, %v1704
    %v1707 = vcvt.s32.f32 %v1700
    %v1708 = vmul.f32 %v1707, %v1705
    %v1709 = vxor.u32 %v1708, 2147483648
    %v1710 = vsel %vm1627, %v1709, %v1708
    %v1711 = vsub.s32 4, %v1687
    %v1712 = vsel %vm1627, %v1711, %v1687
    %v1713 = vsel %vm1626, %v279, %v1710
    %v1714 = vsel %vm1626, 0, %v1712
    %v1715 = vcosq.f32.pop %v1713
    %v1716 = vsinq.f32.pop %v1713
    %vm1717 = vweird.f32 %v279
    %v1718 = vadd.s32 %v1714, 3
    %v1719 = vand.u32 %v1718, 3
    %vm1720 = vcmp.lt.s32.totalorder %v1719, 2
    %vm1721 = vcmp.eq.s32.totalorder %v1719, 0
    %v1722 = vxor.u32 %v1716, 2147483648
    %v1723 = vsel %vm1721, %v1715, %v1722
    %vm1724 = vcmp.eq.s32.totalorder %v1719, 2
    %v1725 = vxor.u32 %v1715, 2147483648
    %v1726 = vsel %vm1724, %v1725, %v1716
    %v1727 = vsel %vm1720, %v1723, %v1726
    %v1728 = vsel %vm1717, nan, %v1727
    %v1729 = vand.u32 2147483647, %v284
    %vm1730 = vcmp.le.f32.partialorder %v1729, 0.7853982
    %vm1731 = vcmp.lt.s32.totalorder %v284, 0
    %v1732 = vand.u32 %v284, 2139095040
    %v1733 = vshrl.u32 %v1732, 23
    %v1734 = vsub.s32 %v1733, 127
    %v1735 = vand.u32 2147483647, %v284
    %v1736 = vand.u32 %v1735, 8388607
    %v1737 = vor.u32 %v1736, 8388608
    %v1738 = vsub.s32 0, %v1737
    %v1739 = vadd.s32 %v1734, 1
    %vm1740 = vcmp.gt.s32.totalorder %v1739, 0
    %v1741 = vsel %vm1740, %v1739, 0
    %v1742 = vshrl.u32 %v1741, 5
    %v1743 = vand.u32 %v1741, 31
    %v1744 = vsub.s32 32, %v1743
    %v1745 = vshrl.u32 683565275, %v1744
    %v1746 = vshll.u32 683565275, %v1743
    %v1747 = vshrl.u32 2475754826, %v1744
    %v1748 = vor.u32 %v1746, %v1747
    %v1749 = vshll.u32 2475754826, %v1743
    %v1750 = vshrl.u32 2131351028, %v1744
    %v1751 = vor.u32 %v1749, %v1750
    %v1752 = vshll.u32 2131351028, %v1743
    %v1753 = vshrl.u32 2102212464, %v1744
    %v1754 = vor.u32 %v1752, %v1753
    %v1755 = vshll.u32 2102212464, %v1743
    %v1756 = vshrl.u32 920167782, %v1744
    %v1757 = vor.u32 %v1755, %v1756
    %v1758 = vshll.u32 920167782, %v1743
    %v1759 = vshrl.u32 1326507024, %v1744
    %v1760 = vor.u32 %v1758, %v1759
    %vm1761 = vcmp.lt.s32.totalorder %v1742, 1
    %vm1762 = vcmp.lt.s32.totalorder %v1742, 2
    %vm1763 = vcmp.lt.s32.totalorder %v1742, 3
    %vm1764 = vcmp.lt.s32.totalorder %v1742, 4
    %v1765 = vsel %vm1761, %v1745, %v1748
    %v1766 = vsel %vm1764, %v1754, 2102212464
    %v1767 = vsel %vm1763, %v1751, %v1766
    %v1768 = vsel %vm1762, %v1765, %v1767
    %v1769 = vsel %vm1761, %v1748, %v1751
    %v1770 = vsel %vm1764, %v1757, 920167782
    %v1771 = vsel %vm1763, %v1754, %v1770
    %v1772 = vsel %vm1762, %v1769, %v1771
    %v1773 = vsel %vm1761, %v1751, %v1754
    %v1774 = vsel %vm1764, %v1760, 1326507024
    %v1775 = vsel %vm1763, %v1757, %v1774
    %v1776 = vsel %vm1762, %v1773, %v1775
    %v1777 = vshll.u32 %v1737, 8
    %v1778 = vmul.u32.u64.compose %v1777, %v1776
    %v1779 = vextract.low.u32 %v1778
    %v1780 = vextract.high.u32 %v1778
    %v1781 = vmul.u32.u64.compose %v1777, %v1772
    %v1782 = vextract.low.u32 %v1781
    %v1783 = vextract.high.u32 %v1781
    %v1784 = vmul.u32 %v1777, %v1768
    %v1785 = vadd.s32 %v1780, %v1782
    %vm1786 = vc.u32 %v1780, %v1782
    %v1787 = vadd.s32 %v1783, 1
    %v1788 = vsel %vm1786, %v1787, %v1783
    %v1789 = vadd.s32 %v1784, %v1788
    %v1790 = vadd.s32 %v1789, 536870912
    %v1791 = vshrl.u32 %v1790, 30
    %v1792 = vshll.u32 %v1791, 30
    %v1793 = vsub.s32 %v1789, %v1792
    %vm1794 = vcmp.lt.s32.totalorder %v1793, 0
    %v1795 = vsub.s32 0, %v1793
    %v1796 = vsel %vm1794, %v1795, %v1793
    %v1797 = vclz %v1796
    %v1798 = vsub.s32 %v1797, 2
    %vm1799 = vcmp.gt.s32.totalorder 0, %v1798
    %v1800 = vsel %vm1799, 0, %v1798
    %v1801 = vsub.s32 32, %v1800
    %v1802 = vshll.u32 %v1793, %v1800
    %v1803 = vshrl.u32 %v1785, %v1801
    %v1804 = vor.u32 %v1802, %v1803
    %v1805 = vsub.s32 4294967266, %v1800
    %v1806 = vadd.s32 %v1805, 127
    %v1807 = vshll.u32 %v1806, 23
    %v1808 = vor.u32 4788187, %v1807
    %v1809 = vand.u32 2147483647, %v1808
    %v1811 = vcvt.s32.f32 %v1804
    %v1812 = vmul.f32 %v1811, %v1809
    %v1813 = vxor.u32 %v1812, 2147483648
    %v1814 = vsel %vm1731, %v1813, %v1812
    %v1815 = vsub.s32 4, %v1791
    %v1816 = vsel %vm1731, %v1815, %v1791
    %v1817 = vsel %vm1730, %v284, %v1814
    %v1818 = vsel %vm1730, 0, %v1816
    %v1819 = vcosq.f32.pop %v1817
    %v1820 = vsinq.f32.pop %v1817
    %vm1821 = vweird.f32 %v284
    %v1822 = vadd.s32 %v1818, 3
    %v1823 = vand.u32 %v1822, 3
    %vm1824 = vcmp.lt.s32.totalorder %v1823, 2
    %vm1825 = vcmp.eq.s32.totalorder %v1823, 0
    %v1826 = vxor.u32 %v1820, 2147483648
    %v1827 = vsel %vm1825, %v1819, %v1826
    %vm1828 = vcmp.eq.s32.totalorder %v1823, 2
    %v1829 = vxor.u32 %v1819, 2147483648
    %v1830 = vsel %vm1828, %v1829, %v1820
    %v1831 = vsel %vm1824, %v1827, %v1830
    %v1832 = vsel %vm1821, nan, %v1831
    %v1833 = vand.u32 2147483647, %v289
    %vm1834 = vcmp.le.f32.partialorder %v1833, 0.7853982
    %vm1835 = vcmp.lt.s32.totalorder %v289, 0
    %v1836 = vand.u32 %v289, 2139095040
    %v1837 = vshrl.u32 %v1836, 23
    %v1838 = vsub.s32 %v1837, 127
    %v1839 = vand.u32 2147483647, %v289
    %v1840 = vand.u32 %v1839, 8388607
    %v1841 = vor.u32 %v1840, 8388608
    %v1842 = vsub.s32 0, %v1841
    %v1843 = vadd.s32 %v1838, 1
    %vm1844 = vcmp.gt.s32.totalorder %v1843, 0
    %v1845 = vsel %vm1844, %v1843, 0
    %v1846 = vshrl.u32 %v1845, 5
    %v1847 = vand.u32 %v1845, 31
    %v1848 = vsub.s32 32, %v1847
    %v1849 = vshrl.u32 683565275, %v1848
    %v1850 = vshll.u32 683565275, %v1847
    %v1851 = vshrl.u32 2475754826, %v1848
    %v1852 = vor.u32 %v1850, %v1851
    %v1853 = vshll.u32 2475754826, %v1847
    %v1854 = vshrl.u32 2131351028, %v1848
    %v1855 = vor.u32 %v1853, %v1854
    %v1856 = vshll.u32 2131351028, %v1847
    %v1857 = vshrl.u32 2102212464, %v1848
    %v1858 = vor.u32 %v1856, %v1857
    %v1859 = vshll.u32 2102212464, %v1847
    %v1860 = vshrl.u32 920167782, %v1848
    %v1861 = vor.u32 %v1859, %v1860
    %v1862 = vshll.u32 920167782, %v1847
    %v1863 = vshrl.u32 1326507024, %v1848
    %v1864 = vor.u32 %v1862, %v1863
    %vm1865 = vcmp.lt.s32.totalorder %v1846, 1
    %vm1866 = vcmp.lt.s32.totalorder %v1846, 2
    %vm1867 = vcmp.lt.s32.totalorder %v1846, 3
    %vm1868 = vcmp.lt.s32.totalorder %v1846, 4
    %v1869 = vsel %vm1865, %v1849, %v1852
    %v1870 = vsel %vm1868, %v1858, 2102212464
    %v1871 = vsel %vm1867, %v1855, %v1870
    %v1872 = vsel %vm1866, %v1869, %v1871
    %v1873 = vsel %vm1865, %v1852, %v1855
    %v1874 = vsel %vm1868, %v1861, 920167782
    %v1875 = vsel %vm1867, %v1858, %v1874
    %v1876 = vsel %vm1866, %v1873, %v1875
    %v1877 = vsel %vm1865, %v1855, %v1858
    %v1878 = vsel %vm1868, %v1864, 1326507024
    %v1879 = vsel %vm1867, %v1861, %v1878
    %v1880 = vsel %vm1866, %v1877, %v1879
    %v1881 = vshll.u32 %v1841, 8
    %v1882 = vmul.u32.u64.compose %v1881, %v1880
    %v1883 = vextract.low.u32 %v1882
    %v1884 = vextract.high.u32 %v1882
    %v1885 = vmul.u32.u64.compose %v1881, %v1876
    %v1886 = vextract.low.u32 %v1885
    %v1887 = vextract.high.u32 %v1885
    %v1888 = vmul.u32 %v1881, %v1872
    %v1889 = vadd.s32 %v1884, %v1886
    %vm1890 = vc.u32 %v1884, %v1886
    %v1891 = vadd.s32 %v1887, 1
    %v1892 = vsel %vm1890, %v1891, %v1887
    %v1893 = vadd.s32 %v1888, %v1892
    %v1894 = vadd.s32 %v1893, 536870912
    %v1895 = vshrl.u32 %v1894, 30
    %v1896 = vshll.u32 %v1895, 30
    %v1897 = vsub.s32 %v1893, %v1896
    %vm1898 = vcmp.lt.s32.totalorder %v1897, 0
    %v1899 = vsub.s32 0, %v1897
    %v1900 = vsel %vm1898, %v1899, %v1897
    %v1901 = vclz %v1900
    %v1902 = vsub.s32 %v1901, 2
    %vm1903 = vcmp.gt.s32.totalorder 0, %v1902
    %v1904 = vsel %vm1903, 0, %v1902
    %v1905 = vsub.s32 32, %v1904
    %v1906 = vshll.u32 %v1897, %v1904
    %v1907 = vshrl.u32 %v1889, %v1905
    %v1908 = vor.u32 %v1906, %v1907
    %v1909 = vsub.s32 4294967266, %v1904
    %v1910 = vadd.s32 %v1909, 127
    %v1911 = vshll.u32 %v1910, 23
    %v1912 = vor.u32 4788187, %v1911
    %v1913 = vand.u32 2147483647, %v1912
    %v1915 = vcvt.s32.f32 %v1908
    %v1916 = vmul.f32 %v1915, %v1913
    %v1917 = vxor.u32 %v1916, 2147483648
    %v1918 = vsel %vm1835, %v1917, %v1916
    %v1919 = vsub.s32 4, %v1895
    %v1920 = vsel %vm1835, %v1919, %v1895
    %v1921 = vsel %vm1834, %v289, %v1918
    %v1922 = vsel %vm1834, 0, %v1920
    %v1923 = vcosq.f32.pop %v1921
    %v1924 = vsinq.f32.pop %v1921
    %vm1925 = vweird.f32 %v289
    %v1926 = vadd.s32 %v1922, 3
    %v1927 = vand.u32 %v1926, 3
    %vm1928 = vcmp.lt.s32.totalorder %v1927, 2
    %vm1929 = vcmp.eq.s32.totalorder %v1927, 0
    %v1930 = vxor.u32 %v1924, 2147483648
    %v1931 = vsel %vm1929, %v1923, %v1930
    %vm1932 = vcmp.eq.s32.totalorder %v1927, 2
    %v1933 = vxor.u32 %v1923, 2147483648
    %v1934 = vsel %vm1932, %v1933, %v1924
    %v1935 = vsel %vm1928, %v1931, %v1934
    %v1936 = vsel %vm1925, nan, %v1935
    %v1937 = vand.u32 2147483647, %v294
    %vm1938 = vcmp.le.f32.partialorder %v1937, 0.7853982
    %vm1939 = vcmp.lt.s32.totalorder %v294, 0
    %v1940 = vand.u32 %v294, 2139095040
    %v1941 = vshrl.u32 %v1940, 23
    %v1942 = vsub.s32 %v1941, 127
    %v1943 = vand.u32 2147483647, %v294
    %v1944 = vand.u32 %v1943, 8388607
    %v1945 = vor.u32 %v1944, 8388608
    %v1946 = vsub.s32 0, %v1945
    %v1947 = vadd.s32 %v1942, 1
    %vm1948 = vcmp.gt.s32.totalorder %v1947, 0
    %v1949 = vsel %vm1948, %v1947, 0
    %v1950 = vshrl.u32 %v1949, 5
    %v1951 = vand.u32 %v1949, 31
    %v1952 = vsub.s32 32, %v1951
    %v1953 = vshrl.u32 683565275, %v1952
    %v1954 = vshll.u32 683565275, %v1951
    %v1955 = vshrl.u32 2475754826, %v1952
    %v1956 = vor.u32 %v1954, %v1955
    %v1957 = vshll.u32 2475754826, %v1951
    %v1958 = vshrl.u32 2131351028, %v1952
    %v1959 = vor.u32 %v1957, %v1958
    %v1960 = vshll.u32 2131351028, %v1951
    %v1961 = vshrl.u32 2102212464, %v1952
    %v1962 = vor.u32 %v1960, %v1961
    %v1963 = vshll.u32 2102212464, %v1951
    %v1964 = vshrl.u32 920167782, %v1952
    %v1965 = vor.u32 %v1963, %v1964
    %v1966 = vshll.u32 920167782, %v1951
    %v1967 = vshrl.u32 1326507024, %v1952
    %v1968 = vor.u32 %v1966, %v1967
    %vm1969 = vcmp.lt.s32.totalorder %v1950, 1
    %vm1970 = vcmp.lt.s32.totalorder %v1950, 2
    %vm1971 = vcmp.lt.s32.totalorder %v1950, 3
    %vm1972 = vcmp.lt.s32.totalorder %v1950, 4
    %v1973 = vsel %vm1969, %v1953, %v1956
    %v1974 = vsel %vm1972, %v1962, 2102212464
    %v1975 = vsel %vm1971, %v1959, %v1974
    %v1976 = vsel %vm1970, %v1973, %v1975
    %v1977 = vsel %vm1969, %v1956, %v1959
    %v1978 = vsel %vm1972, %v1965, 920167782
    %v1979 = vsel %vm1971, %v1962, %v1978
    %v1980 = vsel %vm1970, %v1977, %v1979
    %v1981 = vsel %vm1969, %v1959, %v1962
    %v1982 = vsel %vm1972, %v1968, 1326507024
    %v1983 = vsel %vm1971, %v1965, %v1982
    %v1984 = vsel %vm1970, %v1981, %v1983
    %v1985 = vshll.u32 %v1945, 8
    %v1986 = vmul.u32.u64.compose %v1985, %v1984
    %v1987 = vextract.low.u32 %v1986
    %v1988 = vextract.high.u32 %v1986
    %v1989 = vmul.u32.u64.compose %v1985, %v1980
    %v1990 = vextract.low.u32 %v1989
    %v1991 = vextract.high.u32 %v1989
    %v1992 = vmul.u32 %v1985, %v1976
    %v1993 = vadd.s32 %v1988, %v1990
    %vm1994 = vc.u32 %v1988, %v1990
    %v1995 = vadd.s32 %v1991, 1
    %v1996 = vsel %vm1994, %v1995, %v1991
    %v1997 = vadd.s32 %v1992, %v1996
    %v1998 = vadd.s32 %v1997, 536870912
    %v1999 = vshrl.u32 %v1998, 30
    %v2000 = vshll.u32 %v1999, 30
    %v2001 = vsub.s32 %v1997, %v2000
    %vm2002 = vcmp.lt.s32.totalorder %v2001, 0
    %v2003 = vsub.s32 0, %v2001
    %v2004 = vsel %vm2002, %v2003, %v2001
    %v2005 = vclz %v2004
    %v2006 = vsub.s32 %v2005, 2
    %vm2007 = vcmp.gt.s32.totalorder 0, %v2006
    %v2008 = vsel %vm2007, 0, %v2006
    %v2009 = vsub.s32 32, %v2008
    %v2010 = vshll.u32 %v2001, %v2008
    %v2011 = vshrl.u32 %v1993, %v2009
    %v2012 = vor.u32 %v2010, %v2011
    %v2013 = vsub.s32 4294967266, %v2008
    %v2014 = vadd.s32 %v2013, 127
    %v2015 = vshll.u32 %v2014, 23
    %v2016 = vor.u32 4788187, %v2015
    %v2017 = vand.u32 2147483647, %v2016
    %v2019 = vcvt.s32.f32 %v2012
    %v2020 = vmul.f32 %v2019, %v2017
    %v2021 = vxor.u32 %v2020, 2147483648
    %v2022 = vsel %vm1939, %v2021, %v2020
    %v2023 = vsub.s32 4, %v1999
    %v2024 = vsel %vm1939, %v2023, %v1999
    %v2025 = vsel %vm1938, %v294, %v2022
    %v2026 = vsel %vm1938, 0, %v2024
    %v2027 = vcosq.f32.pop %v2025
    %v2028 = vsinq.f32.pop %v2025
    %vm2029 = vweird.f32 %v294
    %v2030 = vadd.s32 %v2026, 3
    %v2031 = vand.u32 %v2030, 3
    %vm2032 = vcmp.lt.s32.totalorder %v2031, 2
    %vm2033 = vcmp.eq.s32.totalorder %v2031, 0
    %v2034 = vxor.u32 %v2028, 2147483648
    %v2035 = vsel %vm2033, %v2027, %v2034
    %vm2036 = vcmp.eq.s32.totalorder %v2031, 2
    %v2037 = vxor.u32 %v2027, 2147483648
    %v2038 = vsel %vm2036, %v2037, %v2028
    %v2039 = vsel %vm2032, %v2035, %v2038
    %v2040 = vsel %vm2029, nan, %v2039
    %v2041 = vand.u32 2147483647, %v299
    %vm2042 = vcmp.le.f32.partialorder %v2041, 0.7853982
    %vm2043 = vcmp.lt.s32.totalorder %v299, 0
    %v2044 = vand.u32 %v299, 2139095040
    %v2045 = vshrl.u32 %v2044, 23
    %v2046 = vsub.s32 %v2045, 127
    %v2047 = vand.u32 2147483647, %v299
    %v2048 = vand.u32 %v2047, 8388607
    %v2049 = vor.u32 %v2048, 8388608
    %v2050 = vsub.s32 0, %v2049
    %v2051 = vadd.s32 %v2046, 1
    %vm2052 = vcmp.gt.s32.totalorder %v2051, 0
    %v2053 = vsel %vm2052, %v2051, 0
    %v2054 = vshrl.u32 %v2053, 5
    %v2055 = vand.u32 %v2053, 31
    %v2056 = vsub.s32 32, %v2055
    %v2057 = vshrl.u32 683565275, %v2056
    %v2058 = vshll.u32 683565275, %v2055
    %v2059 = vshrl.u32 2475754826, %v2056
    %v2060 = vor.u32 %v2058, %v2059
    %v2061 = vshll.u32 2475754826, %v2055
    %v2062 = vshrl.u32 2131351028, %v2056
    %v2063 = vor.u32 %v2061, %v2062
    %v2064 = vshll.u32 2131351028, %v2055
    %v2065 = vshrl.u32 2102212464, %v2056
    %v2066 = vor.u32 %v2064, %v2065
    %v2067 = vshll.u32 2102212464, %v2055
    %v2068 = vshrl.u32 920167782, %v2056
    %v2069 = vor.u32 %v2067, %v2068
    %v2070 = vshll.u32 920167782, %v2055
    %v2071 = vshrl.u32 1326507024, %v2056
    %v2072 = vor.u32 %v2070, %v2071
    %vm2073 = vcmp.lt.s32.totalorder %v2054, 1
    %vm2074 = vcmp.lt.s32.totalorder %v2054, 2
    %vm2075 = vcmp.lt.s32.totalorder %v2054, 3
    %vm2076 = vcmp.lt.s32.totalorder %v2054, 4
    %v2077 = vsel %vm2073, %v2057, %v2060
    %v2078 = vsel %vm2076, %v2066, 2102212464
    %v2079 = vsel %vm2075, %v2063, %v2078
    %v2080 = vsel %vm2074, %v2077, %v2079
    %v2081 = vsel %vm2073, %v2060, %v2063
    %v2082 = vsel %vm2076, %v2069, 920167782
    %v2083 = vsel %vm2075, %v2066, %v2082
    %v2084 = vsel %vm2074, %v2081, %v2083
    %v2085 = vsel %vm2073, %v2063, %v2066
    %v2086 = vsel %vm2076, %v2072, 1326507024
    %v2087 = vsel %vm2075, %v2069, %v2086
    %v2088 = vsel %vm2074, %v2085, %v2087
    %v2089 = vshll.u32 %v2049, 8
    %v2090 = vmul.u32.u64.compose %v2089, %v2088
    %v2091 = vextract.low.u32 %v2090
    %v2092 = vextract.high.u32 %v2090
    %v2093 = vmul.u32.u64.compose %v2089, %v2084
    %v2094 = vextract.low.u32 %v2093
    %v2095 = vextract.high.u32 %v2093
    %v2096 = vmul.u32 %v2089, %v2080
    %v2097 = vadd.s32 %v2092, %v2094
    %vm2098 = vc.u32 %v2092, %v2094
    %v2099 = vadd.s32 %v2095, 1
    %v2100 = vsel %vm2098, %v2099, %v2095
    %v2101 = vadd.s32 %v2096, %v2100
    %v2102 = vadd.s32 %v2101, 536870912
    %v2103 = vshrl.u32 %v2102, 30
    %v2104 = vshll.u32 %v2103, 30
    %v2105 = vsub.s32 %v2101, %v2104
    %vm2106 = vcmp.lt.s32.totalorder %v2105, 0
    %v2107 = vsub.s32 0, %v2105
    %v2108 = vsel %vm2106, %v2107, %v2105
    %v2109 = vclz %v2108
    %v2110 = vsub.s32 %v2109, 2
    %vm2111 = vcmp.gt.s32.totalorder 0, %v2110
    %v2112 = vsel %vm2111, 0, %v2110
    %v2113 = vsub.s32 32, %v2112
    %v2114 = vshll.u32 %v2105, %v2112
    %v2115 = vshrl.u32 %v2097, %v2113
    %v2116 = vor.u32 %v2114, %v2115
    %v2117 = vsub.s32 4294967266, %v2112
    %v2118 = vadd.s32 %v2117, 127
    %v2119 = vshll.u32 %v2118, 23
    %v2120 = vor.u32 4788187, %v2119
    %v2121 = vand.u32 2147483647, %v2120
    %v2123 = vcvt.s32.f32 %v2116
    %v2124 = vmul.f32 %v2123, %v2121
    %v2125 = vxor.u32 %v2124, 2147483648
    %v2126 = vsel %vm2043, %v2125, %v2124
    %v2127 = vsub.s32 4, %v2103
    %v2128 = vsel %vm2043, %v2127, %v2103
    %v2129 = vsel %vm2042, %v299, %v2126
    %v2130 = vsel %vm2042, 0, %v2128
    %v2131 = vcosq.f32.pop %v2129
    %v2132 = vsinq.f32.pop %v2129
    %vm2133 = vweird.f32 %v299
    %v2134 = vadd.s32 %v2130, 3
    %v2135 = vand.u32 %v2134, 3
    %vm2136 = vcmp.lt.s32.totalorder %v2135, 2
    %vm2137 = vcmp.eq.s32.totalorder %v2135, 0
    %v2138 = vxor.u32 %v2132, 2147483648
    %v2139 = vsel %vm2137, %v2131, %v2138
    %vm2140 = vcmp.eq.s32.totalorder %v2135, 2
    %v2141 = vxor.u32 %v2131, 2147483648
    %v2142 = vsel %vm2140, %v2141, %v2132
    %v2143 = vsel %vm2136, %v2139, %v2142
    %v2144 = vsel %vm2133, nan, %v2143
    %v2145 = vand.u32 2147483647, %v304
    %vm2146 = vcmp.le.f32.partialorder %v2145, 0.7853982
    %vm2147 = vcmp.lt.s32.totalorder %v304, 0
    %v2148 = vand.u32 %v304, 2139095040
    %v2149 = vshrl.u32 %v2148, 23
    %v2150 = vsub.s32 %v2149, 127
    %v2151 = vand.u32 2147483647, %v304
    %v2152 = vand.u32 %v2151, 8388607
    %v2153 = vor.u32 %v2152, 8388608
    %v2154 = vsub.s32 0, %v2153
    %v2155 = vadd.s32 %v2150, 1
    %vm2156 = vcmp.gt.s32.totalorder %v2155, 0
    %v2157 = vsel %vm2156, %v2155, 0
    %v2158 = vshrl.u32 %v2157, 5
    %v2159 = vand.u32 %v2157, 31
    %v2160 = vsub.s32 32, %v2159
    %v2161 = vshrl.u32 683565275, %v2160
    %v2162 = vshll.u32 683565275, %v2159
    %v2163 = vshrl.u32 2475754826, %v2160
    %v2164 = vor.u32 %v2162, %v2163
    %v2165 = vshll.u32 2475754826, %v2159
    %v2166 = vshrl.u32 2131351028, %v2160
    %v2167 = vor.u32 %v2165, %v2166
    %v2168 = vshll.u32 2131351028, %v2159
    %v2169 = vshrl.u32 2102212464, %v2160
    %v2170 = vor.u32 %v2168, %v2169
    %v2171 = vshll.u32 2102212464, %v2159
    %v2172 = vshrl.u32 920167782, %v2160
    %v2173 = vor.u32 %v2171, %v2172
    %v2174 = vshll.u32 920167782, %v2159
    %v2175 = vshrl.u32 1326507024, %v2160
    %v2176 = vor.u32 %v2174, %v2175
    %vm2177 = vcmp.lt.s32.totalorder %v2158, 1
    %vm2178 = vcmp.lt.s32.totalorder %v2158, 2
    %vm2179 = vcmp.lt.s32.totalorder %v2158, 3
    %vm2180 = vcmp.lt.s32.totalorder %v2158, 4
    %v2181 = vsel %vm2177, %v2161, %v2164
    %v2182 = vsel %vm2180, %v2170, 2102212464
    %v2183 = vsel %vm2179, %v2167, %v2182
    %v2184 = vsel %vm2178, %v2181, %v2183
    %v2185 = vsel %vm2177, %v2164, %v2167
    %v2186 = vsel %vm2180, %v2173, 920167782
    %v2187 = vsel %vm2179, %v2170, %v2186
    %v2188 = vsel %vm2178, %v2185, %v2187
    %v2189 = vsel %vm2177, %v2167, %v2170
    %v2190 = vsel %vm2180, %v2176, 1326507024
    %v2191 = vsel %vm2179, %v2173, %v2190
    %v2192 = vsel %vm2178, %v2189, %v2191
    %v2193 = vshll.u32 %v2153, 8
    %v2194 = vmul.u32.u64.compose %v2193, %v2192
    %v2195 = vextract.low.u32 %v2194
    %v2196 = vextract.high.u32 %v2194
    %v2197 = vmul.u32.u64.compose %v2193, %v2188
    %v2198 = vextract.low.u32 %v2197
    %v2199 = vextract.high.u32 %v2197
    %v2200 = vmul.u32 %v2193, %v2184
    %v2201 = vadd.s32 %v2196, %v2198
    %vm2202 = vc.u32 %v2196, %v2198
    %v2203 = vadd.s32 %v2199, 1
    %v2204 = vsel %vm2202, %v2203, %v2199
    %v2205 = vadd.s32 %v2200, %v2204
    %v2206 = vadd.s32 %v2205, 536870912
    %v2207 = vshrl.u32 %v2206, 30
    %v2208 = vshll.u32 %v2207, 30
    %v2209 = vsub.s32 %v2205, %v2208
    %vm2210 = vcmp.lt.s32.totalorder %v2209, 0
    %v2211 = vsub.s32 0, %v2209
    %v2212 = vsel %vm2210, %v2211, %v2209
    %v2213 = vclz %v2212
    %v2214 = vsub.s32 %v2213, 2
    %vm2215 = vcmp.gt.s32.totalorder 0, %v2214
    %v2216 = vsel %vm2215, 0, %v2214
    %v2217 = vsub.s32 32, %v2216
    %v2218 = vshll.u32 %v2209, %v2216
    %v2219 = vshrl.u32 %v2201, %v2217
    %v2220 = vor.u32 %v2218, %v2219
    %v2221 = vsub.s32 4294967266, %v2216
    %v2222 = vadd.s32 %v2221, 127
    %v2223 = vshll.u32 %v2222, 23
    %v2224 = vor.u32 4788187, %v2223
    %v2225 = vand.u32 2147483647, %v2224
    %v2227 = vcvt.s32.f32 %v2220
    %v2228 = vmul.f32 %v2227, %v2225
    %v2229 = vxor.u32 %v2228, 2147483648
    %v2230 = vsel %vm2147, %v2229, %v2228
    %v2231 = vsub.s32 4, %v2207
    %v2232 = vsel %vm2147, %v2231, %v2207
    %v2233 = vsel %vm2146, %v304, %v2230
    %v2234 = vsel %vm2146, 0, %v2232
    %v2235 = vcosq.f32.pop %v2233
    %v2236 = vsinq.f32.pop %v2233
    %vm2237 = vweird.f32 %v304
    %v2238 = vadd.s32 %v2234, 3
    %v2239 = vand.u32 %v2238, 3
    %vm2240 = vcmp.lt.s32.totalorder %v2239, 2
    %vm2241 = vcmp.eq.s32.totalorder %v2239, 0
    %v2242 = vxor.u32 %v2236, 2147483648
    %v2243 = vsel %vm2241, %v2235, %v2242
    %vm2244 = vcmp.eq.s32.totalorder %v2239, 2
    %v2245 = vxor.u32 %v2235, 2147483648
    %v2246 = vsel %vm2244, %v2245, %v2236
    %v2247 = vsel %vm2240, %v2243, %v2246
    %v2248 = vsel %vm2237, nan, %v2247
    %v2249 = vand.u32 2147483647, %v309
    %vm2250 = vcmp.le.f32.partialorder %v2249, 0.7853982
    %vm2251 = vcmp.lt.s32.totalorder %v309, 0
    %v2252 = vand.u32 %v309, 2139095040
    %v2253 = vshrl.u32 %v2252, 23
    %v2254 = vsub.s32 %v2253, 127
    %v2255 = vand.u32 2147483647, %v309
    %v2256 = vand.u32 %v2255, 8388607
    %v2257 = vor.u32 %v2256, 8388608
    %v2258 = vsub.s32 0, %v2257
    %v2259 = vadd.s32 %v2254, 1
    %vm2260 = vcmp.gt.s32.totalorder %v2259, 0
    %v2261 = vsel %vm2260, %v2259, 0
    %v2262 = vshrl.u32 %v2261, 5
    %v2263 = vand.u32 %v2261, 31
    %v2264 = vsub.s32 32, %v2263
    %v2265 = vshrl.u32 683565275, %v2264
    %v2266 = vshll.u32 683565275, %v2263
    %v2267 = vshrl.u32 2475754826, %v2264
    %v2268 = vor.u32 %v2266, %v2267
    %v2269 = vshll.u32 2475754826, %v2263
    %v2270 = vshrl.u32 2131351028, %v2264
    %v2271 = vor.u32 %v2269, %v2270
    %v2272 = vshll.u32 2131351028, %v2263
    %v2273 = vshrl.u32 2102212464, %v2264
    %v2274 = vor.u32 %v2272, %v2273
    %v2275 = vshll.u32 2102212464, %v2263
    %v2276 = vshrl.u32 920167782, %v2264
    %v2277 = vor.u32 %v2275, %v2276
    %v2278 = vshll.u32 920167782, %v2263
    %v2279 = vshrl.u32 1326507024, %v2264
    %v2280 = vor.u32 %v2278, %v2279
    %vm2281 = vcmp.lt.s32.totalorder %v2262, 1
    %vm2282 = vcmp.lt.s32.totalorder %v2262, 2
    %vm2283 = vcmp.lt.s32.totalorder %v2262, 3
    %vm2284 = vcmp.lt.s32.totalorder %v2262, 4
    %v2285 = vsel %vm2281, %v2265, %v2268
    %v2286 = vsel %vm2284, %v2274, 2102212464
    %v2287 = vsel %vm2283, %v2271, %v2286
    %v2288 = vsel %vm2282, %v2285, %v2287
    %v2289 = vsel %vm2281, %v2268, %v2271
    %v2290 = vsel %vm2284, %v2277, 920167782
    %v2291 = vsel %vm2283, %v2274, %v2290
    %v2292 = vsel %vm2282, %v2289, %v2291
    %v2293 = vsel %vm2281, %v2271, %v2274
    %v2294 = vsel %vm2284, %v2280, 1326507024
    %v2295 = vsel %vm2283, %v2277, %v2294
    %v2296 = vsel %vm2282, %v2293, %v2295
    %v2297 = vshll.u32 %v2257, 8
    %v2298 = vmul.u32.u64.compose %v2297, %v2296
    %v2299 = vextract.low.u32 %v2298
    %v2300 = vextract.high.u32 %v2298
    %v2301 = vmul.u32.u64.compose %v2297, %v2292
    %v2302 = vextract.low.u32 %v2301
    %v2303 = vextract.high.u32 %v2301
    %v2304 = vmul.u32 %v2297, %v2288
    %v2305 = vadd.s32 %v2300, %v2302
    %vm2306 = vc.u32 %v2300, %v2302
    %v2307 = vadd.s32 %v2303, 1
    %v2308 = vsel %vm2306, %v2307, %v2303
    %v2309 = vadd.s32 %v2304, %v2308
    %v2310 = vadd.s32 %v2309, 536870912
    %v2311 = vshrl.u32 %v2310, 30
    %v2312 = vshll.u32 %v2311, 30
    %v2313 = vsub.s32 %v2309, %v2312
    %vm2314 = vcmp.lt.s32.totalorder %v2313, 0
    %v2315 = vsub.s32 0, %v2313
    %v2316 = vsel %vm2314, %v2315, %v2313
    %v2317 = vclz %v2316
    %v2318 = vsub.s32 %v2317, 2
    %vm2319 = vcmp.gt.s32.totalorder 0, %v2318
    %v2320 = vsel %vm2319, 0, %v2318
    %v2321 = vsub.s32 32, %v2320
    %v2322 = vshll.u32 %v2313, %v2320
    %v2323 = vshrl.u32 %v2305, %v2321
    %v2324 = vor.u32 %v2322, %v2323
    %v2325 = vsub.s32 4294967266, %v2320
    %v2326 = vadd.s32 %v2325, 127
    %v2327 = vshll.u32 %v2326, 23
    %v2328 = vor.u32 4788187, %v2327
    %v2329 = vand.u32 2147483647, %v2328
    %v2331 = vcvt.s32.f32 %v2324
    %v2332 = vmul.f32 %v2331, %v2329
    %v2333 = vxor.u32 %v2332, 2147483648
    %v2334 = vsel %vm2251, %v2333, %v2332
    %v2335 = vsub.s32 4, %v2311
    %v2336 = vsel %vm2251, %v2335, %v2311
    %v2337 = vsel %vm2250, %v309, %v2334
    %v2338 = vsel %vm2250, 0, %v2336
    %v2339 = vcosq.f32.pop %v2337
    %v2340 = vsinq.f32.pop %v2337
    %vm2341 = vweird.f32 %v309
    %v2342 = vadd.s32 %v2338, 3
    %v2343 = vand.u32 %v2342, 3
    %vm2344 = vcmp.lt.s32.totalorder %v2343, 2
    %vm2345 = vcmp.eq.s32.totalorder %v2343, 0
    %v2346 = vxor.u32 %v2340, 2147483648
    %v2347 = vsel %vm2345, %v2339, %v2346
    %vm2348 = vcmp.eq.s32.totalorder %v2343, 2
    %v2349 = vxor.u32 %v2339, 2147483648
    %v2350 = vsel %vm2348, %v2349, %v2340
    %v2351 = vsel %vm2344, %v2347, %v2350
    %v2352 = vsel %vm2341, nan, %v2351
    %v2353 = vand.u32 2147483647, %v314
    %vm2354 = vcmp.le.f32.partialorder %v2353, 0.7853982
    %vm2355 = vcmp.lt.s32.totalorder %v314, 0
    %v2356 = vand.u32 %v314, 2139095040
    %v2357 = vshrl.u32 %v2356, 23
    %v2358 = vsub.s32 %v2357, 127
    %v2359 = vand.u32 2147483647, %v314
    %v2360 = vand.u32 %v2359, 8388607
    %v2361 = vor.u32 %v2360, 8388608
    %v2362 = vsub.s32 0, %v2361
    %v2363 = vadd.s32 %v2358, 1
    %vm2364 = vcmp.gt.s32.totalorder %v2363, 0
    %v2365 = vsel %vm2364, %v2363, 0
    %v2366 = vshrl.u32 %v2365, 5
    %v2367 = vand.u32 %v2365, 31
    %v2368 = vsub.s32 32, %v2367
    %v2369 = vshrl.u32 683565275, %v2368
    %v2370 = vshll.u32 683565275, %v2367
    %v2371 = vshrl.u32 2475754826, %v2368
    %v2372 = vor.u32 %v2370, %v2371
    %v2373 = vshll.u32 2475754826, %v2367
    %v2374 = vshrl.u32 2131351028, %v2368
    %v2375 = vor.u32 %v2373, %v2374
    %v2376 = vshll.u32 2131351028, %v2367
    %v2377 = vshrl.u32 2102212464, %v2368
    %v2378 = vor.u32 %v2376, %v2377
    %v2379 = vshll.u32 2102212464, %v2367
    %v2380 = vshrl.u32 920167782, %v2368
    %v2381 = vor.u32 %v2379, %v2380
    %v2382 = vshll.u32 920167782, %v2367
    %v2383 = vshrl.u32 1326507024, %v2368
    %v2384 = vor.u32 %v2382, %v2383
    %vm2385 = vcmp.lt.s32.totalorder %v2366, 1
    %vm2386 = vcmp.lt.s32.totalorder %v2366, 2
    %vm2387 = vcmp.lt.s32.totalorder %v2366, 3
    %vm2388 = vcmp.lt.s32.totalorder %v2366, 4
    %v2389 = vsel %vm2385, %v2369, %v2372
    %v2390 = vsel %vm2388, %v2378, 2102212464
    %v2391 = vsel %vm2387, %v2375, %v2390
    %v2392 = vsel %vm2386, %v2389, %v2391
    %v2393 = vsel %vm2385, %v2372, %v2375
    %v2394 = vsel %vm2388, %v2381, 920167782
    %v2395 = vsel %vm2387, %v2378, %v2394
    %v2396 = vsel %vm2386, %v2393, %v2395
    %v2397 = vsel %vm2385, %v2375, %v2378
    %v2398 = vsel %vm2388, %v2384, 1326507024
    %v2399 = vsel %vm2387, %v2381, %v2398
    %v2400 = vsel %vm2386, %v2397, %v2399
    %v2401 = vshll.u32 %v2361, 8
    %v2402 = vmul.u32.u64.compose %v2401, %v2400
    %v2403 = vextract.low.u32 %v2402
    %v2404 = vextract.high.u32 %v2402
    %v2405 = vmul.u32.u64.compose %v2401, %v2396
    %v2406 = vextract.low.u32 %v2405
    %v2407 = vextract.high.u32 %v2405
    %v2408 = vmul.u32 %v2401, %v2392
    %v2409 = vadd.s32 %v2404, %v2406
    %vm2410 = vc.u32 %v2404, %v2406
    %v2411 = vadd.s32 %v2407, 1
    %v2412 = vsel %vm2410, %v2411, %v2407
    %v2413 = vadd.s32 %v2408, %v2412
    %v2414 = vadd.s32 %v2413, 536870912
    %v2415 = vshrl.u32 %v2414, 30
    %v2416 = vshll.u32 %v2415, 30
    %v2417 = vsub.s32 %v2413, %v2416
    %vm2418 = vcmp.lt.s32.totalorder %v2417, 0
    %v2419 = vsub.s32 0, %v2417
    %v2420 = vsel %vm2418, %v2419, %v2417
    %v2421 = vclz %v2420
    %v2422 = vsub.s32 %v2421, 2
    %vm2423 = vcmp.gt.s32.totalorder 0, %v2422
    %v2424 = vsel %vm2423, 0, %v2422
    %v2425 = vsub.s32 32, %v2424
    %v2426 = vshll.u32 %v2417, %v2424
    %v2427 = vshrl.u32 %v2409, %v2425
    %v2428 = vor.u32 %v2426, %v2427
    %v2429 = vsub.s32 4294967266, %v2424
    %v2430 = vadd.s32 %v2429, 127
    %v2431 = vshll.u32 %v2430, 23
    %v2432 = vor.u32 4788187, %v2431
    %v2433 = vand.u32 2147483647, %v2432
    %v2435 = vcvt.s32.f32 %v2428
    %v2436 = vmul.f32 %v2435, %v2433
    %v2437 = vxor.u32 %v2436, 2147483648
    %v2438 = vsel %vm2355, %v2437, %v2436
    %v2439 = vsub.s32 4, %v2415
    %v2440 = vsel %vm2355, %v2439, %v2415
    %v2441 = vsel %vm2354, %v314, %v2438
    %v2442 = vsel %vm2354, 0, %v2440
    %v2443 = vcosq.f32.pop %v2441
    %v2444 = vsinq.f32.pop %v2441
    %vm2445 = vweird.f32 %v314
    %v2446 = vadd.s32 %v2442, 3
    %v2447 = vand.u32 %v2446, 3
    %vm2448 = vcmp.lt.s32.totalorder %v2447, 2
    %vm2449 = vcmp.eq.s32.totalorder %v2447, 0
    %v2450 = vxor.u32 %v2444, 2147483648
    %v2451 = vsel %vm2449, %v2443, %v2450
    %vm2452 = vcmp.eq.s32.totalorder %v2447, 2
    %v2453 = vxor.u32 %v2443, 2147483648
    %v2454 = vsel %vm2452, %v2453, %v2444
    %v2455 = vsel %vm2448, %v2451, %v2454
    %v2456 = vsel %vm2445, nan, %v2455
    %v2457 = vand.u32 2147483647, %v319
    %vm2458 = vcmp.le.f32.partialorder %v2457, 0.7853982
    %vm2459 = vcmp.lt.s32.totalorder %v319, 0
    %v2460 = vand.u32 %v319, 2139095040
    %v2461 = vshrl.u32 %v2460, 23
    %v2462 = vsub.s32 %v2461, 127
    %v2463 = vand.u32 2147483647, %v319
    %v2464 = vand.u32 %v2463, 8388607
    %v2465 = vor.u32 %v2464, 8388608
    %v2466 = vsub.s32 0, %v2465
    %v2467 = vadd.s32 %v2462, 1
    %vm2468 = vcmp.gt.s32.totalorder %v2467, 0
    %v2469 = vsel %vm2468, %v2467, 0
    %v2470 = vshrl.u32 %v2469, 5
    %v2471 = vand.u32 %v2469, 31
    %v2472 = vsub.s32 32, %v2471
    %v2473 = vshrl.u32 683565275, %v2472
    %v2474 = vshll.u32 683565275, %v2471
    %v2475 = vshrl.u32 2475754826, %v2472
    %v2476 = vor.u32 %v2474, %v2475
    %v2477 = vshll.u32 2475754826, %v2471
    %v2478 = vshrl.u32 2131351028, %v2472
    %v2479 = vor.u32 %v2477, %v2478
    %v2480 = vshll.u32 2131351028, %v2471
    %v2481 = vshrl.u32 2102212464, %v2472
    %v2482 = vor.u32 %v2480, %v2481
    %v2483 = vshll.u32 2102212464, %v2471
    %v2484 = vshrl.u32 920167782, %v2472
    %v2485 = vor.u32 %v2483, %v2484
    %v2486 = vshll.u32 920167782, %v2471
    %v2487 = vshrl.u32 1326507024, %v2472
    %v2488 = vor.u32 %v2486, %v2487
    %vm2489 = vcmp.lt.s32.totalorder %v2470, 1
    %vm2490 = vcmp.lt.s32.totalorder %v2470, 2
    %vm2491 = vcmp.lt.s32.totalorder %v2470, 3
    %vm2492 = vcmp.lt.s32.totalorder %v2470, 4
    %v2493 = vsel %vm2489, %v2473, %v2476
    %v2494 = vsel %vm2492, %v2482, 2102212464
    %v2495 = vsel %vm2491, %v2479, %v2494
    %v2496 = vsel %vm2490, %v2493, %v2495
    %v2497 = vsel %vm2489, %v2476, %v2479
    %v2498 = vsel %vm2492, %v2485, 920167782
    %v2499 = vsel %vm2491, %v2482, %v2498
    %v2500 = vsel %vm2490, %v2497, %v2499
    %v2501 = vsel %vm2489, %v2479, %v2482
    %v2502 = vsel %vm2492, %v2488, 1326507024
    %v2503 = vsel %vm2491, %v2485, %v2502
    %v2504 = vsel %vm2490, %v2501, %v2503
    %v2505 = vshll.u32 %v2465, 8
    %v2506 = vmul.u32.u64.compose %v2505, %v2504
    %v2507 = vextract.low.u32 %v2506
    %v2508 = vextract.high.u32 %v2506
    %v2509 = vmul.u32.u64.compose %v2505, %v2500
    %v2510 = vextract.low.u32 %v2509
    %v2511 = vextract.high.u32 %v2509
    %v2512 = vmul.u32 %v2505, %v2496
    %v2513 = vadd.s32 %v2508, %v2510
    %vm2514 = vc.u32 %v2508, %v2510
    %v2515 = vadd.s32 %v2511, 1
    %v2516 = vsel %vm2514, %v2515, %v2511
    %v2517 = vadd.s32 %v2512, %v2516
    %v2518 = vadd.s32 %v2517, 536870912
    %v2519 = vshrl.u32 %v2518, 30
    %v2520 = vshll.u32 %v2519, 30
    %v2521 = vsub.s32 %v2517, %v2520
    %vm2522 = vcmp.lt.s32.totalorder %v2521, 0
    %v2523 = vsub.s32 0, %v2521
    %v2524 = vsel %vm2522, %v2523, %v2521
    %v2525 = vclz %v2524
    %v2526 = vsub.s32 %v2525, 2
    %vm2527 = vcmp.gt.s32.totalorder 0, %v2526
    %v2528 = vsel %vm2527, 0, %v2526
    %v2529 = vsub.s32 32, %v2528
    %v2530 = vshll.u32 %v2521, %v2528
    %v2531 = vshrl.u32 %v2513, %v2529
    %v2532 = vor.u32 %v2530, %v2531
    %v2533 = vsub.s32 4294967266, %v2528
    %v2534 = vadd.s32 %v2533, 127
    %v2535 = vshll.u32 %v2534, 23
    %v2536 = vor.u32 4788187, %v2535
    %v2537 = vand.u32 2147483647, %v2536
    %v2539 = vcvt.s32.f32 %v2532
    %v2540 = vmul.f32 %v2539, %v2537
    %v2541 = vxor.u32 %v2540, 2147483648
    %v2542 = vsel %vm2459, %v2541, %v2540
    %v2543 = vsub.s32 4, %v2519
    %v2544 = vsel %vm2459, %v2543, %v2519
    %v2545 = vsel %vm2458, %v319, %v2542
    %v2546 = vsel %vm2458, 0, %v2544
    %v2547 = vcosq.f32.pop %v2545
    %v2548 = vsinq.f32.pop %v2545
    %vm2549 = vweird.f32 %v319
    %v2550 = vadd.s32 %v2546, 3
    %v2551 = vand.u32 %v2550, 3
    %vm2552 = vcmp.lt.s32.totalorder %v2551, 2
    %vm2553 = vcmp.eq.s32.totalorder %v2551, 0
    %v2554 = vxor.u32 %v2548, 2147483648
    %v2555 = vsel %vm2553, %v2547, %v2554
    %vm2556 = vcmp.eq.s32.totalorder %v2551, 2
    %v2557 = vxor.u32 %v2547, 2147483648
    %v2558 = vsel %vm2556, %v2557, %v2548
    %v2559 = vsel %vm2552, %v2555, %v2558
    %v2560 = vsel %vm2549, nan, %v2559
    %v2561 = vand.u32 2147483647, %v324
    %vm2562 = vcmp.le.f32.partialorder %v2561, 0.7853982
    %vm2563 = vcmp.lt.s32.totalorder %v324, 0
    %v2564 = vand.u32 %v324, 2139095040
    %v2565 = vshrl.u32 %v2564, 23
    %v2566 = vsub.s32 %v2565, 127
    %v2567 = vand.u32 2147483647, %v324
    %v2568 = vand.u32 %v2567, 8388607
    %v2569 = vor.u32 %v2568, 8388608
    %v2570 = vsub.s32 0, %v2569
    %v2571 = vadd.s32 %v2566, 1
    %vm2572 = vcmp.gt.s32.totalorder %v2571, 0
    %v2573 = vsel %vm2572, %v2571, 0
    %v2574 = vshrl.u32 %v2573, 5
    %v2575 = vand.u32 %v2573, 31
    %v2576 = vsub.s32 32, %v2575
    %v2577 = vshrl.u32 683565275, %v2576
    %v2578 = vshll.u32 683565275, %v2575
    %v2579 = vshrl.u32 2475754826, %v2576
    %v2580 = vor.u32 %v2578, %v2579
    %v2581 = vshll.u32 2475754826, %v2575
    %v2582 = vshrl.u32 2131351028, %v2576
    %v2583 = vor.u32 %v2581, %v2582
    %v2584 = vshll.u32 2131351028, %v2575
    %v2585 = vshrl.u32 2102212464, %v2576
    %v2586 = vor.u32 %v2584, %v2585
    %v2587 = vshll.u32 2102212464, %v2575
    %v2588 = vshrl.u32 920167782, %v2576
    %v2589 = vor.u32 %v2587, %v2588
    %v2590 = vshll.u32 920167782, %v2575
    %v2591 = vshrl.u32 1326507024, %v2576
    %v2592 = vor.u32 %v2590, %v2591
    %vm2593 = vcmp.lt.s32.totalorder %v2574, 1
    %vm2594 = vcmp.lt.s32.totalorder %v2574, 2
    %vm2595 = vcmp.lt.s32.totalorder %v2574, 3
    %vm2596 = vcmp.lt.s32.totalorder %v2574, 4
    %v2597 = vsel %vm2593, %v2577, %v2580
    %v2598 = vsel %vm2596, %v2586, 2102212464
    %v2599 = vsel %vm2595, %v2583, %v2598
    %v2600 = vsel %vm2594, %v2597, %v2599
    %v2601 = vsel %vm2593, %v2580, %v2583
    %v2602 = vsel %vm2596, %v2589, 920167782
    %v2603 = vsel %vm2595, %v2586, %v2602
    %v2604 = vsel %vm2594, %v2601, %v2603
    %v2605 = vsel %vm2593, %v2583, %v2586
    %v2606 = vsel %vm2596, %v2592, 1326507024
    %v2607 = vsel %vm2595, %v2589, %v2606
    %v2608 = vsel %vm2594, %v2605, %v2607
    %v2609 = vshll.u32 %v2569, 8
    %v2610 = vmul.u32.u64.compose %v2609, %v2608
    %v2611 = vextract.low.u32 %v2610
    %v2612 = vextract.high.u32 %v2610
    %v2613 = vmul.u32.u64.compose %v2609, %v2604
    %v2614 = vextract.low.u32 %v2613
    %v2615 = vextract.high.u32 %v2613
    %v2616 = vmul.u32 %v2609, %v2600
    %v2617 = vadd.s32 %v2612, %v2614
    %vm2618 = vc.u32 %v2612, %v2614
    %v2619 = vadd.s32 %v2615, 1
    %v2620 = vsel %vm2618, %v2619, %v2615
    %v2621 = vadd.s32 %v2616, %v2620
    %v2622 = vadd.s32 %v2621, 536870912
    %v2623 = vshrl.u32 %v2622, 30
    %v2624 = vshll.u32 %v2623, 30
    %v2625 = vsub.s32 %v2621, %v2624
    %vm2626 = vcmp.lt.s32.totalorder %v2625, 0
    %v2627 = vsub.s32 0, %v2625
    %v2628 = vsel %vm2626, %v2627, %v2625
    %v2629 = vclz %v2628
    %v2630 = vsub.s32 %v2629, 2
    %vm2631 = vcmp.gt.s32.totalorder 0, %v2630
    %v2632 = vsel %vm2631, 0, %v2630
    %v2633 = vsub.s32 32, %v2632
    %v2634 = vshll.u32 %v2625, %v2632
    %v2635 = vshrl.u32 %v2617, %v2633
    %v2636 = vor.u32 %v2634, %v2635
    %v2637 = vsub.s32 4294967266, %v2632
    %v2638 = vadd.s32 %v2637, 127
    %v2639 = vshll.u32 %v2638, 23
    %v2640 = vor.u32 4788187, %v2639
    %v2641 = vand.u32 2147483647, %v2640
    %v2643 = vcvt.s32.f32 %v2636
    %v2644 = vmul.f32 %v2643, %v2641
    %v2645 = vxor.u32 %v2644, 2147483648
    %v2646 = vsel %vm2563, %v2645, %v2644
    %v2647 = vsub.s32 4, %v2623
    %v2648 = vsel %vm2563, %v2647, %v2623
    %v2649 = vsel %vm2562, %v324, %v2646
    %v2650 = vsel %vm2562, 0, %v2648
    %v2651 = vcosq.f32.pop %v2649
    %v2652 = vsinq.f32.pop %v2649
    %vm2653 = vweird.f32 %v324
    %v2654 = vadd.s32 %v2650, 3
    %v2655 = vand.u32 %v2654, 3
    %vm2656 = vcmp.lt.s32.totalorder %v2655, 2
    %vm2657 = vcmp.eq.s32.totalorder %v2655, 0
    %v2658 = vxor.u32 %v2652, 2147483648
    %v2659 = vsel %vm2657, %v2651, %v2658
    %vm2660 = vcmp.eq.s32.totalorder %v2655, 2
    %v2661 = vxor.u32 %v2651, 2147483648
    %v2662 = vsel %vm2660, %v2661, %v2652
    %v2663 = vsel %vm2656, %v2659, %v2662
    %v2664 = vsel %vm2653, nan, %v2663
    %v2665 = vand.u32 2147483647, %v329
    %vm2666 = vcmp.le.f32.partialorder %v2665, 0.7853982
    %vm2667 = vcmp.lt.s32.totalorder %v329, 0
    %v2668 = vand.u32 %v329, 2139095040
    %v2669 = vshrl.u32 %v2668, 23
    %v2670 = vsub.s32 %v2669, 127
    %v2671 = vand.u32 2147483647, %v329
    %v2672 = vand.u32 %v2671, 8388607
    %v2673 = vor.u32 %v2672, 8388608
    %v2674 = vsub.s32 0, %v2673
    %v2675 = vadd.s32 %v2670, 1
    %vm2676 = vcmp.gt.s32.totalorder %v2675, 0
    %v2677 = vsel %vm2676, %v2675, 0
    %v2678 = vshrl.u32 %v2677, 5
    %v2679 = vand.u32 %v2677, 31
    %v2680 = vsub.s32 32, %v2679
    %v2681 = vshrl.u32 683565275, %v2680
    %v2682 = vshll.u32 683565275, %v2679
    %v2683 = vshrl.u32 2475754826, %v2680
    %v2684 = vor.u32 %v2682, %v2683
    %v2685 = vshll.u32 2475754826, %v2679
    %v2686 = vshrl.u32 2131351028, %v2680
    %v2687 = vor.u32 %v2685, %v2686
    %v2688 = vshll.u32 2131351028, %v2679
    %v2689 = vshrl.u32 2102212464, %v2680
    %v2690 = vor.u32 %v2688, %v2689
    %v2691 = vshll.u32 2102212464, %v2679
    %v2692 = vshrl.u32 920167782, %v2680
    %v2693 = vor.u32 %v2691, %v2692
    %v2694 = vshll.u32 920167782, %v2679
    %v2695 = vshrl.u32 1326507024, %v2680
    %v2696 = vor.u32 %v2694, %v2695
    %vm2697 = vcmp.lt.s32.totalorder %v2678, 1
    %vm2698 = vcmp.lt.s32.totalorder %v2678, 2
    %vm2699 = vcmp.lt.s32.totalorder %v2678, 3
    %vm2700 = vcmp.lt.s32.totalorder %v2678, 4
    %v2701 = vsel %vm2697, %v2681, %v2684
    %v2702 = vsel %vm2700, %v2690, 2102212464
    %v2703 = vsel %vm2699, %v2687, %v2702
    %v2704 = vsel %vm2698, %v2701, %v2703
    %v2705 = vsel %vm2697, %v2684, %v2687
    %v2706 = vsel %vm2700, %v2693, 920167782
    %v2707 = vsel %vm2699, %v2690, %v2706
    %v2708 = vsel %vm2698, %v2705, %v2707
    %v2709 = vsel %vm2697, %v2687, %v2690
    %v2710 = vsel %vm2700, %v2696, 1326507024
    %v2711 = vsel %vm2699, %v2693, %v2710
    %v2712 = vsel %vm2698, %v2709, %v2711
    %v2713 = vshll.u32 %v2673, 8
    %v2714 = vmul.u32.u64.compose %v2713, %v2712
    %v2715 = vextract.low.u32 %v2714
    %v2716 = vextract.high.u32 %v2714
    %v2717 = vmul.u32.u64.compose %v2713, %v2708
    %v2718 = vextract.low.u32 %v2717
    %v2719 = vextract.high.u32 %v2717
    %v2720 = vmul.u32 %v2713, %v2704
    %v2721 = vadd.s32 %v2716, %v2718
    %vm2722 = vc.u32 %v2716, %v2718
    %v2723 = vadd.s32 %v2719, 1
    %v2724 = vsel %vm2722, %v2723, %v2719
    %v2725 = vadd.s32 %v2720, %v2724
    %v2726 = vadd.s32 %v2725, 536870912
    %v2727 = vshrl.u32 %v2726, 30
    %v2728 = vshll.u32 %v2727, 30
    %v2729 = vsub.s32 %v2725, %v2728
    %vm2730 = vcmp.lt.s32.totalorder %v2729, 0
    %v2731 = vsub.s32 0, %v2729
    %v2732 = vsel %vm2730, %v2731, %v2729
    %v2733 = vclz %v2732
    %v2734 = vsub.s32 %v2733, 2
    %vm2735 = vcmp.gt.s32.totalorder 0, %v2734
    %v2736 = vsel %vm2735, 0, %v2734
    %v2737 = vsub.s32 32, %v2736
    %v2738 = vshll.u32 %v2729, %v2736
    %v2739 = vshrl.u32 %v2721, %v2737
    %v2740 = vor.u32 %v2738, %v2739
    %v2741 = vsub.s32 4294967266, %v2736
    %v2742 = vadd.s32 %v2741, 127
    %v2743 = vshll.u32 %v2742, 23
    %v2744 = vor.u32 4788187, %v2743
    %v2745 = vand.u32 2147483647, %v2744
    %v2747 = vcvt.s32.f32 %v2740
    %v2748 = vmul.f32 %v2747, %v2745
    %v2749 = vxor.u32 %v2748, 2147483648
    %v2750 = vsel %vm2667, %v2749, %v2748
    %v2751 = vsub.s32 4, %v2727
    %v2752 = vsel %vm2667, %v2751, %v2727
    %v2753 = vsel %vm2666, %v329, %v2750
    %v2754 = vsel %vm2666, 0, %v2752
    %v2755 = vcosq.f32.pop %v2753
    %v2756 = vsinq.f32.pop %v2753
    %vm2757 = vweird.f32 %v329
    %v2758 = vadd.s32 %v2754, 3
    %v2759 = vand.u32 %v2758, 3
    %vm2760 = vcmp.lt.s32.totalorder %v2759, 2
    %vm2761 = vcmp.eq.s32.totalorder %v2759, 0
    %v2762 = vxor.u32 %v2756, 2147483648
    %v2763 = vsel %vm2761, %v2755, %v2762
    %vm2764 = vcmp.eq.s32.totalorder %v2759, 2
    %v2765 = vxor.u32 %v2755, 2147483648
    %v2766 = vsel %vm2764, %v2765, %v2756
    %v2767 = vsel %vm2760, %v2763, %v2766
    %v2768 = vsel %vm2757, nan, %v2767
    %v2769 = vand.u32 2147483647, %v334
    %vm2770 = vcmp.le.f32.partialorder %v2769, 0.7853982
    %vm2771 = vcmp.lt.s32.totalorder %v334, 0
    %v2772 = vand.u32 %v334, 2139095040
    %v2773 = vshrl.u32 %v2772, 23
    %v2774 = vsub.s32 %v2773, 127
    %v2775 = vand.u32 2147483647, %v334
    %v2776 = vand.u32 %v2775, 8388607
    %v2777 = vor.u32 %v2776, 8388608
    %v2778 = vsub.s32 0, %v2777
    %v2779 = vadd.s32 %v2774, 1
    %vm2780 = vcmp.gt.s32.totalorder %v2779, 0
    %v2781 = vsel %vm2780, %v2779, 0
    %v2782 = vshrl.u32 %v2781, 5
    %v2783 = vand.u32 %v2781, 31
    %v2784 = vsub.s32 32, %v2783
    %v2785 = vshrl.u32 683565275, %v2784
    %v2786 = vshll.u32 683565275, %v2783
    %v2787 = vshrl.u32 2475754826, %v2784
    %v2788 = vor.u32 %v2786, %v2787
    %v2789 = vshll.u32 2475754826, %v2783
    %v2790 = vshrl.u32 2131351028, %v2784
    %v2791 = vor.u32 %v2789, %v2790
    %v2792 = vshll.u32 2131351028, %v2783
    %v2793 = vshrl.u32 2102212464, %v2784
    %v2794 = vor.u32 %v2792, %v2793
    %v2795 = vshll.u32 2102212464, %v2783
    %v2796 = vshrl.u32 920167782, %v2784
    %v2797 = vor.u32 %v2795, %v2796
    %v2798 = vshll.u32 920167782, %v2783
    %v2799 = vshrl.u32 1326507024, %v2784
    %v2800 = vor.u32 %v2798, %v2799
    %vm2801 = vcmp.lt.s32.totalorder %v2782, 1
    %vm2802 = vcmp.lt.s32.totalorder %v2782, 2
    %vm2803 = vcmp.lt.s32.totalorder %v2782, 3
    %vm2804 = vcmp.lt.s32.totalorder %v2782, 4
    %v2805 = vsel %vm2801, %v2785, %v2788
    %v2806 = vsel %vm2804, %v2794, 2102212464
    %v2807 = vsel %vm2803, %v2791, %v2806
    %v2808 = vsel %vm2802, %v2805, %v2807
    %v2809 = vsel %vm2801, %v2788, %v2791
    %v2810 = vsel %vm2804, %v2797, 920167782
    %v2811 = vsel %vm2803, %v2794, %v2810
    %v2812 = vsel %vm2802, %v2809, %v2811
    %v2813 = vsel %vm2801, %v2791, %v2794
    %v2814 = vsel %vm2804, %v2800, 1326507024
    %v2815 = vsel %vm2803, %v2797, %v2814
    %v2816 = vsel %vm2802, %v2813, %v2815
    %v2817 = vshll.u32 %v2777, 8
    %v2818 = vmul.u32.u64.compose %v2817, %v2816
    %v2819 = vextract.low.u32 %v2818
    %v2820 = vextract.high.u32 %v2818
    %v2821 = vmul.u32.u64.compose %v2817, %v2812
    %v2822 = vextract.low.u32 %v2821
    %v2823 = vextract.high.u32 %v2821
    %v2824 = vmul.u32 %v2817, %v2808
    %v2825 = vadd.s32 %v2820, %v2822
    %vm2826 = vc.u32 %v2820, %v2822
    %v2827 = vadd.s32 %v2823, 1
    %v2828 = vsel %vm2826, %v2827, %v2823
    %v2829 = vadd.s32 %v2824, %v2828
    %v2830 = vadd.s32 %v2829, 536870912
    %v2831 = vshrl.u32 %v2830, 30
    %v2832 = vshll.u32 %v2831, 30
    %v2833 = vsub.s32 %v2829, %v2832
    %vm2834 = vcmp.lt.s32.totalorder %v2833, 0
    %v2835 = vsub.s32 0, %v2833
    %v2836 = vsel %vm2834, %v2835, %v2833
    %v2837 = vclz %v2836
    %v2838 = vsub.s32 %v2837, 2
    %vm2839 = vcmp.gt.s32.totalorder 0, %v2838
    %v2840 = vsel %vm2839, 0, %v2838
    %v2841 = vsub.s32 32, %v2840
    %v2842 = vshll.u32 %v2833, %v2840
    %v2843 = vshrl.u32 %v2825, %v2841
    %v2844 = vor.u32 %v2842, %v2843
    %v2845 = vsub.s32 4294967266, %v2840
    %v2846 = vadd.s32 %v2845, 127
    %v2847 = vshll.u32 %v2846, 23
    %v2848 = vor.u32 4788187, %v2847
    %v2849 = vand.u32 2147483647, %v2848
    %v2851 = vcvt.s32.f32 %v2844
    %v2852 = vmul.f32 %v2851, %v2849
    %v2853 = vxor.u32 %v2852, 2147483648
    %v2854 = vsel %vm2771, %v2853, %v2852
    %v2855 = vsub.s32 4, %v2831
    %v2856 = vsel %vm2771, %v2855, %v2831
    %v2857 = vsel %vm2770, %v334, %v2854
    %v2858 = vsel %vm2770, 0, %v2856
    %v2859 = vcosq.f32.pop %v2857
    %v2860 = vsinq.f32.pop %v2857
    %vm2861 = vweird.f32 %v334
    %v2862 = vadd.s32 %v2858, 3
    %v2863 = vand.u32 %v2862, 3
    %vm2864 = vcmp.lt.s32.totalorder %v2863, 2
    %vm2865 = vcmp.eq.s32.totalorder %v2863, 0
    %v2866 = vxor.u32 %v2860, 2147483648
    %v2867 = vsel %vm2865, %v2859, %v2866
    %vm2868 = vcmp.eq.s32.totalorder %v2863, 2
    %v2869 = vxor.u32 %v2859, 2147483648
    %v2870 = vsel %vm2868, %v2869, %v2860
    %v2871 = vsel %vm2864, %v2867, %v2870
    %v2872 = vsel %vm2861, nan, %v2871
    %v2873 = vand.u32 2147483647, %v339
    %vm2874 = vcmp.le.f32.partialorder %v2873, 0.7853982
    %vm2875 = vcmp.lt.s32.totalorder %v339, 0
    %v2876 = vand.u32 %v339, 2139095040
    %v2877 = vshrl.u32 %v2876, 23
    %v2878 = vsub.s32 %v2877, 127
    %v2879 = vand.u32 2147483647, %v339
    %v2880 = vand.u32 %v2879, 8388607
    %v2881 = vor.u32 %v2880, 8388608
    %v2882 = vsub.s32 0, %v2881
    %v2883 = vadd.s32 %v2878, 1
    %vm2884 = vcmp.gt.s32.totalorder %v2883, 0
    %v2885 = vsel %vm2884, %v2883, 0
    %v2886 = vshrl.u32 %v2885, 5
    %v2887 = vand.u32 %v2885, 31
    %v2888 = vsub.s32 32, %v2887
    %v2889 = vshrl.u32 683565275, %v2888
    %v2890 = vshll.u32 683565275, %v2887
    %v2891 = vshrl.u32 2475754826, %v2888
    %v2892 = vor.u32 %v2890, %v2891
    %v2893 = vshll.u32 2475754826, %v2887
    %v2894 = vshrl.u32 2131351028, %v2888
    %v2895 = vor.u32 %v2893, %v2894
    %v2896 = vshll.u32 2131351028, %v2887
    %v2897 = vshrl.u32 2102212464, %v2888
    %v2898 = vor.u32 %v2896, %v2897
    %v2899 = vshll.u32 2102212464, %v2887
    %v2900 = vshrl.u32 920167782, %v2888
    %v2901 = vor.u32 %v2899, %v2900
    %v2902 = vshll.u32 920167782, %v2887
    %v2903 = vshrl.u32 1326507024, %v2888
    %v2904 = vor.u32 %v2902, %v2903
    %vm2905 = vcmp.lt.s32.totalorder %v2886, 1
    %vm2906 = vcmp.lt.s32.totalorder %v2886, 2
    %vm2907 = vcmp.lt.s32.totalorder %v2886, 3
    %vm2908 = vcmp.lt.s32.totalorder %v2886, 4
    %v2909 = vsel %vm2905, %v2889, %v2892
    %v2910 = vsel %vm2908, %v2898, 2102212464
    %v2911 = vsel %vm2907, %v2895, %v2910
    %v2912 = vsel %vm2906, %v2909, %v2911
    %v2913 = vsel %vm2905, %v2892, %v2895
    %v2914 = vsel %vm2908, %v2901, 920167782
    %v2915 = vsel %vm2907, %v2898, %v2914
    %v2916 = vsel %vm2906, %v2913, %v2915
    %v2917 = vsel %vm2905, %v2895, %v2898
    %v2918 = vsel %vm2908, %v2904, 1326507024
    %v2919 = vsel %vm2907, %v2901, %v2918
    %v2920 = vsel %vm2906, %v2917, %v2919
    %v2921 = vshll.u32 %v2881, 8
    %v2922 = vmul.u32.u64.compose %v2921, %v2920
    %v2923 = vextract.low.u32 %v2922
    %v2924 = vextract.high.u32 %v2922
    %v2925 = vmul.u32.u64.compose %v2921, %v2916
    %v2926 = vextract.low.u32 %v2925
    %v2927 = vextract.high.u32 %v2925
    %v2928 = vmul.u32 %v2921, %v2912
    %v2929 = vadd.s32 %v2924, %v2926
    %vm2930 = vc.u32 %v2924, %v2926
    %v2931 = vadd.s32 %v2927, 1
    %v2932 = vsel %vm2930, %v2931, %v2927
    %v2933 = vadd.s32 %v2928, %v2932
    %v2934 = vadd.s32 %v2933, 536870912
    %v2935 = vshrl.u32 %v2934, 30
    %v2936 = vshll.u32 %v2935, 30
    %v2937 = vsub.s32 %v2933, %v2936
    %vm2938 = vcmp.lt.s32.totalorder %v2937, 0
    %v2939 = vsub.s32 0, %v2937
    %v2940 = vsel %vm2938, %v2939, %v2937
    %v2941 = vclz %v2940
    %v2942 = vsub.s32 %v2941, 2
    %vm2943 = vcmp.gt.s32.totalorder 0, %v2942
    %v2944 = vsel %vm2943, 0, %v2942
    %v2945 = vsub.s32 32, %v2944
    %v2946 = vshll.u32 %v2937, %v2944
    %v2947 = vshrl.u32 %v2929, %v2945
    %v2948 = vor.u32 %v2946, %v2947
    %v2949 = vsub.s32 4294967266, %v2944
    %v2950 = vadd.s32 %v2949, 127
    %v2951 = vshll.u32 %v2950, 23
    %v2952 = vor.u32 4788187, %v2951
    %v2953 = vand.u32 2147483647, %v2952
    %v2955 = vcvt.s32.f32 %v2948
    %v2956 = vmul.f32 %v2955, %v2953
    %v2957 = vxor.u32 %v2956, 2147483648
    %v2958 = vsel %vm2875, %v2957, %v2956
    %v2959 = vsub.s32 4, %v2935
    %v2960 = vsel %vm2875, %v2959, %v2935
    %v2961 = vsel %vm2874, %v339, %v2958
    %v2962 = vsel %vm2874, 0, %v2960
    %v2963 = vcosq.f32.pop %v2961
    %v2964 = vsinq.f32.pop %v2961
    %vm2965 = vweird.f32 %v339
    %v2966 = vadd.s32 %v2962, 3
    %v2967 = vand.u32 %v2966, 3
    %vm2968 = vcmp.lt.s32.totalorder %v2967, 2
    %vm2969 = vcmp.eq.s32.totalorder %v2967, 0
    %v2970 = vxor.u32 %v2964, 2147483648
    %v2971 = vsel %vm2969, %v2963, %v2970
    %vm2972 = vcmp.eq.s32.totalorder %v2967, 2
    %v2973 = vxor.u32 %v2963, 2147483648
    %v2974 = vsel %vm2972, %v2973, %v2964
    %v2975 = vsel %vm2968, %v2971, %v2974
    %v2976 = vsel %vm2965, nan, %v2975
    %v2977 = vand.u32 2147483647, %v344
    %vm2978 = vcmp.le.f32.partialorder %v2977, 0.7853982
    %vm2979 = vcmp.lt.s32.totalorder %v344, 0
    %v2980 = vand.u32 %v344, 2139095040
    %v2981 = vshrl.u32 %v2980, 23
    %v2982 = vsub.s32 %v2981, 127
    %v2983 = vand.u32 2147483647, %v344
    %v2984 = vand.u32 %v2983, 8388607
    %v2985 = vor.u32 %v2984, 8388608
    %v2986 = vsub.s32 0, %v2985
    %v2987 = vadd.s32 %v2982, 1
    %vm2988 = vcmp.gt.s32.totalorder %v2987, 0
    %v2989 = vsel %vm2988, %v2987, 0
    %v2990 = vshrl.u32 %v2989, 5
    %v2991 = vand.u32 %v2989, 31
    %v2992 = vsub.s32 32, %v2991
    %v2993 = vshrl.u32 683565275, %v2992
    %v2994 = vshll.u32 683565275, %v2991
    %v2995 = vshrl.u32 2475754826, %v2992
    %v2996 = vor.u32 %v2994, %v2995
    %v2997 = vshll.u32 2475754826, %v2991
    %v2998 = vshrl.u32 2131351028, %v2992
    %v2999 = vor.u32 %v2997, %v2998
    %v3000 = vshll.u32 2131351028, %v2991
    %v3001 = vshrl.u32 2102212464, %v2992
    %v3002 = vor.u32 %v3000, %v3001
    %v3003 = vshll.u32 2102212464, %v2991
    %v3004 = vshrl.u32 920167782, %v2992
    %v3005 = vor.u32 %v3003, %v3004
    %v3006 = vshll.u32 920167782, %v2991
    %v3007 = vshrl.u32 1326507024, %v2992
    %v3008 = vor.u32 %v3006, %v3007
    %vm3009 = vcmp.lt.s32.totalorder %v2990, 1
    %vm3010 = vcmp.lt.s32.totalorder %v2990, 2
    %vm3011 = vcmp.lt.s32.totalorder %v2990, 3
    %vm3012 = vcmp.lt.s32.totalorder %v2990, 4
    %v3013 = vsel %vm3009, %v2993, %v2996
    %v3014 = vsel %vm3012, %v3002, 2102212464
    %v3015 = vsel %vm3011, %v2999, %v3014
    %v3016 = vsel %vm3010, %v3013, %v3015
    %v3017 = vsel %vm3009, %v2996, %v2999
    %v3018 = vsel %vm3012, %v3005, 920167782
    %v3019 = vsel %vm3011, %v3002, %v3018
    %v3020 = vsel %vm3010, %v3017, %v3019
    %v3021 = vsel %vm3009, %v2999, %v3002
    %v3022 = vsel %vm3012, %v3008, 1326507024
    %v3023 = vsel %vm3011, %v3005, %v3022
    %v3024 = vsel %vm3010, %v3021, %v3023
    %v3025 = vshll.u32 %v2985, 8
    %v3026 = vmul.u32.u64.compose %v3025, %v3024
    %v3027 = vextract.low.u32 %v3026
    %v3028 = vextract.high.u32 %v3026
    %v3029 = vmul.u32.u64.compose %v3025, %v3020
    %v3030 = vextract.low.u32 %v3029
    %v3031 = vextract.high.u32 %v3029
    %v3032 = vmul.u32 %v3025, %v3016
    %v3033 = vadd.s32 %v3028, %v3030
    %vm3034 = vc.u32 %v3028, %v3030
    %v3035 = vadd.s32 %v3031, 1
    %v3036 = vsel %vm3034, %v3035, %v3031
    %v3037 = vadd.s32 %v3032, %v3036
    %v3038 = vadd.s32 %v3037, 536870912
    %v3039 = vshrl.u32 %v3038, 30
    %v3040 = vshll.u32 %v3039, 30
    %v3041 = vsub.s32 %v3037, %v3040
    %vm3042 = vcmp.lt.s32.totalorder %v3041, 0
    %v3043 = vsub.s32 0, %v3041
    %v3044 = vsel %vm3042, %v3043, %v3041
    %v3045 = vclz %v3044
    %v3046 = vsub.s32 %v3045, 2
    %vm3047 = vcmp.gt.s32.totalorder 0, %v3046
    %v3048 = vsel %vm3047, 0, %v3046
    %v3049 = vsub.s32 32, %v3048
    %v3050 = vshll.u32 %v3041, %v3048
    %v3051 = vshrl.u32 %v3033, %v3049
    %v3052 = vor.u32 %v3050, %v3051
    %v3053 = vsub.s32 4294967266, %v3048
    %v3054 = vadd.s32 %v3053, 127
    %v3055 = vshll.u32 %v3054, 23
    %v3056 = vor.u32 4788187, %v3055
    %v3057 = vand.u32 2147483647, %v3056
    %v3059 = vcvt.s32.f32 %v3052
    %v3060 = vmul.f32 %v3059, %v3057
    %v3061 = vxor.u32 %v3060, 2147483648
    %v3062 = vsel %vm2979, %v3061, %v3060
    %v3063 = vsub.s32 4, %v3039
    %v3064 = vsel %vm2979, %v3063, %v3039
    %v3065 = vsel %vm2978, %v344, %v3062
    %v3066 = vsel %vm2978, 0, %v3064
    %v3067 = vcosq.f32.pop %v3065
    %v3068 = vsinq.f32.pop %v3065
    %vm3069 = vweird.f32 %v344
    %v3070 = vadd.s32 %v3066, 3
    %v3071 = vand.u32 %v3070, 3
    %vm3072 = vcmp.lt.s32.totalorder %v3071, 2
    %vm3073 = vcmp.eq.s32.totalorder %v3071, 0
    %v3074 = vxor.u32 %v3068, 2147483648
    %v3075 = vsel %vm3073, %v3067, %v3074
    %vm3076 = vcmp.eq.s32.totalorder %v3071, 2
    %v3077 = vxor.u32 %v3067, 2147483648
    %v3078 = vsel %vm3076, %v3077, %v3068
    %v3079 = vsel %vm3072, %v3075, %v3078
    %v3080 = vsel %vm3069, nan, %v3079
    %v3081 = vand.u32 2147483647, %v349
    %vm3082 = vcmp.le.f32.partialorder %v3081, 0.7853982
    %vm3083 = vcmp.lt.s32.totalorder %v349, 0
    %v3084 = vand.u32 %v349, 2139095040
    %v3085 = vshrl.u32 %v3084, 23
    %v3086 = vsub.s32 %v3085, 127
    %v3087 = vand.u32 2147483647, %v349
    %v3088 = vand.u32 %v3087, 8388607
    %v3089 = vor.u32 %v3088, 8388608
    %v3090 = vsub.s32 0, %v3089
    %v3091 = vadd.s32 %v3086, 1
    %vm3092 = vcmp.gt.s32.totalorder %v3091, 0
    %v3093 = vsel %vm3092, %v3091, 0
    %v3094 = vshrl.u32 %v3093, 5
    %v3095 = vand.u32 %v3093, 31
    %v3096 = vsub.s32 32, %v3095
    %v3097 = vshrl.u32 683565275, %v3096
    %v3098 = vshll.u32 683565275, %v3095
    %v3099 = vshrl.u32 2475754826, %v3096
    %v3100 = vor.u32 %v3098, %v3099
    %v3101 = vshll.u32 2475754826, %v3095
    %v3102 = vshrl.u32 2131351028, %v3096
    %v3103 = vor.u32 %v3101, %v3102
    %v3104 = vshll.u32 2131351028, %v3095
    %v3105 = vshrl.u32 2102212464, %v3096
    %v3106 = vor.u32 %v3104, %v3105
    %v3107 = vshll.u32 2102212464, %v3095
    %v3108 = vshrl.u32 920167782, %v3096
    %v3109 = vor.u32 %v3107, %v3108
    %v3110 = vshll.u32 920167782, %v3095
    %v3111 = vshrl.u32 1326507024, %v3096
    %v3112 = vor.u32 %v3110, %v3111
    %vm3113 = vcmp.lt.s32.totalorder %v3094, 1
    %vm3114 = vcmp.lt.s32.totalorder %v3094, 2
    %vm3115 = vcmp.lt.s32.totalorder %v3094, 3
    %vm3116 = vcmp.lt.s32.totalorder %v3094, 4
    %v3117 = vsel %vm3113, %v3097, %v3100
    %v3118 = vsel %vm3116, %v3106, 2102212464
    %v3119 = vsel %vm3115, %v3103, %v3118
    %v3120 = vsel %vm3114, %v3117, %v3119
    %v3121 = vsel %vm3113, %v3100, %v3103
    %v3122 = vsel %vm3116, %v3109, 920167782
    %v3123 = vsel %vm3115, %v3106, %v3122
    %v3124 = vsel %vm3114, %v3121, %v3123
    %v3125 = vsel %vm3113, %v3103, %v3106
    %v3126 = vsel %vm3116, %v3112, 1326507024
    %v3127 = vsel %vm3115, %v3109, %v3126
    %v3128 = vsel %vm3114, %v3125, %v3127
    %v3129 = vshll.u32 %v3089, 8
    %v3130 = vmul.u32.u64.compose %v3129, %v3128
    %v3131 = vextract.low.u32 %v3130
    %v3132 = vextract.high.u32 %v3130
    %v3133 = vmul.u32.u64.compose %v3129, %v3124
    %v3134 = vextract.low.u32 %v3133
    %v3135 = vextract.high.u32 %v3133
    %v3136 = vmul.u32 %v3129, %v3120
    %v3137 = vadd.s32 %v3132, %v3134
    %vm3138 = vc.u32 %v3132, %v3134
    %v3139 = vadd.s32 %v3135, 1
    %v3140 = vsel %vm3138, %v3139, %v3135
    %v3141 = vadd.s32 %v3136, %v3140
    %v3142 = vadd.s32 %v3141, 536870912
    %v3143 = vshrl.u32 %v3142, 30
    %v3144 = vshll.u32 %v3143, 30
    %v3145 = vsub.s32 %v3141, %v3144
    %vm3146 = vcmp.lt.s32.totalorder %v3145, 0
    %v3147 = vsub.s32 0, %v3145
    %v3148 = vsel %vm3146, %v3147, %v3145
    %v3149 = vclz %v3148
    %v3150 = vsub.s32 %v3149, 2
    %vm3151 = vcmp.gt.s32.totalorder 0, %v3150
    %v3152 = vsel %vm3151, 0, %v3150
    %v3153 = vsub.s32 32, %v3152
    %v3154 = vshll.u32 %v3145, %v3152
    %v3155 = vshrl.u32 %v3137, %v3153
    %v3156 = vor.u32 %v3154, %v3155
    %v3157 = vsub.s32 4294967266, %v3152
    %v3158 = vadd.s32 %v3157, 127
    %v3159 = vshll.u32 %v3158, 23
    %v3160 = vor.u32 4788187, %v3159
    %v3161 = vand.u32 2147483647, %v3160
    %v3163 = vcvt.s32.f32 %v3156
    %v3164 = vmul.f32 %v3163, %v3161
    %v3165 = vxor.u32 %v3164, 2147483648
    %v3166 = vsel %vm3083, %v3165, %v3164
    %v3167 = vsub.s32 4, %v3143
    %v3168 = vsel %vm3083, %v3167, %v3143
    %v3169 = vsel %vm3082, %v349, %v3166
    %v3170 = vsel %vm3082, 0, %v3168
    %v3171 = vcosq.f32.pop %v3169
    %v3172 = vsinq.f32.pop %v3169
    %vm3173 = vweird.f32 %v349
    %v3174 = vadd.s32 %v3170, 3
    %v3175 = vand.u32 %v3174, 3
    %vm3176 = vcmp.lt.s32.totalorder %v3175, 2
    %vm3177 = vcmp.eq.s32.totalorder %v3175, 0
    %v3178 = vxor.u32 %v3172, 2147483648
    %v3179 = vsel %vm3177, %v3171, %v3178
    %vm3180 = vcmp.eq.s32.totalorder %v3175, 2
    %v3181 = vxor.u32 %v3171, 2147483648
    %v3182 = vsel %vm3180, %v3181, %v3172
    %v3183 = vsel %vm3176, %v3179, %v3182
    %v3184 = vsel %vm3173, nan, %v3183
    %v3185 = vand.u32 2147483647, %v354
    %vm3186 = vcmp.le.f32.partialorder %v3185, 0.7853982
    %vm3187 = vcmp.lt.s32.totalorder %v354, 0
    %v3188 = vand.u32 %v354, 2139095040
    %v3189 = vshrl.u32 %v3188, 23
    %v3190 = vsub.s32 %v3189, 127
    %v3191 = vand.u32 2147483647, %v354
    %v3192 = vand.u32 %v3191, 8388607
    %v3193 = vor.u32 %v3192, 8388608
    %v3194 = vsub.s32 0, %v3193
    %v3195 = vadd.s32 %v3190, 1
    %vm3196 = vcmp.gt.s32.totalorder %v3195, 0
    %v3197 = vsel %vm3196, %v3195, 0
    %v3198 = vshrl.u32 %v3197, 5
    %v3199 = vand.u32 %v3197, 31
    %v3200 = vsub.s32 32, %v3199
    %v3201 = vshrl.u32 683565275, %v3200
    %v3202 = vshll.u32 683565275, %v3199
    %v3203 = vshrl.u32 2475754826, %v3200
    %v3204 = vor.u32 %v3202, %v3203
    %v3205 = vshll.u32 2475754826, %v3199
    %v3206 = vshrl.u32 2131351028, %v3200
    %v3207 = vor.u32 %v3205, %v3206
    %v3208 = vshll.u32 2131351028, %v3199
    %v3209 = vshrl.u32 2102212464, %v3200
    %v3210 = vor.u32 %v3208, %v3209
    %v3211 = vshll.u32 2102212464, %v3199
    %v3212 = vshrl.u32 920167782, %v3200
    %v3213 = vor.u32 %v3211, %v3212
    %v3214 = vshll.u32 920167782, %v3199
    %v3215 = vshrl.u32 1326507024, %v3200
    %v3216 = vor.u32 %v3214, %v3215
    %vm3217 = vcmp.lt.s32.totalorder %v3198, 1
    %vm3218 = vcmp.lt.s32.totalorder %v3198, 2
    %vm3219 = vcmp.lt.s32.totalorder %v3198, 3
    %vm3220 = vcmp.lt.s32.totalorder %v3198, 4
    %v3221 = vsel %vm3217, %v3201, %v3204
    %v3222 = vsel %vm3220, %v3210, 2102212464
    %v3223 = vsel %vm3219, %v3207, %v3222
    %v3224 = vsel %vm3218, %v3221, %v3223
    %v3225 = vsel %vm3217, %v3204, %v3207
    %v3226 = vsel %vm3220, %v3213, 920167782
    %v3227 = vsel %vm3219, %v3210, %v3226
    %v3228 = vsel %vm3218, %v3225, %v3227
    %v3229 = vsel %vm3217, %v3207, %v3210
    %v3230 = vsel %vm3220, %v3216, 1326507024
    %v3231 = vsel %vm3219, %v3213, %v3230
    %v3232 = vsel %vm3218, %v3229, %v3231
    %v3233 = vshll.u32 %v3193, 8
    %v3234 = vmul.u32.u64.compose %v3233, %v3232
    %v3235 = vextract.low.u32 %v3234
    %v3236 = vextract.high.u32 %v3234
    %v3237 = vmul.u32.u64.compose %v3233, %v3228
    %v3238 = vextract.low.u32 %v3237
    %v3239 = vextract.high.u32 %v3237
    %v3240 = vmul.u32 %v3233, %v3224
    %v3241 = vadd.s32 %v3236, %v3238
    %vm3242 = vc.u32 %v3236, %v3238
    %v3243 = vadd.s32 %v3239, 1
    %v3244 = vsel %vm3242, %v3243, %v3239
    %v3245 = vadd.s32 %v3240, %v3244
    %v3246 = vadd.s32 %v3245, 536870912
    %v3247 = vshrl.u32 %v3246, 30
    %v3248 = vshll.u32 %v3247, 30
    %v3249 = vsub.s32 %v3245, %v3248
    %vm3250 = vcmp.lt.s32.totalorder %v3249, 0
    %v3251 = vsub.s32 0, %v3249
    %v3252 = vsel %vm3250, %v3251, %v3249
    %v3253 = vclz %v3252
    %v3254 = vsub.s32 %v3253, 2
    %vm3255 = vcmp.gt.s32.totalorder 0, %v3254
    %v3256 = vsel %vm3255, 0, %v3254
    %v3257 = vsub.s32 32, %v3256
    %v3258 = vshll.u32 %v3249, %v3256
    %v3259 = vshrl.u32 %v3241, %v3257
    %v3260 = vor.u32 %v3258, %v3259
    %v3261 = vsub.s32 4294967266, %v3256
    %v3262 = vadd.s32 %v3261, 127
    %v3263 = vshll.u32 %v3262, 23
    %v3264 = vor.u32 4788187, %v3263
    %v3265 = vand.u32 2147483647, %v3264
    %v3267 = vcvt.s32.f32 %v3260
    %v3268 = vmul.f32 %v3267, %v3265
    %v3269 = vxor.u32 %v3268, 2147483648
    %v3270 = vsel %vm3187, %v3269, %v3268
    %v3271 = vsub.s32 4, %v3247
    %v3272 = vsel %vm3187, %v3271, %v3247
    %v3273 = vsel %vm3186, %v354, %v3270
    %v3274 = vsel %vm3186, 0, %v3272
    %v3275 = vcosq.f32.pop %v3273
    %v3276 = vsinq.f32.pop %v3273
    %vm3277 = vweird.f32 %v354
    %v3278 = vadd.s32 %v3274, 3
    %v3279 = vand.u32 %v3278, 3
    %vm3280 = vcmp.lt.s32.totalorder %v3279, 2
    %vm3281 = vcmp.eq.s32.totalorder %v3279, 0
    %v3282 = vxor.u32 %v3276, 2147483648
    %v3283 = vsel %vm3281, %v3275, %v3282
    %vm3284 = vcmp.eq.s32.totalorder %v3279, 2
    %v3285 = vxor.u32 %v3275, 2147483648
    %v3286 = vsel %vm3284, %v3285, %v3276
    %v3287 = vsel %vm3280, %v3283, %v3286
    %v3288 = vsel %vm3277, nan, %v3287
    %v3289 = vand.u32 2147483647, %v359
    %vm3290 = vcmp.le.f32.partialorder %v3289, 0.7853982
    %vm3291 = vcmp.lt.s32.totalorder %v359, 0
    %v3292 = vand.u32 %v359, 2139095040
    %v3293 = vshrl.u32 %v3292, 23
    %v3294 = vsub.s32 %v3293, 127
    %v3295 = vand.u32 2147483647, %v359
    %v3296 = vand.u32 %v3295, 8388607
    %v3297 = vor.u32 %v3296, 8388608
    %v3298 = vsub.s32 0, %v3297
    %v3299 = vadd.s32 %v3294, 1
    %vm3300 = vcmp.gt.s32.totalorder %v3299, 0
    %v3301 = vsel %vm3300, %v3299, 0
    %v3302 = vshrl.u32 %v3301, 5
    %v3303 = vand.u32 %v3301, 31
    %v3304 = vsub.s32 32, %v3303
    %v3305 = vshrl.u32 683565275, %v3304
    %v3306 = vshll.u32 683565275, %v3303
    %v3307 = vshrl.u32 2475754826, %v3304
    %v3308 = vor.u32 %v3306, %v3307
    %v3309 = vshll.u32 2475754826, %v3303
    %v3310 = vshrl.u32 2131351028, %v3304
    %v3311 = vor.u32 %v3309, %v3310
    %v3312 = vshll.u32 2131351028, %v3303
    %v3313 = vshrl.u32 2102212464, %v3304
    %v3314 = vor.u32 %v3312, %v3313
    %v3315 = vshll.u32 2102212464, %v3303
    %v3316 = vshrl.u32 920167782, %v3304
    %v3317 = vor.u32 %v3315, %v3316
    %v3318 = vshll.u32 920167782, %v3303
    %v3319 = vshrl.u32 1326507024, %v3304
    %v3320 = vor.u32 %v3318, %v3319
    %vm3321 = vcmp.lt.s32.totalorder %v3302, 1
    %vm3322 = vcmp.lt.s32.totalorder %v3302, 2
    %vm3323 = vcmp.lt.s32.totalorder %v3302, 3
    %vm3324 = vcmp.lt.s32.totalorder %v3302, 4
    %v3325 = vsel %vm3321, %v3305, %v3308
    %v3326 = vsel %vm3324, %v3314, 2102212464
    %v3327 = vsel %vm3323, %v3311, %v3326
    %v3328 = vsel %vm3322, %v3325, %v3327
    %v3329 = vsel %vm3321, %v3308, %v3311
    %v3330 = vsel %vm3324, %v3317, 920167782
    %v3331 = vsel %vm3323, %v3314, %v3330
    %v3332 = vsel %vm3322, %v3329, %v3331
    %v3333 = vsel %vm3321, %v3311, %v3314
    %v3334 = vsel %vm3324, %v3320, 1326507024
    %v3335 = vsel %vm3323, %v3317, %v3334
    %v3336 = vsel %vm3322, %v3333, %v3335
    %v3337 = vshll.u32 %v3297, 8
    %v3338 = vmul.u32.u64.compose %v3337, %v3336
    %v3339 = vextract.low.u32 %v3338
    %v3340 = vextract.high.u32 %v3338
    %v3341 = vmul.u32.u64.compose %v3337, %v3332
    %v3342 = vextract.low.u32 %v3341
    %v3343 = vextract.high.u32 %v3341
    %v3344 = vmul.u32 %v3337, %v3328
    %v3345 = vadd.s32 %v3340, %v3342
    %vm3346 = vc.u32 %v3340, %v3342
    %v3347 = vadd.s32 %v3343, 1
    %v3348 = vsel %vm3346, %v3347, %v3343
    %v3349 = vadd.s32 %v3344, %v3348
    %v3350 = vadd.s32 %v3349, 536870912
    %v3351 = vshrl.u32 %v3350, 30
    %v3352 = vshll.u32 %v3351, 30
    %v3353 = vsub.s32 %v3349, %v3352
    %vm3354 = vcmp.lt.s32.totalorder %v3353, 0
    %v3355 = vsub.s32 0, %v3353
    %v3356 = vsel %vm3354, %v3355, %v3353
    %v3357 = vclz %v3356
    %v3358 = vsub.s32 %v3357, 2
    %vm3359 = vcmp.gt.s32.totalorder 0, %v3358
    %v3360 = vsel %vm3359, 0, %v3358
    %v3361 = vsub.s32 32, %v3360
    %v3362 = vshll.u32 %v3353, %v3360
    %v3363 = vshrl.u32 %v3345, %v3361
    %v3364 = vor.u32 %v3362, %v3363
    %v3365 = vsub.s32 4294967266, %v3360
    %v3366 = vadd.s32 %v3365, 127
    %v3367 = vshll.u32 %v3366, 23
    %v3368 = vor.u32 4788187, %v3367
    %v3369 = vand.u32 2147483647, %v3368
    %v3371 = vcvt.s32.f32 %v3364
    %v3372 = vmul.f32 %v3371, %v3369
    %v3373 = vxor.u32 %v3372, 2147483648
    %v3374 = vsel %vm3291, %v3373, %v3372
    %v3375 = vsub.s32 4, %v3351
    %v3376 = vsel %vm3291, %v3375, %v3351
    %v3377 = vsel %vm3290, %v359, %v3374
    %v3378 = vsel %vm3290, 0, %v3376
    %v3379 = vcosq.f32.pop %v3377
    %v3380 = vsinq.f32.pop %v3377
    %vm3381 = vweird.f32 %v359
    %v3382 = vadd.s32 %v3378, 3
    %v3383 = vand.u32 %v3382, 3
    %vm3384 = vcmp.lt.s32.totalorder %v3383, 2
    %vm3385 = vcmp.eq.s32.totalorder %v3383, 0
    %v3386 = vxor.u32 %v3380, 2147483648
    %v3387 = vsel %vm3385, %v3379, %v3386
    %vm3388 = vcmp.eq.s32.totalorder %v3383, 2
    %v3389 = vxor.u32 %v3379, 2147483648
    %v3390 = vsel %vm3388, %v3389, %v3380
    %v3391 = vsel %vm3384, %v3387, %v3390
    %v3392 = vsel %vm3381, nan, %v3391
    %v3393 = vand.u32 2147483647, %v364
    %vm3394 = vcmp.le.f32.partialorder %v3393, 0.7853982
    %vm3395 = vcmp.lt.s32.totalorder %v364, 0
    %v3396 = vand.u32 %v364, 2139095040
    %v3397 = vshrl.u32 %v3396, 23
    %v3398 = vsub.s32 %v3397, 127
    %v3399 = vand.u32 2147483647, %v364
    %v3400 = vand.u32 %v3399, 8388607
    %v3401 = vor.u32 %v3400, 8388608
    %v3402 = vsub.s32 0, %v3401
    %v3403 = vadd.s32 %v3398, 1
    %vm3404 = vcmp.gt.s32.totalorder %v3403, 0
    %v3405 = vsel %vm3404, %v3403, 0
    %v3406 = vshrl.u32 %v3405, 5
    %v3407 = vand.u32 %v3405, 31
    %v3408 = vsub.s32 32, %v3407
    %v3409 = vshrl.u32 683565275, %v3408
    %v3410 = vshll.u32 683565275, %v3407
    %v3411 = vshrl.u32 2475754826, %v3408
    %v3412 = vor.u32 %v3410, %v3411
    %v3413 = vshll.u32 2475754826, %v3407
    %v3414 = vshrl.u32 2131351028, %v3408
    %v3415 = vor.u32 %v3413, %v3414
    %v3416 = vshll.u32 2131351028, %v3407
    %v3417 = vshrl.u32 2102212464, %v3408
    %v3418 = vor.u32 %v3416, %v3417
    %v3419 = vshll.u32 2102212464, %v3407
    %v3420 = vshrl.u32 920167782, %v3408
    %v3421 = vor.u32 %v3419, %v3420
    %v3422 = vshll.u32 920167782, %v3407
    %v3423 = vshrl.u32 1326507024, %v3408
    %v3424 = vor.u32 %v3422, %v3423
    %vm3425 = vcmp.lt.s32.totalorder %v3406, 1
    %vm3426 = vcmp.lt.s32.totalorder %v3406, 2
    %vm3427 = vcmp.lt.s32.totalorder %v3406, 3
    %vm3428 = vcmp.lt.s32.totalorder %v3406, 4
    %v3429 = vsel %vm3425, %v3409, %v3412
    %v3430 = vsel %vm3428, %v3418, 2102212464
    %v3431 = vsel %vm3427, %v3415, %v3430
    %v3432 = vsel %vm3426, %v3429, %v3431
    %v3433 = vsel %vm3425, %v3412, %v3415
    %v3434 = vsel %vm3428, %v3421, 920167782
    %v3435 = vsel %vm3427, %v3418, %v3434
    %v3436 = vsel %vm3426, %v3433, %v3435
    %v3437 = vsel %vm3425, %v3415, %v3418
    %v3438 = vsel %vm3428, %v3424, 1326507024
    %v3439 = vsel %vm3427, %v3421, %v3438
    %v3440 = vsel %vm3426, %v3437, %v3439
    %v3441 = vshll.u32 %v3401, 8
    %v3442 = vmul.u32.u64.compose %v3441, %v3440
    %v3443 = vextract.low.u32 %v3442
    %v3444 = vextract.high.u32 %v3442
    %v3445 = vmul.u32.u64.compose %v3441, %v3436
    %v3446 = vextract.low.u32 %v3445
    %v3447 = vextract.high.u32 %v3445
    %v3448 = vmul.u32 %v3441, %v3432
    %v3449 = vadd.s32 %v3444, %v3446
    %vm3450 = vc.u32 %v3444, %v3446
    %v3451 = vadd.s32 %v3447, 1
    %v3452 = vsel %vm3450, %v3451, %v3447
    %v3453 = vadd.s32 %v3448, %v3452
    %v3454 = vadd.s32 %v3453, 536870912
    %v3455 = vshrl.u32 %v3454, 30
    %v3456 = vshll.u32 %v3455, 30
    %v3457 = vsub.s32 %v3453, %v3456
    %vm3458 = vcmp.lt.s32.totalorder %v3457, 0
    %v3459 = vsub.s32 0, %v3457
    %v3460 = vsel %vm3458, %v3459, %v3457
    %v3461 = vclz %v3460
    %v3462 = vsub.s32 %v3461, 2
    %vm3463 = vcmp.gt.s32.totalorder 0, %v3462
    %v3464 = vsel %vm3463, 0, %v3462
    %v3465 = vsub.s32 32, %v3464
    %v3466 = vshll.u32 %v3457, %v3464
    %v3467 = vshrl.u32 %v3449, %v3465
    %v3468 = vor.u32 %v3466, %v3467
    %v3469 = vsub.s32 4294967266, %v3464
    %v3470 = vadd.s32 %v3469, 127
    %v3471 = vshll.u32 %v3470, 23
    %v3472 = vor.u32 4788187, %v3471
    %v3473 = vand.u32 2147483647, %v3472
    %v3475 = vcvt.s32.f32 %v3468
    %v3476 = vmul.f32 %v3475, %v3473
    %v3477 = vxor.u32 %v3476, 2147483648
    %v3478 = vsel %vm3395, %v3477, %v3476
    %v3479 = vsub.s32 4, %v3455
    %v3480 = vsel %vm3395, %v3479, %v3455
    %v3481 = vsel %vm3394, %v364, %v3478
    %v3482 = vsel %vm3394, 0, %v3480
    %v3483 = vcosq.f32.pop %v3481
    %v3484 = vsinq.f32.pop %v3481
    %vm3485 = vweird.f32 %v364
    %v3486 = vadd.s32 %v3482, 3
    %v3487 = vand.u32 %v3486, 3
    %vm3488 = vcmp.lt.s32.totalorder %v3487, 2
    %vm3489 = vcmp.eq.s32.totalorder %v3487, 0
    %v3490 = vxor.u32 %v3484, 2147483648
    %v3491 = vsel %vm3489, %v3483, %v3490
    %vm3492 = vcmp.eq.s32.totalorder %v3487, 2
    %v3493 = vxor.u32 %v3483, 2147483648
    %v3494 = vsel %vm3492, %v3493, %v3484
    %v3495 = vsel %vm3488, %v3491, %v3494
    %v3496 = vsel %vm3485, nan, %v3495
    %v3497 = vand.u32 2147483647, %v369
    %vm3498 = vcmp.le.f32.partialorder %v3497, 0.7853982
    %vm3499 = vcmp.lt.s32.totalorder %v369, 0
    %v3500 = vand.u32 %v369, 2139095040
    %v3501 = vshrl.u32 %v3500, 23
    %v3502 = vsub.s32 %v3501, 127
    %v3503 = vand.u32 2147483647, %v369
    %v3504 = vand.u32 %v3503, 8388607
    %v3505 = vor.u32 %v3504, 8388608
    %v3506 = vsub.s32 0, %v3505
    %v3507 = vadd.s32 %v3502, 1
    %vm3508 = vcmp.gt.s32.totalorder %v3507, 0
    %v3509 = vsel %vm3508, %v3507, 0
    %v3510 = vshrl.u32 %v3509, 5
    %v3511 = vand.u32 %v3509, 31
    %v3512 = vsub.s32 32, %v3511
    %v3513 = vshrl.u32 683565275, %v3512
    %v3514 = vshll.u32 683565275, %v3511
    %v3515 = vshrl.u32 2475754826, %v3512
    %v3516 = vor.u32 %v3514, %v3515
    %v3517 = vshll.u32 2475754826, %v3511
    %v3518 = vshrl.u32 2131351028, %v3512
    %v3519 = vor.u32 %v3517, %v3518
    %v3520 = vshll.u32 2131351028, %v3511
    %v3521 = vshrl.u32 2102212464, %v3512
    %v3522 = vor.u32 %v3520, %v3521
    %v3523 = vshll.u32 2102212464, %v3511
    %v3524 = vshrl.u32 920167782, %v3512
    %v3525 = vor.u32 %v3523, %v3524
    %v3526 = vshll.u32 920167782, %v3511
    %v3527 = vshrl.u32 1326507024, %v3512
    %v3528 = vor.u32 %v3526, %v3527
    %vm3529 = vcmp.lt.s32.totalorder %v3510, 1
    %vm3530 = vcmp.lt.s32.totalorder %v3510, 2
    %vm3531 = vcmp.lt.s32.totalorder %v3510, 3
    %vm3532 = vcmp.lt.s32.totalorder %v3510, 4
    %v3533 = vsel %vm3529, %v3513, %v3516
    %v3534 = vsel %vm3532, %v3522, 2102212464
    %v3535 = vsel %vm3531, %v3519, %v3534
    %v3536 = vsel %vm3530, %v3533, %v3535
    %v3537 = vsel %vm3529, %v3516, %v3519
    %v3538 = vsel %vm3532, %v3525, 920167782
    %v3539 = vsel %vm3531, %v3522, %v3538
    %v3540 = vsel %vm3530, %v3537, %v3539
    %v3541 = vsel %vm3529, %v3519, %v3522
    %v3542 = vsel %vm3532, %v3528, 1326507024
    %v3543 = vsel %vm3531, %v3525, %v3542
    %v3544 = vsel %vm3530, %v3541, %v3543
    %v3545 = vshll.u32 %v3505, 8
    %v3546 = vmul.u32.u64.compose %v3545, %v3544
    %v3547 = vextract.low.u32 %v3546
    %v3548 = vextract.high.u32 %v3546
    %v3549 = vmul.u32.u64.compose %v3545, %v3540
    %v3550 = vextract.low.u32 %v3549
    %v3551 = vextract.high.u32 %v3549
    %v3552 = vmul.u32 %v3545, %v3536
    %v3553 = vadd.s32 %v3548, %v3550
    %vm3554 = vc.u32 %v3548, %v3550
    %v3555 = vadd.s32 %v3551, 1
    %v3556 = vsel %vm3554, %v3555, %v3551
    %v3557 = vadd.s32 %v3552, %v3556
    %v3558 = vadd.s32 %v3557, 536870912
    %v3559 = vshrl.u32 %v3558, 30
    %v3560 = vshll.u32 %v3559, 30
    %v3561 = vsub.s32 %v3557, %v3560
    %vm3562 = vcmp.lt.s32.totalorder %v3561, 0
    %v3563 = vsub.s32 0, %v3561
    %v3564 = vsel %vm3562, %v3563, %v3561
    %v3565 = vclz %v3564
    %v3566 = vsub.s32 %v3565, 2
    %vm3567 = vcmp.gt.s32.totalorder 0, %v3566
    %v3568 = vsel %vm3567, 0, %v3566
    %v3569 = vsub.s32 32, %v3568
    %v3570 = vshll.u32 %v3561, %v3568
    %v3571 = vshrl.u32 %v3553, %v3569
    %v3572 = vor.u32 %v3570, %v3571
    %v3573 = vsub.s32 4294967266, %v3568
    %v3574 = vadd.s32 %v3573, 127
    %v3575 = vshll.u32 %v3574, 23
    %v3576 = vor.u32 4788187, %v3575
    %v3577 = vand.u32 2147483647, %v3576
    %v3579 = vcvt.s32.f32 %v3572
    %v3580 = vmul.f32 %v3579, %v3577
    %v3581 = vxor.u32 %v3580, 2147483648
    %v3582 = vsel %vm3499, %v3581, %v3580
    %v3583 = vsub.s32 4, %v3559
    %v3584 = vsel %vm3499, %v3583, %v3559
    %v3585 = vsel %vm3498, %v369, %v3582
    %v3586 = vsel %vm3498, 0, %v3584
    %v3587 = vcosq.f32.pop %v3585
    %v3588 = vsinq.f32.pop %v3585
    %vm3589 = vweird.f32 %v369
    %v3590 = vadd.s32 %v3586, 3
    %v3591 = vand.u32 %v3590, 3
    %vm3592 = vcmp.lt.s32.totalorder %v3591, 2
    %vm3593 = vcmp.eq.s32.totalorder %v3591, 0
    %v3594 = vxor.u32 %v3588, 2147483648
    %v3595 = vsel %vm3593, %v3587, %v3594
    %vm3596 = vcmp.eq.s32.totalorder %v3591, 2
    %v3597 = vxor.u32 %v3587, 2147483648
    %v3598 = vsel %vm3596, %v3597, %v3588
    %v3599 = vsel %vm3592, %v3595, %v3598
    %v3600 = vsel %vm3589, nan, %v3599
    %v3601 = vand.u32 2147483647, %v374
    %vm3602 = vcmp.le.f32.partialorder %v3601, 0.7853982
    %vm3603 = vcmp.lt.s32.totalorder %v374, 0
    %v3604 = vand.u32 %v374, 2139095040
    %v3605 = vshrl.u32 %v3604, 23
    %v3606 = vsub.s32 %v3605, 127
    %v3607 = vand.u32 2147483647, %v374
    %v3608 = vand.u32 %v3607, 8388607
    %v3609 = vor.u32 %v3608, 8388608
    %v3610 = vsub.s32 0, %v3609
    %v3611 = vadd.s32 %v3606, 1
    %vm3612 = vcmp.gt.s32.totalorder %v3611, 0
    %v3613 = vsel %vm3612, %v3611, 0
    %v3614 = vshrl.u32 %v3613, 5
    %v3615 = vand.u32 %v3613, 31
    %v3616 = vsub.s32 32, %v3615
    %v3617 = vshrl.u32 683565275, %v3616
    %v3618 = vshll.u32 683565275, %v3615
    %v3619 = vshrl.u32 2475754826, %v3616
    %v3620 = vor.u32 %v3618, %v3619
    %v3621 = vshll.u32 2475754826, %v3615
    %v3622 = vshrl.u32 2131351028, %v3616
    %v3623 = vor.u32 %v3621, %v3622
    %v3624 = vshll.u32 2131351028, %v3615
    %v3625 = vshrl.u32 2102212464, %v3616
    %v3626 = vor.u32 %v3624, %v3625
    %v3627 = vshll.u32 2102212464, %v3615
    %v3628 = vshrl.u32 920167782, %v3616
    %v3629 = vor.u32 %v3627, %v3628
    %v3630 = vshll.u32 920167782, %v3615
    %v3631 = vshrl.u32 1326507024, %v3616
    %v3632 = vor.u32 %v3630, %v3631
    %vm3633 = vcmp.lt.s32.totalorder %v3614, 1
    %vm3634 = vcmp.lt.s32.totalorder %v3614, 2
    %vm3635 = vcmp.lt.s32.totalorder %v3614, 3
    %vm3636 = vcmp.lt.s32.totalorder %v3614, 4
    %v3637 = vsel %vm3633, %v3617, %v3620
    %v3638 = vsel %vm3636, %v3626, 2102212464
    %v3639 = vsel %vm3635, %v3623, %v3638
    %v3640 = vsel %vm3634, %v3637, %v3639
    %v3641 = vsel %vm3633, %v3620, %v3623
    %v3642 = vsel %vm3636, %v3629, 920167782
    %v3643 = vsel %vm3635, %v3626, %v3642
    %v3644 = vsel %vm3634, %v3641, %v3643
    %v3645 = vsel %vm3633, %v3623, %v3626
    %v3646 = vsel %vm3636, %v3632, 1326507024
    %v3647 = vsel %vm3635, %v3629, %v3646
    %v3648 = vsel %vm3634, %v3645, %v3647
    %v3649 = vshll.u32 %v3609, 8
    %v3650 = vmul.u32.u64.compose %v3649, %v3648
    %v3651 = vextract.low.u32 %v3650
    %v3652 = vextract.high.u32 %v3650
    %v3653 = vmul.u32.u64.compose %v3649, %v3644
    %v3654 = vextract.low.u32 %v3653
    %v3655 = vextract.high.u32 %v3653
    %v3656 = vmul.u32 %v3649, %v3640
    %v3657 = vadd.s32 %v3652, %v3654
    %vm3658 = vc.u32 %v3652, %v3654
    %v3659 = vadd.s32 %v3655, 1
    %v3660 = vsel %vm3658, %v3659, %v3655
    %v3661 = vadd.s32 %v3656, %v3660
    %v3662 = vadd.s32 %v3661, 536870912
    %v3663 = vshrl.u32 %v3662, 30
    %v3664 = vshll.u32 %v3663, 30
    %v3665 = vsub.s32 %v3661, %v3664
    %vm3666 = vcmp.lt.s32.totalorder %v3665, 0
    %v3667 = vsub.s32 0, %v3665
    %v3668 = vsel %vm3666, %v3667, %v3665
    %v3669 = vclz %v3668
    %v3670 = vsub.s32 %v3669, 2
    %vm3671 = vcmp.gt.s32.totalorder 0, %v3670
    %v3672 = vsel %vm3671, 0, %v3670
    %v3673 = vsub.s32 32, %v3672
    %v3674 = vshll.u32 %v3665, %v3672
    %v3675 = vshrl.u32 %v3657, %v3673
    %v3676 = vor.u32 %v3674, %v3675
    %v3677 = vsub.s32 4294967266, %v3672
    %v3678 = vadd.s32 %v3677, 127
    %v3679 = vshll.u32 %v3678, 23
    %v3680 = vor.u32 4788187, %v3679
    %v3681 = vand.u32 2147483647, %v3680
    %v3683 = vcvt.s32.f32 %v3676
    %v3684 = vmul.f32 %v3683, %v3681
    %v3685 = vxor.u32 %v3684, 2147483648
    %v3686 = vsel %vm3603, %v3685, %v3684
    %v3687 = vsub.s32 4, %v3663
    %v3688 = vsel %vm3603, %v3687, %v3663
    %v3689 = vsel %vm3602, %v374, %v3686
    %v3690 = vsel %vm3602, 0, %v3688
    %v3691 = vcosq.f32.pop %v3689
    %v3692 = vsinq.f32.pop %v3689
    %vm3693 = vweird.f32 %v374
    %v3694 = vadd.s32 %v3690, 3
    %v3695 = vand.u32 %v3694, 3
    %vm3696 = vcmp.lt.s32.totalorder %v3695, 2
    %vm3697 = vcmp.eq.s32.totalorder %v3695, 0
    %v3698 = vxor.u32 %v3692, 2147483648
    %v3699 = vsel %vm3697, %v3691, %v3698
    %vm3700 = vcmp.eq.s32.totalorder %v3695, 2
    %v3701 = vxor.u32 %v3691, 2147483648
    %v3702 = vsel %vm3700, %v3701, %v3692
    %v3703 = vsel %vm3696, %v3699, %v3702
    %v3704 = vsel %vm3693, nan, %v3703
    %3705 = vst [vmem:[#allocation2] sm:$0xff] %v480
    %3706 = vst [vmem:[#allocation2 + $0x8] sm:$0xff] %v584
    %3707 = vst [vmem:[#allocation2 + $0x10] sm:$0xff] %v688
    %3708 = vst [vmem:[#allocation2 + $0x18] sm:$0xff] %v792
    %3709 = vst [vmem:[#allocation2 + $0x20] sm:$0xff] %v896
    %3710 = vst [vmem:[#allocation2 + $0x28] sm:$0xff] %v1000
    %3711 = vst [vmem:[#allocation2 + $0x30] sm:$0xff] %v1104
    %3712 = vst [vmem:[#allocation2 + $0x38] sm:$0xff] %v1208
    %3713 = vst [vmem:[#allocation2 + $0x40] sm:$0xff] %v1312
    %3714 = vst [vmem:[#allocation2 + $0x48] sm:$0xff] %v1416
    %3715 = vst [vmem:[#allocation2 + $0x50] sm:$0xff] %v1520
    %3716 = vst [vmem:[#allocation2 + $0x58] sm:$0xff] %v1624
    %3717 = vst [vmem:[#allocation2 + $0x60] sm:$0xff] %v1728
    %3718 = vst [vmem:[#allocation2 + $0x68] sm:$0xff] %v1832
    %3719 = vst [vmem:[#allocation2 + $0x70] sm:$0xff] %v1936
    %3720 = vst [vmem:[#allocation2 + $0x78] sm:$0xff] %v2040
    %3721 = vst [vmem:[#allocation2 + $0x80] sm:$0xff] %v2144
    %3722 = vst [vmem:[#allocation2 + $0x88] sm:$0xff] %v2248
    %3723 = vst [vmem:[#allocation2 + $0x90] sm:$0xff] %v2352
    %3724 = vst [vmem:[#allocation2 + $0x98] sm:$0xff] %v2456
    %3725 = vst [vmem:[#allocation2 + $0xa0] sm:$0xff] %v2560
    %3726 = vst [vmem:[#allocation2 + $0xa8] sm:$0xff] %v2664
    %3727 = vst [vmem:[#allocation2 + $0xb0] sm:$0xff] %v2768
    %3728 = vst [vmem:[#allocation2 + $0xb8] sm:$0xff] %v2872
    %3729 = vst [vmem:[#allocation2 + $0xc0] sm:$0xff] %v2976
    %3730 = vst [vmem:[#allocation2 + $0xc8] sm:$0xff] %v3080
    %3731 = vst [vmem:[#allocation2 + $0xd0] sm:$0xff] %v3184
    %3732 = vst [vmem:[#allocation2 + $0xd8] sm:$0xff] %v3288
    %3733 = vst [vmem:[#allocation2 + $0xe0] sm:$0xff] %v3392
    %3734 = vst [vmem:[#allocation2 + $0xe8] sm:$0xff] %v3496
    %3735 = vst [vmem:[#allocation2 + $0xf0] sm:$0xff] %v3600
    %3736 = vst [vmem:[#allocation2 + $0xf8] sm:$0xff] %v3704
    // Predicated region
    $region14: #{tpu_custom_call.1} parent=1 // pred_check
      _
    $region15: #{tpu_custom_call.1} parent=1 // pred_check_branch
      %3738 = sbr.rel (0) target = $region17
    $region16: #{tpu_custom_call.1} parent=1 // pred_region
      %s3740 = ssub.s32 4096, 4096
      %3741 = vsyncadd [#allocation3], %s3740
      %s3742 = sshll.u32 [#allocation2], 4
      %s3743 = int_to_ptr.vmem [resolvable:$true] %s3742
      %3748 = dma.vmem_to_hbm [thread:$0]  %s3743, 4096, %s3, [#allocation3], 128, 128, 8
    $region17: #{tpu_custom_call.1} parent=1 // pred_fallthru
      _
    // Predicated region
    $region18: #{tpu_custom_call.1} parent=1 // pred_check
      _
    $region19: #{tpu_custom_call.1} parent=1 // pred_check_branch
      %3750 = sbr.rel (0) target = $region21
    $region20: #{tpu_custom_call.1} parent=1 // pred_region
      %3751 = dma.done [#allocation3], 4096
    $region21: #{tpu_custom_call.1} parent=1 // pred_fallthru
      _
    %3752 = vsyncpa [#allocation3], 1

</llo_original>
